<compile_context>
chip_gen: v5e
topology: v5e:2x2
jax: 0.10.0
libtpu: 0.0.40
codegen_flags: <defaults>
</compile_context>

<pallas_src>
import functools
import math

import jax
import jax.numpy as jnp
from jax.experimental import pallas as pl
from jax.experimental.pallas import tpu as pltpu


_VMEM_LIMIT_BYTES = 48 * 1024 * 1024   # explicit, with headroom for v7x's 64 MiB VMEM


def _pick_tile(n, candidates):
    for c in candidates:
        if n % c == 0:
            return c
    return n


# --------------------------------------------------------------------------
# Kernel A: fused RMSNorm + QKV (+bias) + RoPE
#   grid = (row_blocks, k_blocks)   -- k (hidden dim) is the reduction axis.
#   RMSNorm is factored:  (x*rsqrt(ms)*g) @ W == rsqrt(ms) * ((x*g) @ W),
#   so the per-row rsqrt scale, the bias and RoPE are applied once at the
#   last k block (f32 accumulator + sum-of-squares in VMEM scratch).
# --------------------------------------------------------------------------

def _norm_qkv_rope_kernel(x_ref, g_ref, w_ref, b_ref, cos_ref, sin_ref,
                          q_ref, k_ref, v_ref, acc_scr, ssq_scr, *,
                          eps, hidden, nh, ng, hd, rot, nk):
    kb = pl.program_id(1)

    @pl.when(kb == 0)
    def _():
        acc_scr[...] = jnp.zeros_like(acc_scr)
        ssq_scr[...] = jnp.zeros_like(ssq_scr)

    x = x_ref[...].astype(jnp.float32)                    # (tm, tk)
    g = g_ref[...].astype(jnp.float32)                    # (1, tk)
    ssq_scr[...] += jnp.sum(x * x, axis=-1, keepdims=True)
    xg = (x * g).astype(jnp.bfloat16)
    acc_scr[...] += jnp.dot(xg, w_ref[...], preferred_element_type=jnp.float32)

    @pl.when(kb == nk - 1)
    def _():
        inv = jax.lax.rsqrt(ssq_scr[...] / hidden + eps)            # (tm, 1)
        mixed = acc_scr[...] * inv + b_ref[...].astype(jnp.float32)  # (tm, Nqkv)

        rh = rot // 2
        cos = cos_ref[...].astype(jnp.float32)   # (tm, rh)
        sin = sin_ref[...].astype(jnp.float32)   # (tm, rh)

        def rope(xh):
            # xh: (tm, hd) in de-interleaved layout [even(rh) | odd(rh) | pass]
            e = xh[:, :rh]
            o = xh[:, rh:rot]
            pas = xh[:, rot:]
            return jnp.concatenate(
                [e * cos - o * sin, o * cos + e * sin, pas], axis=-1)

        qproj = nh * hd
        q_parts = [rope(mixed[:, h * hd:(h + 1) * hd]) for h in range(nh)]
        q_ref[...] = jnp.concatenate(q_parts, axis=-1).astype(q_ref.dtype)

        k_parts = [rope(mixed[:, qproj + gg * hd: qproj + (gg + 1) * hd])
                   for gg in range(ng)]
        k_ref[...] = jnp.concatenate(k_parts, axis=-1).astype(k_ref.dtype)

        v_ref[...] = mixed[:, qproj + ng * hd:].astype(v_ref.dtype)


def fused_norm_qkv_rope(hs2d, gamma, w_qkv, b_qkv, cos_tab, sin_tab, *,
                        S, nh, ng, hd, rot, eps):
    M, H = hs2d.shape
    Nqkv = w_qkv.shape[1]
    proj = nh * hd
    rh = rot // 2

    tm = _pick_tile(S, (256, 128, 64, 32, 16, 8))
    tk = _pick_tile(H, (512, 256, 128))
    nm, nk = M // tm, H // tk
    rows_per_batch = S // tm

    kern = functools.partial(_norm_qkv_rope_kernel, eps=eps, hidden=H,
                             nh=nh, ng=ng, hd=hd, rot=rot, nk=nk)
    ce = pl.CostEstimate(
        flops=int(2 * M * H * Nqkv), transcendentals=0,
        bytes_accessed=int(2 * (M * H + H * Nqkv + M * Nqkv)))

    return pl.pallas_call(
        kern,
        out_shape=(
            jax.ShapeDtypeStruct((M, proj), hs2d.dtype),
            jax.ShapeDtypeStruct((M, ng * hd), hs2d.dtype),
            jax.ShapeDtypeStruct((M, ng * hd), hs2d.dtype),
        ),
        grid=(nm, nk),
        in_specs=[
            pl.BlockSpec((tm, tk), lambda i, k: (i, k)),
            pl.BlockSpec((1, tk), lambda i, k: (0, k)),
            pl.BlockSpec((tk, Nqkv), lambda i, k: (k, 0)),
            pl.BlockSpec((1, Nqkv), lambda i, k: (0, 0)),
            pl.BlockSpec((tm, rh), lambda i, k: (i % rows_per_batch, 0)),
            pl.BlockSpec((tm, rh), lambda i, k: (i % rows_per_batch, 0)),
        ],
        out_specs=(
            pl.BlockSpec((tm, proj), lambda i, k: (i, 0)),
            pl.BlockSpec((tm, ng * hd), lambda i, k: (i, 0)),
            pl.BlockSpec((tm, ng * hd), lambda i, k: (i, 0)),
        ),
        scratch_shapes=[pltpu.VMEM((tm, Nqkv), jnp.float32),
                        pltpu.VMEM((tm, 1), jnp.float32)],
        compiler_params=pltpu.CompilerParams(
            dimension_semantics=("parallel", "arbitrary"),
            vmem_limit_bytes=_VMEM_LIMIT_BYTES),
        cost_estimate=ce,
    )(hs2d, gamma.reshape(1, H), w_qkv, b_qkv.reshape(1, Nqkv), cos_tab, sin_tab)


# --------------------------------------------------------------------------
# Kernel B: GQA causal flash attention.
#   grid = (B, q_blocks, kv_blocks);  each step loads one Q block covering ALL
#   heads (lane-dense, nh*hd wide) and one K/V block covering all ng groups
#   (fetched once, shared by every head of the group -> no jnp.repeat, no
#   rep-times KV bandwidth).  Online softmax state lives in VMEM scratch;
#   fully-masked upper-triangular KV blocks are skipped with pl.when.
# --------------------------------------------------------------------------

def _flash_attn_kernel(q_ref, k_ref, v_ref, o_ref, m_scr, l_scr, acc_scr, *,
                       scale, nh, ng, hd, tq, tkv, nkv):
    qi = pl.program_id(1)
    ki = pl.program_id(2)
    rep = nh // ng

    @pl.when(ki == 0)
    def _():
        m_scr[...] = jnp.full(m_scr.shape, -1e30, dtype=jnp.float32)
        l_scr[...] = jnp.zeros_like(l_scr)
        acc_scr[...] = jnp.zeros_like(acc_scr)

    # skip KV blocks that are entirely above the causal diagonal
    @pl.when(ki * tkv <= qi * tq + (tq - 1))
    def _():
        qpos = qi * tq + jax.lax.broadcasted_iota(jnp.int32, (tq, tkv), 0)
        kpos = ki * tkv + jax.lax.broadcasted_iota(jnp.int32, (tq, tkv), 1)
        causal = qpos >= kpos
        k_all = k_ref[...]                               # (tkv, ng*hd) bf16
        v_all = v_ref[...]
        for h in range(nh):
            g = h // rep
            q_h = (q_ref[:, h * hd:(h + 1) * hd].astype(jnp.float32)
                   * scale).astype(jnp.bfloat16)          # scale folded into q
            k_g = k_all[:, g * hd:(g + 1) * hd]
            s = jax.lax.dot_general(q_h, k_g, (((1,), (1,)), ((), ())),
                                    preferred_element_type=jnp.float32)
            s = jnp.where(causal, s, -1e30)
            m_prev = m_scr[h]                             # (tq, 1)
            m_new = jnp.maximum(m_prev, jnp.max(s, axis=-1, keepdims=True))
            alpha = jnp.exp(m_prev - m_new)
            p = jnp.exp(s - m_new)
            l_scr[h] = alpha * l_scr[h] + jnp.sum(p, axis=-1, keepdims=True)
            v_g = v_all[:, g * hd:(g + 1) * hd]
            pv = jnp.dot(p.astype(jnp.bfloat16), v_g,
                         preferred_element_type=jnp.float32)
            acc_scr[h] = alpha * acc_scr[h] + pv
            m_scr[h] = m_new

    @pl.when(ki == nkv - 1)
    def _():
        parts = []
        for h in range(nh):
            inv = pl.reciprocal(l_scr[h], approx=True)    # EUP, frees VALU slot
            parts.append(acc_scr[h] * inv)
        o_ref[...] = jnp.concatenate(parts, axis=-1).astype(o_ref.dtype)


def flash_attention_gqa(q2, k2, v2, *, B, S, nh, ng, hd):
    M = B * S
    proj = nh * hd
    tq = _pick_tile(S, (256, 128, 64, 32, 16, 8))
    tkv = tq
    nq, nkv = S // tq, S // tkv
    scale = 1.0 / math.sqrt(hd)

    kern = functools.partial(_flash_attn_kernel, scale=scale, nh=nh, ng=ng,
                             hd=hd, tq=tq, tkv=tkv, nkv=nkv)
    ce = pl.CostEstimate(
        flops=int(4 * B * nh * S * S * hd),
        transcendentals=int(B * nh * S * S),
        bytes_accessed=int(2 * (q2.size + k2.size + v2.size + M * proj)))

    return pl.pallas_call(
        kern,
        out_shape=jax.ShapeDtypeStruct((M, proj), q2.dtype),
        grid=(B, nq, nkv),
        in_specs=[
            pl.BlockSpec((tq, proj), lambda b, qi, ki: (b * nq + qi, 0)),
            pl.BlockSpec((tkv, ng * hd), lambda b, qi, ki: (b * nkv + ki, 0)),
            pl.BlockSpec((tkv, ng * hd), lambda b, qi, ki: (b * nkv + ki, 0)),
        ],
        out_specs=pl.BlockSpec((tq, proj), lambda b, qi, ki: (b * nq + qi, 0)),
        scratch_shapes=[
            pltpu.VMEM((nh, tq, 1), jnp.float32),
            pltpu.VMEM((nh, tq, 1), jnp.float32),
            pltpu.VMEM((nh, tq, hd), jnp.float32),
        ],
        compiler_params=pltpu.CompilerParams(
            dimension_semantics=("parallel", "parallel", "arbitrary"),
            vmem_limit_bytes=_VMEM_LIMIT_BYTES),
        cost_estimate=ce,
    )(q2, k2, v2)


# --------------------------------------------------------------------------
# Kernel C: dense + residual + RMSNorm + fc1 + SwiGLU + fc2 + residual
#   row-tiled; no fabricated zero biases (config has no dense/fc biases).
# TODO(synk): at production GLM sizes the fc1/fc2 weights exceed VMEM and need
#   in-kernel K/N weight streaming (pltpu.emit_pipeline) instead of whole-weight blocks.
# --------------------------------------------------------------------------

def _dense_mlp_kernel(ctx_ref, hs_ref, wd_ref, gp_ref, w1_ref, w2_ref, o_ref, *, eps):
    attn = jnp.dot(ctx_ref[...], wd_ref[...], preferred_element_type=jnp.float32)
    res = hs_ref[...].astype(jnp.float32) + attn
    ms = jnp.mean(res * res, axis=-1, keepdims=True)
    ln = res * jax.lax.rsqrt(ms + eps) * gp_ref[...].astype(jnp.float32)
    h = jnp.dot(ln.astype(jnp.bfloat16), w1_ref[...],
                preferred_element_type=jnp.float32)
    F = h.shape[-1] // 2
    gate = h[:, :F]
    act = (gate * jax.nn.sigmoid(gate)) * h[:, F:]
    mlp = jnp.dot(act.astype(jnp.bfloat16), w2_ref[...],
                  preferred_element_type=jnp.float32)
    o_ref[...] = (res + mlp).astype(o_ref.dtype)


def fused_dense_mlp(ctx2, hs2d, w_dense, g_post, w_fc1, w_fc2, *, eps):
    M, H = hs2d.shape
    proj = w_dense.shape[0]
    F2 = w_fc1.shape[1]
    F = F2 // 2
    tm = _pick_tile(M, (512, 256, 128, 64, 32, 16, 8))
    nm = M // tm

    ce = pl.CostEstimate(
        flops=int(2 * M * (proj * H + H * F2 + F * H)),
        transcendentals=int(M * F),
        bytes_accessed=int(2 * (M * proj + 2 * M * H + proj * H + H * F2 + F * H)))

    return pl.pallas_call(
        functools.partial(_dense_mlp_kernel, eps=eps),
        out_shape=jax.ShapeDtypeStruct((M, H), hs2d.dtype),
        grid=(nm,),
        in_specs=[
            pl.BlockSpec((tm, proj), lambda i: (i, 0)),
            pl.BlockSpec((tm, H), lambda i: (i, 0)),
            pl.BlockSpec((proj, H), lambda i: (0, 0)),
            pl.BlockSpec((1, H), lambda i: (0, 0)),
            pl.BlockSpec((H, F2), lambda i: (0, 0)),
            pl.BlockSpec((F, H), lambda i: (0, 0)),
        ],
        out_specs=pl.BlockSpec((tm, H), lambda i: (i, 0)),
        compiler_params=pltpu.CompilerParams(
            dimension_semantics=("parallel",),
            vmem_limit_bytes=_VMEM_LIMIT_BYTES),
        cost_estimate=ce,
    )(ctx2, hs2d, w_dense, g_post.reshape(1, H), w_fc1, w_fc2)


# --------------------------------------------------------------------------
# Final RMSNorm (row-tiled)
# --------------------------------------------------------------------------

def _rmsnorm_kernel(x_ref, g_ref, o_ref, *, eps):
    x = x_ref[...].astype(jnp.float32)
    ms = jnp.mean(x * x, axis=-1, keepdims=True)
    o_ref[...] = (x * jax.lax.rsqrt(ms + eps)
                  * g_ref[...].astype(jnp.float32)).astype(o_ref.dtype)


def rmsnorm(x2d, gamma, eps):
    M, H = x2d.shape
    tm = _pick_tile(M, (1024, 512, 256, 128, 64, 32, 16, 8))
    return pl.pallas_call(
        functools.partial(_rmsnorm_kernel, eps=eps),
        out_shape=jax.ShapeDtypeStruct((M, H), x2d.dtype),
        grid=(M // tm,),
        in_specs=[pl.BlockSpec((tm, H), lambda i: (i, 0)),
                  pl.BlockSpec((1, H), lambda i: (0, 0))],
        out_specs=pl.BlockSpec((tm, H), lambda i: (i, 0)),
        compiler_params=pltpu.CompilerParams(
            dimension_semantics=("parallel",),
            vmem_limit_bytes=_VMEM_LIMIT_BYTES),
    )(x2d, gamma.reshape(1, H))


# --------------------------------------------------------------------------
# Parameter setup / preprocessing / RoPE cache
# --------------------------------------------------------------------------

CFG = dict(
    num_layers=2,
    hidden_size=128,
    ffn_hidden_size=128,
    num_attention_heads=4,
    kv_channels=32,
    multi_query_attention=True,
    multi_query_group_num=2,
    add_bias_linear=False,
    add_qkv_bias=True,
    layernorm_epsilon=1e-5,
    post_layer_norm=True,
    attention_dropout=0.0,   # eval: attention dropout is identity
    torch_dtype="bfloat16",
)


def init_params(key, cfg):
    H = cfg["hidden_size"]
    nh = cfg["num_attention_heads"]
    hd = cfg["kv_channels"]
    ng = cfg["multi_query_group_num"]
    proj = nh * hd
    qkv = proj + 2 * ng * hd
    ffn = cfg["ffn_hidden_size"]
    dt = jnp.bfloat16
    layers = []
    for _ in range(cfg["num_layers"]):
        key, k0, k1, k2, k3, k4 = jax.random.split(key, 6)
        layers.append(dict(
            w_qkv=(jax.random.normal(k0, (H, qkv), jnp.float32) * 0.02).astype(dt),
            b_qkv=(jax.random.normal(k1, (qkv,), jnp.float32) * 0.02).astype(dt),
            w_dense=(jax.random.normal(k2, (proj, H), jnp.float32) * 0.02).astype(dt),
            w_fc1=(jax.random.normal(k3, (H, 2 * ffn), jnp.float32) * 0.02).astype(dt),
            w_fc2=(jax.random.normal(k4, (ffn, H), jnp.float32) * 0.02).astype(dt),
            g_in=jnp.ones((H,), dt),
            g_post=jnp.ones((H,), dt),
        ))
    return dict(layers=layers, g_final=jnp.ones((H,), dt))


def preprocess_params(params, cfg):
    """One-time column de-interleave of the Q/K sections of w_qkv / b_qkv.

    Attention scores are invariant to a joint permutation of the Q/K head dims,
    so this is numerically equivalent to the reference interleaved RoPE while
    letting the kernel rotate with contiguous slices (no lane shuffles)."""
    nh = cfg["num_attention_heads"]
    hd = cfg["kv_channels"]
    ng = cfg["multi_query_group_num"]
    rot = hd // 2
    head_perm = list(range(0, rot, 2)) + list(range(1, rot, 2)) + list(range(rot, hd))
    perm = []
    for h in range(nh):
        perm += [h * hd + j for j in head_perm]
    qoff = nh * hd
    for g in range(ng):
        perm += [qoff + g * hd + j for j in head_perm]
    koff = qoff + ng * hd
    perm += list(range(koff, koff + ng * hd))
    perm = jnp.array(perm, dtype=jnp.int32)

    new_layers = []
    for p in params["layers"]:
        p = dict(p)
        p["w_qkv"] = p["w_qkv"][:, perm]
        p["b_qkv"] = p["b_qkv"][perm]
        new_layers.append(p)
    return dict(layers=new_layers, g_final=params["g_final"])


def build_rope_cache(seq_len, head_dim, dtype=jnp.bfloat16, base=10000.0):
    rot_dim = head_dim // 2
    rh = rot_dim // 2
    inv_freq = 1.0 / (base ** (jnp.arange(0, rh, dtype=jnp.float32) * 2.0 / rot_dim))
    pos = jnp.arange(seq_len, dtype=jnp.float32)
    ang = pos[:, None] * inv_freq[None, :]
    cache = jnp.stack([jnp.cos(ang), jnp.sin(ang)], axis=-1)   # (S, rh, 2)
    return cache[None].astype(dtype)                           # (1, S, rh, 2)


# --------------------------------------------------------------------------
# Transformer forward (eval path)
# --------------------------------------------------------------------------

def transformer_forward(params, hidden_states, rotary_pos_emb, cfg):
    B, S, H = hidden_states.shape
    nh = cfg["num_attention_heads"]
    hd = cfg["kv_channels"]
    ng = cfg["multi_query_group_num"] if cfg["multi_query_attention"] else nh
    eps = cfg["layernorm_epsilon"]
    rot = 2 * rotary_pos_emb.shape[-2]
    assert rot == hd // 2 and S % 8 == 0

    cos_tab = rotary_pos_emb[0, :S, :, 0]   # (S, rot//2)
    sin_tab = rotary_pos_emb[0, :S, :, 1]

    hs2d = hidden_states.reshape(B * S, H)
    for p in params["layers"]:
        q2, k2, v2 = fused_norm_qkv_rope(
            hs2d, p["g_in"], p["w_qkv"], p["b_qkv"], cos_tab, sin_tab,
            S=S, nh=nh, ng=ng, hd=hd, rot=rot, eps=eps)
        ctx2 = flash_attention_gqa(q2, k2, v2, B=B, S=S, nh=nh, ng=ng, hd=hd)
        hs2d = fused_dense_mlp(ctx2, hs2d, p["w_dense"], p["g_post"],
                               p["w_fc1"], p["w_fc2"], eps=eps)

    if cfg["post_layer_norm"]:
        hs2d = rmsnorm(hs2d, params["g_final"], eps)

    # TODO(synk): kv-cache and varlen (unpadded) flash-attn paths are not exercised
    # (kv_caches=None, attention_mask=None), matching the reference call pattern.
    return hs2d.reshape(B, S, H), None


if __name__ == "__main__":
    cfg = CFG
    B, S = 2, 16
    key = jax.random.PRNGKey(0)
    kp, kx = jax.random.split(key)

    params = preprocess_params(init_params(kp, cfg), cfg)
    hidden_states = jax.random.normal(
        kx, (B, S, cfg["hidden_size"]), jnp.float32).astype(jnp.bfloat16)
    rotary_pos_emb = build_rope_cache(S, cfg["kv_channels"])

    fwd = jax.jit(lambda prm, hs, rope: transformer_forward(prm, hs, rope, cfg))
    out, new_kv = fwd(params, hidden_states, rotary_pos_emb)
    jax.block_until_ready(out)

    assert out.shape == (B, S, cfg["hidden_size"]) and out.dtype == jnp.bfloat16
    assert new_kv is None
    print("KERNEL_OK")
</pallas_src>

<mosaic_0001>
module attributes {stable_mosaic.version = 11 : i64} {
  func.func @_dense_mlp_kernel(%arg0: i32, %arg1: memref<32x128xbf16, #tpu.memory_space<vmem>>, %arg2: memref<32x128xbf16, #tpu.memory_space<vmem>>, %arg3: memref<128x128xbf16, #tpu.memory_space<vmem>>, %arg4: memref<1x128xbf16, #tpu.memory_space<vmem>>, %arg5: memref<128x256xbf16, #tpu.memory_space<vmem>>, %arg6: memref<128x128xbf16, #tpu.memory_space<vmem>>, %arg7: memref<32x128xbf16, #tpu.memory_space<vmem>>) attributes {dimension_semantics = [#tpu.dimension_semantics<parallel>], iteration_bounds = array<i64: 1>, scalar_prefetch = 0 : i64, scratch_operands = 0 : i64, tpu.core_type = #tpu.core_type<tc>, window_params = [{transform_indices = @transform_0, window_bounds = array<i64: 32, 128>}, {transform_indices = @transform_1, window_bounds = array<i64: 32, 128>}, {pipeline_mode = #tpu.pipeline_mode<synchronous>, transform_indices = @transform_2, window_bounds = array<i64: 128, 128>}, {pipeline_mode = #tpu.pipeline_mode<synchronous>, transform_indices = @transform_3, window_bounds = array<i64: 1, 128>}, {pipeline_mode = #tpu.pipeline_mode<synchronous>, transform_indices = @transform_4, window_bounds = array<i64: 128, 256>}, {pipeline_mode = #tpu.pipeline_mode<synchronous>, transform_indices = @transform_5, window_bounds = array<i64: 128, 128>}, {transform_indices = @transform_6, window_bounds = array<i64: 32, 128>}]} {
    %c0 = arith.constant 0 : index
    %c0_0 = arith.constant 0 : index
    %0 = vector.load %arg1[%c0, %c0_0] : memref<32x128xbf16, #tpu.memory_space<vmem>>, vector<32x128xbf16>
    %c0_1 = arith.constant 0 : index
    %c0_2 = arith.constant 0 : index
    %1 = vector.load %arg3[%c0_1, %c0_2] : memref<128x128xbf16, #tpu.memory_space<vmem>>, vector<128x128xbf16>
    %cst = arith.constant dense<0.000000e+00> : vector<32x128xf32>
    %2 = tpu.matmul %0, %1, %cst {dimension_numbers = #tpu.dot_dimension_numbers<[1], [0], [0], [1], [0, 0, 1, 1], [], []>} : vector<32x128xbf16>, vector<128x128xbf16>, vector<32x128xf32> -> vector<32x128xf32>
    %c0_3 = arith.constant 0 : index
    %c0_4 = arith.constant 0 : index
    %3 = vector.load %arg2[%c0_3, %c0_4] : memref<32x128xbf16, #tpu.memory_space<vmem>>, vector<32x128xbf16>
    %4 = arith.extf %3 : vector<32x128xbf16> to vector<32x128xf32>
    %5 = arith.addf %4, %2 : vector<32x128xf32>
    %6 = arith.mulf %5, %5 : vector<32x128xf32>
    %cst_5 = arith.constant dense<0.000000e+00> : vector<32xf32>
    %7 = vector.multi_reduction <add>, %6, %cst_5 [1] : vector<32x128xf32> to vector<32xf32>
    %8 = vector.shape_cast %7 : vector<32xf32> to vector<32x1xf32>
    %cst_6 = arith.constant 1.280000e+02 : f32
    %9 = vector.broadcast %cst_6 : f32 to vector<32x1xf32>
    %10 = arith.divf %8, %9 : vector<32x1xf32>
    %cst_7 = arith.constant 9.99999974E-6 : f32
    %11 = vector.broadcast %cst_7 : f32 to vector<32x1xf32>
    %12 = arith.addf %10, %11 : vector<32x1xf32>
    %13 = math.rsqrt %12 : vector<32x1xf32>
    %14 = vector.broadcast %13 : vector<32x1xf32> to vector<32x128xf32>
    %15 = arith.mulf %5, %14 : vector<32x128xf32>
    %c0_8 = arith.constant 0 : index
    %c0_9 = arith.constant 0 : index
    %16 = vector.load %arg4[%c0_8, %c0_9] : memref<1x128xbf16, #tpu.memory_space<vmem>>, vector<1x128xbf16>
    %17 = arith.extf %16 : vector<1x128xbf16> to vector<1x128xf32>
    %18 = vector.broadcast %17 : vector<1x128xf32> to vector<32x128xf32>
    %19 = arith.mulf %15, %18 : vector<32x128xf32>
    %20 = arith.truncf %19 : vector<32x128xf32> to vector<32x128xbf16>
    %c0_10 = arith.constant 0 : index
    %c0_11 = arith.constant 0 : index
    %21 = vector.load %arg5[%c0_10, %c0_11] : memref<128x256xbf16, #tpu.memory_space<vmem>>, vector<128x256xbf16>
    %cst_12 = arith.constant dense<0.000000e+00> : vector<32x256xf32>
    %22 = tpu.matmul %20, %21, %cst_12 {dimension_numbers = #tpu.dot_dimension_numbers<[1], [0], [0], [1], [0, 0, 1, 1], [], []>} : vector<32x128xbf16>, vector<128x256xbf16>, vector<32x256xf32> -> vector<32x256xf32>
    %23 = vector.extract_strided_slice %22 {offsets = [0, 0], sizes = [32, 128], strides = [1, 1]} : vector<32x256xf32> to vector<32x128xf32>
    %24 = arith.negf %23 : vector<32x128xf32>
    %25 = math.exp %24 : vector<32x128xf32>
    %cst_13 = arith.constant 1.000000e+00 : f32
    %26 = vector.broadcast %cst_13 : f32 to vector<32x128xf32>
    %27 = arith.addf %26, %25 : vector<32x128xf32>
    %28 = arith.divf %26, %27 : vector<32x128xf32>
    %29 = arith.mulf %23, %28 : vector<32x128xf32>
    %30 = vector.extract_strided_slice %22 {offsets = [0, 128], sizes = [32, 128], strides = [1, 1]} : vector<32x256xf32> to vector<32x128xf32>
    %31 = arith.mulf %29, %30 : vector<32x128xf32>
    %32 = arith.truncf %31 : vector<32x128xf32> to vector<32x128xbf16>
    %c0_14 = arith.constant 0 : index
    %c0_15 = arith.constant 0 : index
    %33 = vector.load %arg6[%c0_14, %c0_15] : memref<128x128xbf16, #tpu.memory_space<vmem>>, vector<128x128xbf16>
    %cst_16 = arith.constant dense<0.000000e+00> : vector<32x128xf32>
    %34 = tpu.matmul %32, %33, %cst_16 {dimension_numbers = #tpu.dot_dimension_numbers<[1], [0], [0], [1], [0, 0, 1, 1], [], []>} : vector<32x128xbf16>, vector<128x128xbf16>, vector<32x128xf32> -> vector<32x128xf32>
    %35 = arith.addf %5, %34 : vector<32x128xf32>
    %36 = arith.truncf %35 : vector<32x128xf32> to vector<32x128xbf16>
    %c0_17 = arith.constant 0 : index
    %c0_18 = arith.constant 0 : index
    %37 = vector.load %arg7[%c0_17, %c0_18] : memref<32x128xbf16, #tpu.memory_space<vmem>>, vector<32x128xbf16>
    tpu.vector_store %arg7[%c0_17, %c0_18], %36 {strides = array<i32>} : memref<32x128xbf16, #tpu.memory_space<vmem>>, vector<32x128xbf16>,
    return
  }
  func.func @transform_0(%arg0: i32) -> (i32, i32) {
    %c0_i32 = arith.constant 0 : i32
    %c0_i32_0 = arith.constant 0 : i32
    return %arg0, %c0_i32 : i32, i32
  }
  func.func @transform_1(%arg0: i32) -> (i32, i32) {
    %c0_i32 = arith.constant 0 : i32
    %c0_i32_0 = arith.constant 0 : i32
    return %arg0, %c0_i32 : i32, i32
  }
  func.func @transform_2(%arg0: i32) -> (i32, i32) {
    %c0_i32 = arith.constant 0 : i32
    %c0_i32_0 = arith.constant 0 : i32
    %c0_i32_1 = arith.constant 0 : i32
    return %c0_i32, %c0_i32_0 : i32, i32
  }
  func.func @transform_3(%arg0: i32) -> (i32, i32) {
    %c0_i32 = arith.constant 0 : i32
    %c0_i32_0 = arith.constant 0 : i32
    %c0_i32_1 = arith.constant 0 : i32
    return %c0_i32, %c0_i32_0 : i32, i32
  }
  func.func @transform_4(%arg0: i32) -> (i32, i32) {
    %c0_i32 = arith.constant 0 : i32
    %c0_i32_0 = arith.constant 0 : i32
    %c0_i32_1 = arith.constant 0 : i32
    return %c0_i32, %c0_i32_0 : i32, i32
  }
  func.func @transform_5(%arg0: i32) -> (i32, i32) {
    %c0_i32 = arith.constant 0 : i32
    %c0_i32_0 = arith.constant 0 : i32
    %c0_i32_1 = arith.constant 0 : i32
    return %c0_i32, %c0_i32_0 : i32, i32
  }
  func.func @transform_6(%arg0: i32) -> (i32, i32) {
    %c0_i32 = arith.constant 0 : i32
    %c0_i32_0 = arith.constant 0 : i32
    return %arg0, %c0_i32 : i32, i32
  }
}

module attributes {stable_mosaic.version = 11 : i64} {
  func.func @_flash_attn_kernel(%arg0: i32, %arg1: i32, %arg2: i32, %arg3: memref<16x128xbf16, #tpu.memory_space<vmem>>, %arg4: memref<16x64xbf16, #tpu.memory_space<vmem>>, %arg5: memref<16x64xbf16, #tpu.memory_space<vmem>>, %arg6: memref<16x128xbf16, #tpu.memory_space<vmem>>, %arg7: memref<4x16x1xf32, #tpu.memory_space<vmem>>, %arg8: memref<4x16x1xf32, #tpu.memory_space<vmem>>, %arg9: memref<4x16x32xf32, #tpu.memory_space<vmem>>) attributes {dimension_semantics = [#tpu.dimension_semantics<parallel>, #tpu.dimension_semantics<parallel>, #tpu.dimension_semantics<arbitrary>], iteration_bounds = array<i64: 2, 1, 1>, scalar_prefetch = 0 : i64, scratch_operands = 3 : i64, tpu.core_type = #tpu.core_type<tc>, window_params = [{transform_indices = @transform_0, window_bounds = array<i64: 16, 128>}, {transform_indices = @transform_1, window_bounds = array<i64: 16, 64>}, {transform_indices = @transform_2, window_bounds = array<i64: 16, 64>}, {transform_indices = @transform_3, window_bounds = array<i64: 16, 128>}]} {
    %c0_i32 = arith.constant 0 : i32
    %0 = arith.cmpi eq, %arg2, %c0_i32 : i32
    %1 = arith.extui %0 : i1 to i32
    %c0_i32_0 = arith.constant 0 : i32
    %2 = arith.cmpi ne, %1, %c0_i32_0 : i32
    scf.if %2 {
      %cst = arith.constant -1.000000e+30 : f32
      %12 = vector.broadcast %cst : f32 to vector<4x16x1xf32>
      %c0 = arith.constant 0 : index
      %c0_5 = arith.constant 0 : index
      %c0_6 = arith.constant 0 : index
      %13 = vector.load %arg7[%c0, %c0_5, %c0_6] : memref<4x16x1xf32, #tpu.memory_space<vmem>>, vector<4x16x1xf32>
      tpu.vector_store %arg7[%c0, %c0_5, %c0_6], %12 {strides = array<i32>} : memref<4x16x1xf32, #tpu.memory_space<vmem>>, vector<4x16x1xf32>,
      %cst_7 = arith.constant 0.000000e+00 : f32
      %14 = vector.broadcast %cst_7 : f32 to vector<4x16x1xf32>
      %c0_8 = arith.constant 0 : index
      %c0_9 = arith.constant 0 : index
      %c0_10 = arith.constant 0 : index
      %15 = vector.load %arg8[%c0_8, %c0_9, %c0_10] : memref<4x16x1xf32, #tpu.memory_space<vmem>>, vector<4x16x1xf32>
      tpu.vector_store %arg8[%c0_8, %c0_9, %c0_10], %14 {strides = array<i32>} : memref<4x16x1xf32, #tpu.memory_space<vmem>>, vector<4x16x1xf32>,
      %cst_11 = arith.constant 0.000000e+00 : f32
      %16 = vector.broadcast %cst_11 : f32 to vector<4x16x32xf32>
      %c0_12 = arith.constant 0 : index
      %c0_13 = arith.constant 0 : index
      %c0_14 = arith.constant 0 : index
      %17 = vector.load %arg9[%c0_12, %c0_13, %c0_14] : memref<4x16x32xf32, #tpu.memory_space<vmem>>, vector<4x16x32xf32>
      tpu.vector_store %arg9[%c0_12, %c0_13, %c0_14], %16 {strides = array<i32>} : memref<4x16x32xf32, #tpu.memory_space<vmem>>, vector<4x16x32xf32>,
    } else {
    }
    %c16_i32 = arith.constant 16 : i32
    %3 = arith.muli %arg2, %c16_i32 : i32
    %c16_i32_1 = arith.constant 16 : i32
    %4 = arith.muli %arg1, %c16_i32_1 : i32
    %c15_i32 = arith.constant 15 : i32
    %5 = arith.addi %4, %c15_i32 : i32
    %6 = arith.cmpi sle, %3, %5 : i32
    %7 = arith.extui %6 : i1 to i32
    %c0_i32_2 = arith.constant 0 : i32
    %8 = arith.cmpi ne, %7, %c0_i32_2 : i32
    scf.if %8 {
      %c16_i32_5 = arith.constant 16 : i32
      %12 = arith.muli %arg1, %c16_i32_5 : i32
      %13 = tpu.iota {dimensions = array<i32: 0>} : vector<16x16xi32>
      %14 = vector.broadcast %12 : i32 to vector<16x16xi32>
      %15 = arith.addi %14, %13 : vector<16x16xi32>
      %c16_i32_6 = arith.constant 16 : i32
      %16 = arith.muli %arg2, %c16_i32_6 : i32
      %17 = tpu.iota {dimensions = array<i32: 1>} : vector<16x16xi32>
      %18 = vector.broadcast %16 : i32 to vector<16x16xi32>
      %19 = arith.addi %18, %17 : vector<16x16xi32>
      %20 = arith.cmpi sge, %15, %19 : vector<16x16xi32>
      %c0 = arith.constant 0 : index
      %c0_7 = arith.constant 0 : index
      %21 = vector.load %arg4[%c0, %c0_7] : memref<16x64xbf16, #tpu.memory_space<vmem>>, vector<16x64xbf16>
      %c0_8 = arith.constant 0 : index
      %c0_9 = arith.constant 0 : index
      %22 = vector.load %arg5[%c0_8, %c0_9] : memref<16x64xbf16, #tpu.memory_space<vmem>>, vector<16x64xbf16>
      %c0_10 = arith.constant 0 : index
      %c0_11 = arith.constant 0 : index
      %23 = vector.load %arg3[%c0_10, %c0_11] : memref<16x128xbf16, #tpu.memory_space<vmem>>, vector<16x32xbf16>
      %24 = arith.extf %23 : vector<16x32xbf16> to vector<16x32xf32>
      %cst = arith.constant 0.176776692 : f32
      %25 = vector.broadcast %cst : f32 to vector<16x32xf32>
      %26 = arith.mulf %24, %25 : vector<16x32xf32>
      %27 = arith.truncf %26 : vector<16x32xf32> to vector<16x32xbf16>
      %28 = vector.extract_strided_slice %21 {offsets = [0, 0], sizes = [16, 32], strides = [1, 1]} : vector<16x64xbf16> to vector<16x32xbf16>
      %cst_12 = arith.constant dense<0.000000e+00> : vector<16x16xf32>
      %29 = tpu.matmul %27, %28, %cst_12 {dimension_numbers = #tpu.dot_dimension_numbers<[1], [1], [0], [0], [0, 0, 1, 0], [], []>} : vector<16x32xbf16>, vector<16x32xbf16>, vector<16x16xf32> -> vector<16x16xf32>
      %cst_13 = arith.constant -1.000000e+30 : f32
      %30 = vector.broadcast %cst_13 : f32 to vector<16x16xf32>
      %31 = arith.select %20, %29, %30 : vector<16x16xi1>, vector<16x16xf32>
      %c0_14 = arith.constant 0 : index
      %c0_15 = arith.constant 0 : index
      %c0_16 = arith.constant 0 : index
      %32 = vector.load %arg7[%c0_14, %c0_15, %c0_16] : memref<4x16x1xf32, #tpu.memory_space<vmem>>, vector<1x16x1xf32>
      %33 = vector.shape_cast %32 : vector<1x16x1xf32> to vector<16x1xf32>
      %cst_17 = arith.constant dense<0xFF800000> : vector<16xf32>
      %34 = vector.multi_reduction <maximumf>, %31, %cst_17 [1] : vector<16x16xf32> to vector<16xf32>
      %35 = vector.shape_cast %34 : vector<16xf32> to vector<16x1xf32>
      %36 = arith.maximumf %33, %35 : vector<16x1xf32>
      %37 = arith.subf %33, %36 : vector<16x1xf32>
      %38 = math.exp %37 : vector<16x1xf32>
      %39 = vector.broadcast %36 : vector<16x1xf32> to vector<16x16xf32>
      %40 = arith.subf %31, %39 : vector<16x16xf32>
      %41 = math.exp %40 : vector<16x16xf32>
      %c0_18 = arith.constant 0 : index
      %c0_19 = arith.constant 0 : index
      %c0_20 = arith.constant 0 : index
      %42 = vector.load %arg8[%c0_18, %c0_19, %c0_20] : memref<4x16x1xf32, #tpu.memory_space<vmem>>, vector<1x16x1xf32>
      %43 = vector.shape_cast %42 : vector<1x16x1xf32> to vector<16x1xf32>
      %44 = arith.mulf %38, %43 : vector<16x1xf32>
      %cst_21 = arith.constant dense<0.000000e+00> : vector<16xf32>
      %45 = vector.multi_reduction <add>, %41, %cst_21 [1] : vector<16x16xf32> to vector<16xf32>
      %46 = vector.shape_cast %45 : vector<16xf32> to vector<16x1xf32>
      %47 = arith.addf %44, %46 : vector<16x1xf32>
      %c0_22 = arith.constant 0 : index
      %c0_23 = arith.constant 0 : index
      %c0_24 = arith.constant 0 : index
      %48 = vector.load %arg8[%c0_22, %c0_23, %c0_24] : memref<4x16x1xf32, #tpu.memory_space<vmem>>, vector<1x16x1xf32>
      %49 = vector.shape_cast %48 : vector<1x16x1xf32> to vector<16x1xf32>
      %50 = vector.shape_cast %47 : vector<16x1xf32> to vector<1x16x1xf32>
      tpu.vector_store %arg8[%c0_22, %c0_23, %c0_24], %50 {strides = array<i32>} : memref<4x16x1xf32, #tpu.memory_space<vmem>>, vector<1x16x1xf32>,
      %51 = vector.extract_strided_slice %22 {offsets = [0, 0], sizes = [16, 32], strides = [1, 1]} : vector<16x64xbf16> to vector<16x32xbf16>
      %52 = arith.truncf %41 : vector<16x16xf32> to vector<16x16xbf16>
      %cst_25 = arith.constant dense<0.000000e+00> : vector<16x32xf32>
      %53 = tpu.matmul %52, %51, %cst_25 {dimension_numbers = #tpu.dot_dimension_numbers<[1], [0], [0], [1], [0, 0, 1, 1], [], []>} : vector<16x16xbf16>, vector<16x32xbf16>, vector<16x32xf32> -> vector<16x32xf32>
      %c0_26 = arith.constant 0 : index
      %c0_27 = arith.constant 0 : index
      %c0_28 = arith.constant 0 : index
      %54 = vector.load %arg9[%c0_26, %c0_27, %c0_28] : memref<4x16x32xf32, #tpu.memory_space<vmem>>, vector<1x16x32xf32>
      %55 = vector.shape_cast %54 : vector<1x16x32xf32> to vector<16x32xf32>
      %56 = vector.broadcast %38 : vector<16x1xf32> to vector<16x32xf32>
      %57 = arith.mulf %56, %55 : vector<16x32xf32>
      %58 = arith.addf %57, %53 : vector<16x32xf32>
      %c0_29 = arith.constant 0 : index
      %c0_30 = arith.constant 0 : index
      %c0_31 = arith.constant 0 : index
      %59 = vector.load %arg9[%c0_29, %c0_30, %c0_31] : memref<4x16x32xf32, #tpu.memory_space<vmem>>, vector<1x16x32xf32>
      %60 = vector.shape_cast %59 : vector<1x16x32xf32> to vector<16x32xf32>
      %61 = vector.shape_cast %58 : vector<16x32xf32> to vector<1x16x32xf32>
      tpu.vector_store %arg9[%c0_29, %c0_30, %c0_31], %61 {strides = array<i32>} : memref<4x16x32xf32, #tpu.memory_space<vmem>>, vector<1x16x32xf32>,
      %c0_32 = arith.constant 0 : index
      %c0_33 = arith.constant 0 : index
      %c0_34 = arith.constant 0 : index
      %62 = vector.load %arg7[%c0_32, %c0_33, %c0_34] : memref<4x16x1xf32, #tpu.memory_space<vmem>>, vector<1x16x1xf32>
      %63 = vector.shape_cast %62 : vector<1x16x1xf32> to vector<16x1xf32>
      %64 = vector.shape_cast %36 : vector<16x1xf32> to vector<1x16x1xf32>
      tpu.vector_store %arg7[%c0_32, %c0_33, %c0_34], %64 {strides = array<i32>} : memref<4x16x1xf32, #tpu.memory_space<vmem>>, vector<1x16x1xf32>,
      %c0_35 = arith.constant 0 : index
      %c32 = arith.constant 32 : index
      %65 = vector.load %arg3[%c0_35, %c32] : memref<16x128xbf16, #tpu.memory_space<vmem>>, vector<16x32xbf16>
      %66 = arith.extf %65 : vector<16x32xbf16> to vector<16x32xf32>
      %cst_36 = arith.constant 0.176776692 : f32
      %67 = vector.broadcast %cst_36 : f32 to vector<16x32xf32>
      %68 = arith.mulf %66, %67 : vector<16x32xf32>
      %69 = arith.truncf %68 : vector<16x32xf32> to vector<16x32xbf16>
      %70 = vector.extract_strided_slice %21 {offsets = [0, 0], sizes = [16, 32], strides = [1, 1]} : vector<16x64xbf16> to vector<16x32xbf16>
      %cst_37 = arith.constant dense<0.000000e+00> : vector<16x16xf32>
      %71 = tpu.matmul %69, %70, %cst_37 {dimension_numbers = #tpu.dot_dimension_numbers<[1], [1], [0], [0], [0, 0, 1, 0], [], []>} : vector<16x32xbf16>, vector<16x32xbf16>, vector<16x16xf32> -> vector<16x16xf32>
      %cst_38 = arith.constant -1.000000e+30 : f32
      %72 = vector.broadcast %cst_38 : f32 to vector<16x16xf32>
      %73 = arith.select %20, %71, %72 : vector<16x16xi1>, vector<16x16xf32>
      %c1 = arith.constant 1 : index
      %c0_39 = arith.constant 0 : index
      %c0_40 = arith.constant 0 : index
      %74 = vector.load %arg7[%c1, %c0_39, %c0_40] : memref<4x16x1xf32, #tpu.memory_space<vmem>>, vector<1x16x1xf32>
      %75 = vector.shape_cast %74 : vector<1x16x1xf32> to vector<16x1xf32>
      %cst_41 = arith.constant dense<0xFF800000> : vector<16xf32>
      %76 = vector.multi_reduction <maximumf>, %73, %cst_41 [1] : vector<16x16xf32> to vector<16xf32>
      %77 = vector.shape_cast %76 : vector<16xf32> to vector<16x1xf32>
      %78 = arith.maximumf %75, %77 : vector<16x1xf32>
      %79 = arith.subf %75, %78 : vector<16x1xf32>
      %80 = math.exp %79 : vector<16x1xf32>
      %81 = vector.broadcast %78 : vector<16x1xf32> to vector<16x16xf32>
      %82 = arith.subf %73, %81 : vector<16x16xf32>
      %83 = math.exp %82 : vector<16x16xf32>
      %c1_42 = arith.constant 1 : index
      %c0_43 = arith.constant 0 : index
      %c0_44 = arith.constant 0 : index
      %84 = vector.load %arg8[%c1_42, %c0_43, %c0_44] : memref<4x16x1xf32, #tpu.memory_space<vmem>>, vector<1x16x1xf32>
      %85 = vector.shape_cast %84 : vector<1x16x1xf32> to vector<16x1xf32>
      %86 = arith.mulf %80, %85 : vector<16x1xf32>
      %cst_45 = arith.constant dense<0.000000e+00> : vector<16xf32>
      %87 = vector.multi_reduction <add>, %83, %cst_45 [1] : vector<16x16xf32> to vector<16xf32>
      %88 = vector.shape_cast %87 : vector<16xf32> to vector<16x1xf32>
      %89 = arith.addf %86, %88 : vector<16x1xf32>
      %c1_46 = arith.constant 1 : index
      %c0_47 = arith.constant 0 : index
      %c0_48 = arith.constant 0 : index
      %90 = vector.load %arg8[%c1_46, %c0_47, %c0_48] : memref<4x16x1xf32, #tpu.memory_space<vmem>>, vector<1x16x1xf32>
      %91 = vector.shape_cast %90 : vector<1x16x1xf32> to vector<16x1xf32>
      %92 = vector.shape_cast %89 : vector<16x1xf32> to vector<1x16x1xf32>
      tpu.vector_store %arg8[%c1_46, %c0_47, %c0_48], %92 {strides = array<i32>} : memref<4x16x1xf32, #tpu.memory_space<vmem>>, vector<1x16x1xf32>,
      %93 = vector.extract_strided_slice %22 {offsets = [0, 0], sizes = [16, 32], strides = [1, 1]} : vector<16x64xbf16> to vector<16x32xbf16>
      %94 = arith.truncf %83 : vector<16x16xf32> to vector<16x16xbf16>
      %cst_49 = arith.constant dense<0.000000e+00> : vector<16x32xf32>
      %95 = tpu.matmul %94, %93, %cst_49 {dimension_numbers = #tpu.dot_dimension_numbers<[1], [0], [0], [1], [0, 0, 1, 1], [], []>} : vector<16x16xbf16>, vector<16x32xbf16>, vector<16x32xf32> -> vector<16x32xf32>
      %c1_50 = arith.constant 1 : index
      %c0_51 = arith.constant 0 : index
      %c0_52 = arith.constant 0 : index
      %96 = vector.load %arg9[%c1_50, %c0_51, %c0_52] : memref<4x16x32xf32, #tpu.memory_space<vmem>>, vector<1x16x32xf32>
      %97 = vector.shape_cast %96 : vector<1x16x32xf32> to vector<16x32xf32>
      %98 = vector.broadcast %80 : vector<16x1xf32> to vector<16x32xf32>
      %99 = arith.mulf %98, %97 : vector<16x32xf32>
      %100 = arith.addf %99, %95 : vector<16x32xf32>
      %c1_53 = arith.constant 1 : index
      %c0_54 = arith.constant 0 : index
      %c0_55 = arith.constant 0 : index
      %101 = vector.load %arg9[%c1_53, %c0_54, %c0_55] : memref<4x16x32xf32, #tpu.memory_space<vmem>>, vector<1x16x32xf32>
      %102 = vector.shape_cast %101 : vector<1x16x32xf32> to vector<16x32xf32>
      %103 = vector.shape_cast %100 : vector<16x32xf32> to vector<1x16x32xf32>
      tpu.vector_store %arg9[%c1_53, %c0_54, %c0_55], %103 {strides = array<i32>} : memref<4x16x32xf32, #tpu.memory_space<vmem>>, vector<1x16x32xf32>,
      %c1_56 = arith.constant 1 : index
      %c0_57 = arith.constant 0 : index
      %c0_58 = arith.constant 0 : index
      %104 = vector.load %arg7[%c1_56, %c0_57, %c0_58] : memref<4x16x1xf32, #tpu.memory_space<vmem>>, vector<1x16x1xf32>
      %105 = vector.shape_cast %104 : vector<1x16x1xf32> to vector<16x1xf32>
      %106 = vector.shape_cast %78 : vector<16x1xf32> to vector<1x16x1xf32>
      tpu.vector_store %arg7[%c1_56, %c0_57, %c0_58], %106 {strides = array<i32>} : memref<4x16x1xf32, #tpu.memory_space<vmem>>, vector<1x16x1xf32>,
      %c0_59 = arith.constant 0 : index
      %c64 = arith.constant 64 : index
      %107 = vector.load %arg3[%c0_59, %c64] : memref<16x128xbf16, #tpu.memory_space<vmem>>, vector<16x32xbf16>
      %108 = arith.extf %107 : vector<16x32xbf16> to vector<16x32xf32>
      %cst_60 = arith.constant 0.176776692 : f32
      %109 = vector.broadcast %cst_60 : f32 to vector<16x32xf32>
      %110 = arith.mulf %108, %109 : vector<16x32xf32>
      %111 = arith.truncf %110 : vector<16x32xf32> to vector<16x32xbf16>
      %112 = vector.extract_strided_slice %21 {offsets = [0, 32], sizes = [16, 32], strides = [1, 1]} : vector<16x64xbf16> to vector<16x32xbf16>
      %cst_61 = arith.constant dense<0.000000e+00> : vector<16x16xf32>
      %113 = tpu.matmul %111, %112, %cst_61 {dimension_numbers = #tpu.dot_dimension_numbers<[1], [1], [0], [0], [0, 0, 1, 0], [], []>} : vector<16x32xbf16>, vector<16x32xbf16>, vector<16x16xf32> -> vector<16x16xf32>
      %cst_62 = arith.constant -1.000000e+30 : f32
      %114 = vector.broadcast %cst_62 : f32 to vector<16x16xf32>
      %115 = arith.select %20, %113, %114 : vector<16x16xi1>, vector<16x16xf32>
      %c2 = arith.constant 2 : index
      %c0_63 = arith.constant 0 : index
      %c0_64 = arith.constant 0 : index
      %116 = vector.load %arg7[%c2, %c0_63, %c0_64] : memref<4x16x1xf32, #tpu.memory_space<vmem>>, vector<1x16x1xf32>
      %117 = vector.shape_cast %116 : vector<1x16x1xf32> to vector<16x1xf32>
      %cst_65 = arith.constant dense<0xFF800000> : vector<16xf32>
      %118 = vector.multi_reduction <maximumf>, %115, %cst_65 [1] : vector<16x16xf32> to vector<16xf32>
      %119 = vector.shape_cast %118 : vector<16xf32> to vector<16x1xf32>
      %120 = arith.maximumf %117, %119 : vector<16x1xf32>
      %121 = arith.subf %117, %120 : vector<16x1xf32>
      %122 = math.exp %121 : vector<16x1xf32>
      %123 = vector.broadcast %120 : vector<16x1xf32> to vector<16x16xf32>
      %124 = arith.subf %115, %123 : vector<16x16xf32>
      %125 = math.exp %124 : vector<16x16xf32>
      %c2_66 = arith.constant 2 : index
      %c0_67 = arith.constant 0 : index
      %c0_68 = arith.constant 0 : index
      %126 = vector.load %arg8[%c2_66, %c0_67, %c0_68] : memref<4x16x1xf32, #tpu.memory_space<vmem>>, vector<1x16x1xf32>
      %127 = vector.shape_cast %126 : vector<1x16x1xf32> to vector<16x1xf32>
      %128 = arith.mulf %122, %127 : vector<16x1xf32>
      %cst_69 = arith.constant dense<0.000000e+00> : vector<16xf32>
      %129 = vector.multi_reduction <add>, %125, %cst_69 [1] : vector<16x16xf32> to vector<16xf32>
      %130 = vector.shape_cast %129 : vector<16xf32> to vector<16x1xf32>
      %131 = arith.addf %128, %130 : vector<16x1xf32>
      %c2_70 = arith.constant 2 : index
      %c0_71 = arith.constant 0 : index
      %c0_72 = arith.constant 0 : index
      %132 = vector.load %arg8[%c2_70, %c0_71, %c0_72] : memref<4x16x1xf32, #tpu.memory_space<vmem>>, vector<1x16x1xf32>
      %133 = vector.shape_cast %132 : vector<1x16x1xf32> to vector<16x1xf32>
      %134 = vector.shape_cast %131 : vector<16x1xf32> to vector<1x16x1xf32>
      tpu.vector_store %arg8[%c2_70, %c0_71, %c0_72], %134 {strides = array<i32>} : memref<4x16x1xf32, #tpu.memory_space<vmem>>, vector<1x16x1xf32>,
      %135 = vector.extract_strided_slice %22 {offsets = [0, 32], sizes = [16, 32], strides = [1, 1]} : vector<16x64xbf16> to vector<16x32xbf16>
      %136 = arith.truncf %125 : vector<16x16xf32> to vector<16x16xbf16>
      %cst_73 = arith.constant dense<0.000000e+00> : vector<16x32xf32>
      %137 = tpu.matmul %136, %135, %cst_73 {dimension_numbers = #tpu.dot_dimension_numbers<[1], [0], [0], [1], [0, 0, 1, 1], [], []>} : vector<16x16xbf16>, vector<16x32xbf16>, vector<16x32xf32> -> vector<16x32xf32>
      %c2_74 = arith.constant 2 : index
      %c0_75 = arith.constant 0 : index
      %c0_76 = arith.constant 0 : index
      %138 = vector.load %arg9[%c2_74, %c0_75, %c0_76] : memref<4x16x32xf32, #tpu.memory_space<vmem>>, vector<1x16x32xf32>
      %139 = vector.shape_cast %138 : vector<1x16x32xf32> to vector<16x32xf32>
      %140 = vector.broadcast %122 : vector<16x1xf32> to vector<16x32xf32>
      %141 = arith.mulf %140, %139 : vector<16x32xf32>
      %142 = arith.addf %141, %137 : vector<16x32xf32>
      %c2_77 = arith.constant 2 : index
      %c0_78 = arith.constant 0 : index
      %c0_79 = arith.constant 0 : index
      %143 = vector.load %arg9[%c2_77, %c0_78, %c0_79] : memref<4x16x32xf32, #tpu.memory_space<vmem>>, vector<1x16x32xf32>
      %144 = vector.shape_cast %143 : vector<1x16x32xf32> to vector<16x32xf32>
      %145 = vector.shape_cast %142 : vector<16x32xf32> to vector<1x16x32xf32>
      tpu.vector_store %arg9[%c2_77, %c0_78, %c0_79], %145 {strides = array<i32>} : memref<4x16x32xf32, #tpu.memory_space<vmem>>, vector<1x16x32xf32>,
      %c2_80 = arith.constant 2 : index
      %c0_81 = arith.constant 0 : index
      %c0_82 = arith.constant 0 : index
      %146 = vector.load %arg7[%c2_80, %c0_81, %c0_82] : memref<4x16x1xf32, #tpu.memory_space<vmem>>, vector<1x16x1xf32>
      %147 = vector.shape_cast %146 : vector<1x16x1xf32> to vector<16x1xf32>
      %148 = vector.shape_cast %120 : vector<16x1xf32> to vector<1x16x1xf32>
      tpu.vector_store %arg7[%c2_80, %c0_81, %c0_82], %148 {strides = array<i32>} : memref<4x16x1xf32, #tpu.memory_space<vmem>>, vector<1x16x1xf32>,
      %c0_83 = arith.constant 0 : index
      %c96 = arith.constant 96 : index
      %149 = vector.load %arg3[%c0_83, %c96] : memref<16x128xbf16, #tpu.memory_space<vmem>>, vector<16x32xbf16>
      %150 = arith.extf %149 : vector<16x32xbf16> to vector<16x32xf32>
      %cst_84 = arith.constant 0.176776692 : f32
      %151 = vector.broadcast %cst_84 : f32 to vector<16x32xf32>
      %152 = arith.mulf %150, %151 : vector<16x32xf32>
      %153 = arith.truncf %152 : vector<16x32xf32> to vector<16x32xbf16>
      %154 = vector.extract_strided_slice %21 {offsets = [0, 32], sizes = [16, 32], strides = [1, 1]} : vector<16x64xbf16> to vector<16x32xbf16>
      %cst_85 = arith.constant dense<0.000000e+00> : vector<16x16xf32>
      %155 = tpu.matmul %153, %154, %cst_85 {dimension_numbers = #tpu.dot_dimension_numbers<[1], [1], [0], [0], [0, 0, 1, 0], [], []>} : vector<16x32xbf16>, vector<16x32xbf16>, vector<16x16xf32> -> vector<16x16xf32>
      %cst_86 = arith.constant -1.000000e+30 : f32
      %156 = vector.broadcast %cst_86 : f32 to vector<16x16xf32>
      %157 = arith.select %20, %155, %156 : vector<16x16xi1>, vector<16x16xf32>
      %c3 = arith.constant 3 : index
      %c0_87 = arith.constant 0 : index
      %c0_88 = arith.constant 0 : index
      %158 = vector.load %arg7[%c3, %c0_87, %c0_88] : memref<4x16x1xf32, #tpu.memory_space<vmem>>, vector<1x16x1xf32>
      %159 = vector.shape_cast %158 : vector<1x16x1xf32> to vector<16x1xf32>
      %cst_89 = arith.constant dense<0xFF800000> : vector<16xf32>
      %160 = vector.multi_reduction <maximumf>, %157, %cst_89 [1] : vector<16x16xf32> to vector<16xf32>
      %161 = vector.shape_cast %160 : vector<16xf32> to vector<16x1xf32>
      %162 = arith.maximumf %159, %161 : vector<16x1xf32>
      %163 = arith.subf %159, %162 : vector<16x1xf32>
      %164 = math.exp %163 : vector<16x1xf32>
      %165 = vector.broadcast %162 : vector<16x1xf32> to vector<16x16xf32>
      %166 = arith.subf %157, %165 : vector<16x16xf32>
      %167 = math.exp %166 : vector<16x16xf32>
      %c3_90 = arith.constant 3 : index
      %c0_91 = arith.constant 0 : index
      %c0_92 = arith.constant 0 : index
      %168 = vector.load %arg8[%c3_90, %c0_91, %c0_92] : memref<4x16x1xf32, #tpu.memory_space<vmem>>, vector<1x16x1xf32>
      %169 = vector.shape_cast %168 : vector<1x16x1xf32> to vector<16x1xf32>
      %170 = arith.mulf %164, %169 : vector<16x1xf32>
      %cst_93 = arith.constant dense<0.000000e+00> : vector<16xf32>
      %171 = vector.multi_reduction <add>, %167, %cst_93 [1] : vector<16x16xf32> to vector<16xf32>
      %172 = vector.shape_cast %171 : vector<16xf32> to vector<16x1xf32>
      %173 = arith.addf %170, %172 : vector<16x1xf32>
      %c3_94 = arith.constant 3 : index
      %c0_95 = arith.constant 0 : index
      %c0_96 = arith.constant 0 : index
      %174 = vector.load %arg8[%c3_94, %c0_95, %c0_96] : memref<4x16x1xf32, #tpu.memory_space<vmem>>, vector<1x16x1xf32>
      %175 = vector.shape_cast %174 : vector<1x16x1xf32> to vector<16x1xf32>
      %176 = vector.shape_cast %173 : vector<16x1xf32> to vector<1x16x1xf32>
      tpu.vector_store %arg8[%c3_94, %c0_95, %c0_96], %176 {strides = array<i32>} : memref<4x16x1xf32, #tpu.memory_space<vmem>>, vector<1x16x1xf32>,
      %177 = vector.extract_strided_slice %22 {offsets = [0, 32], sizes = [16, 32], strides = [1, 1]} : vector<16x64xbf16> to vector<16x32xbf16>
      %178 = arith.truncf %167 : vector<16x16xf32> to vector<16x16xbf16>
      %cst_97 = arith.constant dense<0.000000e+00> : vector<16x32xf32>
      %179 = tpu.matmul %178, %177, %cst_97 {dimension_numbers = #tpu.dot_dimension_numbers<[1], [0], [0], [1], [0, 0, 1, 1], [], []>} : vector<16x16xbf16>, vector<16x32xbf16>, vector<16x32xf32> -> vector<16x32xf32>
      %c3_98 = arith.constant 3 : index
      %c0_99 = arith.constant 0 : index
      %c0_100 = arith.constant 0 : index
      %180 = vector.load %arg9[%c3_98, %c0_99, %c0_100] : memref<4x16x32xf32, #tpu.memory_space<vmem>>, vector<1x16x32xf32>
      %181 = vector.shape_cast %180 : vector<1x16x32xf32> to vector<16x32xf32>
      %182 = vector.broadcast %164 : vector<16x1xf32> to vector<16x32xf32>
      %183 = arith.mulf %182, %181 : vector<16x32xf32>
      %184 = arith.addf %183, %179 : vector<16x32xf32>
      %c3_101 = arith.constant 3 : index
      %c0_102 = arith.constant 0 : index
      %c0_103 = arith.constant 0 : index
      %185 = vector.load %arg9[%c3_101, %c0_102, %c0_103] : memref<4x16x32xf32, #tpu.memory_space<vmem>>, vector<1x16x32xf32>
      %186 = vector.shape_cast %185 : vector<1x16x32xf32> to vector<16x32xf32>
      %187 = vector.shape_cast %184 : vector<16x32xf32> to vector<1x16x32xf32>
      tpu.vector_store %arg9[%c3_101, %c0_102, %c0_103], %187 {strides = array<i32>} : memref<4x16x32xf32, #tpu.memory_space<vmem>>, vector<1x16x32xf32>,
      %c3_104 = arith.constant 3 : index
      %c0_105 = arith.constant 0 : index
      %c0_106 = arith.constant 0 : index
      %188 = vector.load %arg7[%c3_104, %c0_105, %c0_106] : memref<4x16x1xf32, #tpu.memory_space<vmem>>, vector<1x16x1xf32>
      %189 = vector.shape_cast %188 : vector<1x16x1xf32> to vector<16x1xf32>
      %190 = vector.shape_cast %162 : vector<16x1xf32> to vector<1x16x1xf32>
      tpu.vector_store %arg7[%c3_104, %c0_105, %c0_106], %190 {strides = array<i32>} : memref<4x16x1xf32, #tpu.memory_space<vmem>>, vector<1x16x1xf32>,
    } else {
    }
    %c0_i32_3 = arith.constant 0 : i32
    %9 = arith.cmpi eq, %arg2, %c0_i32_3 : i32
    %10 = arith.extui %9 : i1 to i32
    %c0_i32_4 = arith.constant 0 : i32
    %11 = arith.cmpi ne, %10, %c0_i32_4 : i32
    scf.if %11 {
      %c0 = arith.constant 0 : index
      %c0_5 = arith.constant 0 : index
      %c0_6 = arith.constant 0 : index
      %12 = vector.load %arg8[%c0, %c0_5, %c0_6] : memref<4x16x1xf32, #tpu.memory_space<vmem>>, vector<1x16x1xf32>
      %13 = vector.shape_cast %12 : vector<1x16x1xf32> to vector<16x1xf32>
      %14 = tpu.reciprocal %13 {approx = true} : vector<16x1xf32> -> vector<16x1xf32>
      %c0_7 = arith.constant 0 : index
      %c0_8 = arith.constant 0 : index
      %c0_9 = arith.constant 0 : index
      %15 = vector.load %arg9[%c0_7, %c0_8, %c0_9] : memref<4x16x32xf32, #tpu.memory_space<vmem>>, vector<1x16x32xf32>
      %16 = vector.shape_cast %15 : vector<1x16x32xf32> to vector<16x32xf32>
      %17 = vector.broadcast %14 : vector<16x1xf32> to vector<16x32xf32>
      %18 = arith.mulf %16, %17 : vector<16x32xf32>
      %c1 = arith.constant 1 : index
      %c0_10 = arith.constant 0 : index
      %c0_11 = arith.constant 0 : index
      %19 = vector.load %arg8[%c1, %c0_10, %c0_11] : memref<4x16x1xf32, #tpu.memory_space<vmem>>, vector<1x16x1xf32>
      %20 = vector.shape_cast %19 : vector<1x16x1xf32> to vector<16x1xf32>
      %21 = tpu.reciprocal %20 {approx = true} : vector<16x1xf32> -> vector<16x1xf32>
      %c1_12 = arith.constant 1 : index
      %c0_13 = arith.constant 0 : index
      %c0_14 = arith.constant 0 : index
      %22 = vector.load %arg9[%c1_12, %c0_13, %c0_14] : memref<4x16x32xf32, #tpu.memory_space<vmem>>, vector<1x16x32xf32>
      %23 = vector.shape_cast %22 : vector<1x16x32xf32> to vector<16x32xf32>
      %24 = vector.broadcast %21 : vector<16x1xf32> to vector<16x32xf32>
      %25 = arith.mulf %23, %24 : vector<16x32xf32>
      %c2 = arith.constant 2 : index
      %c0_15 = arith.constant 0 : index
      %c0_16 = arith.constant 0 : index
      %26 = vector.load %arg8[%c2, %c0_15, %c0_16] : memref<4x16x1xf32, #tpu.memory_space<vmem>>, vector<1x16x1xf32>
      %27 = vector.shape_cast %26 : vector<1x16x1xf32> to vector<16x1xf32>
      %28 = tpu.reciprocal %27 {approx = true} : vector<16x1xf32> -> vector<16x1xf32>
      %c2_17 = arith.constant 2 : index
      %c0_18 = arith.constant 0 : index
      %c0_19 = arith.constant 0 : index
      %29 = vector.load %arg9[%c2_17, %c0_18, %c0_19] : memref<4x16x32xf32, #tpu.memory_space<vmem>>, vector<1x16x32xf32>
      %30 = vector.shape_cast %29 : vector<1x16x32xf32> to vector<16x32xf32>
      %31 = vector.broadcast %28 : vector<16x1xf32> to vector<16x32xf32>
      %32 = arith.mulf %30, %31 : vector<16x32xf32>
      %c3 = arith.constant 3 : index
      %c0_20 = arith.constant 0 : index
      %c0_21 = arith.constant 0 : index
      %33 = vector.load %arg8[%c3, %c0_20, %c0_21] : memref<4x16x1xf32, #tpu.memory_space<vmem>>, vector<1x16x1xf32>
      %34 = vector.shape_cast %33 : vector<1x16x1xf32> to vector<16x1xf32>
      %35 = tpu.reciprocal %34 {approx = true} : vector<16x1xf32> -> vector<16x1xf32>
      %c3_22 = arith.constant 3 : index
      %c0_23 = arith.constant 0 : index
      %c0_24 = arith.constant 0 : index
      %36 = vector.load %arg9[%c3_22, %c0_23, %c0_24] : memref<4x16x32xf32, #tpu.memory_space<vmem>>, vector<1x16x32xf32>
      %37 = vector.shape_cast %36 : vector<1x16x32xf32> to vector<16x32xf32>
      %38 = vector.broadcast %35 : vector<16x1xf32> to vector<16x32xf32>
      %39 = arith.mulf %37, %38 : vector<16x32xf32>
      %40 = tpu.concatenate %18, %25, %32, %39 in 1 : vector<16x32xf32>, vector<16x32xf32>, vector<16x32xf32>, vector<16x32xf32> -> vector<16x128xf32>
      %41 = arith.truncf %40 : vector<16x128xf32> to vector<16x128xbf16>
      %c0_25 = arith.constant 0 : index
      %c0_26 = arith.constant 0 : index
      %42 = vector.load %arg6[%c0_25, %c0_26] : memref<16x128xbf16, #tpu.memory_space<vmem>>, vector<16x128xbf16>
      tpu.vector_store %arg6[%c0_25, %c0_26], %41 {strides = array<i32>} : memref<16x128xbf16, #tpu.memory_space<vmem>>, vector<16x128xbf16>,
    } else {
    }
    return
  }
  func.func @transform_0(%arg0: i32, %arg1: i32, %arg2: i32) -> (i32, i32) {
    %c1_i32 = arith.constant 1 : i32
    %0 = arith.muli %arg0, %c1_i32 : i32
    %1 = arith.addi %0, %arg1 : i32
    %c0_i32 = arith.constant 0 : i32
    %c0_i32_0 = arith.constant 0 : i32
    return %1, %c0_i32 : i32, i32
  }
  func.func @transform_1(%arg0: i32, %arg1: i32, %arg2: i32) -> (i32, i32) {
    %c1_i32 = arith.constant 1 : i32
    %0 = arith.muli %arg0, %c1_i32 : i32
    %1 = arith.addi %0, %arg2 : i32
    %c0_i32 = arith.constant 0 : i32
    %c0_i32_0 = arith.constant 0 : i32
    return %1, %c0_i32 : i32, i32
  }
  func.func @transform_2(%arg0: i32, %arg1: i32, %arg2: i32) -> (i32, i32) {
    %c1_i32 = arith.constant 1 : i32
    %0 = arith.muli %arg0, %c1_i32 : i32
    %1 = arith.addi %0, %arg2 : i32
    %c0_i32 = arith.constant 0 : i32
    %c0_i32_0 = arith.constant 0 : i32
    return %1, %c0_i32 : i32, i32
  }
  func.func @transform_3(%arg0: i32, %arg1: i32, %arg2: i32) -> (i32, i32) {
    %c1_i32 = arith.constant 1 : i32
    %0 = arith.muli %arg0, %c1_i32 : i32
    %1 = arith.addi %0, %arg1 : i32
    %c0_i32 = arith.constant 0 : i32
    %c0_i32_0 = arith.constant 0 : i32
    return %1, %c0_i32 : i32, i32
  }
}

module attributes {stable_mosaic.version = 11 : i64} {
  func.func @_norm_qkv_rope_kernel(%arg0: i32, %arg1: i32, %arg2: memref<16x128xbf16, #tpu.memory_space<vmem>>, %arg3: memref<1x128xbf16, #tpu.memory_space<vmem>>, %arg4: memref<128x256xbf16, #tpu.memory_space<vmem>>, %arg5: memref<1x256xbf16, #tpu.memory_space<vmem>>, %arg6: memref<16x8xbf16, #tpu.memory_space<vmem>>, %arg7: memref<16x8xbf16, #tpu.memory_space<vmem>>, %arg8: memref<16x128xbf16, #tpu.memory_space<vmem>>, %arg9: memref<16x64xbf16, #tpu.memory_space<vmem>>, %arg10: memref<16x64xbf16, #tpu.memory_space<vmem>>, %arg11: memref<16x256xf32, #tpu.memory_space<vmem>>, %arg12: memref<16x1xf32, #tpu.memory_space<vmem>>) attributes {dimension_semantics = [#tpu.dimension_semantics<parallel>, #tpu.dimension_semantics<arbitrary>], iteration_bounds = array<i64: 2, 1>, scalar_prefetch = 0 : i64, scratch_operands = 2 : i64, tpu.core_type = #tpu.core_type<tc>, window_params = [{transform_indices = @transform_0, window_bounds = array<i64: 16, 128>}, {transform_indices = @transform_1, window_bounds = array<i64: 1, 128>}, {transform_indices = @transform_2, window_bounds = array<i64: 128, 256>}, {pipeline_mode = #tpu.pipeline_mode<synchronous>, transform_indices = @transform_3, window_bounds = array<i64: 1, 256>}, {transform_indices = @transform_4, window_bounds = array<i64: 16, 8>}, {transform_indices = @transform_5, window_bounds = array<i64: 16, 8>}, {transform_indices = @transform_6, window_bounds = array<i64: 16, 128>}, {transform_indices = @transform_7, window_bounds = array<i64: 16, 64>}, {transform_indices = @transform_8, window_bounds = array<i64: 16, 64>}]} {
    %c0_i32 = arith.constant 0 : i32
    %0 = arith.cmpi eq, %arg1, %c0_i32 : i32
    %1 = arith.extui %0 : i1 to i32
    %c0_i32_0 = arith.constant 0 : i32
    %2 = arith.cmpi ne, %1, %c0_i32_0 : i32
    scf.if %2 {
      %cst_17 = arith.constant 0.000000e+00 : f32
      %24 = vector.broadcast %cst_17 : f32 to vector<16x256xf32>
      %c0_18 = arith.constant 0 : index
      %c0_19 = arith.constant 0 : index
      %25 = vector.load %arg11[%c0_18, %c0_19] : memref<16x256xf32, #tpu.memory_space<vmem>>, vector<16x256xf32>
      tpu.vector_store %arg11[%c0_18, %c0_19], %24 {strides = array<i32>} : memref<16x256xf32, #tpu.memory_space<vmem>>, vector<16x256xf32>,
      %cst_20 = arith.constant 0.000000e+00 : f32
      %26 = vector.broadcast %cst_20 : f32 to vector<16x1xf32>
      %c0_21 = arith.constant 0 : index
      %c0_22 = arith.constant 0 : index
      %27 = vector.load %arg12[%c0_21, %c0_22] : memref<16x1xf32, #tpu.memory_space<vmem>>, vector<16x1xf32>
      tpu.vector_store %arg12[%c0_21, %c0_22], %26 {strides = array<i32>} : memref<16x1xf32, #tpu.memory_space<vmem>>, vector<16x1xf32>,
    } else {
    }
    %c0 = arith.constant 0 : index
    %c0_1 = arith.constant 0 : index
    %3 = vector.load %arg2[%c0, %c0_1] : memref<16x128xbf16, #tpu.memory_space<vmem>>, vector<16x128xbf16>
    %4 = arith.extf %3 : vector<16x128xbf16> to vector<16x128xf32>
    %c0_2 = arith.constant 0 : index
    %c0_3 = arith.constant 0 : index
    %5 = vector.load %arg3[%c0_2, %c0_3] : memref<1x128xbf16, #tpu.memory_space<vmem>>, vector<1x128xbf16>
    %6 = arith.extf %5 : vector<1x128xbf16> to vector<1x128xf32>
    %c0_4 = arith.constant 0 : index
    %c0_5 = arith.constant 0 : index
    %7 = vector.load %arg12[%c0_4, %c0_5] : memref<16x1xf32, #tpu.memory_space<vmem>>, vector<16x1xf32>
    %8 = arith.mulf %4, %4 : vector<16x128xf32>
    %cst = arith.constant dense<0.000000e+00> : vector<16xf32>
    %9 = vector.multi_reduction <add>, %8, %cst [1] : vector<16x128xf32> to vector<16xf32>
    %10 = vector.shape_cast %9 : vector<16xf32> to vector<16x1xf32>
    %11 = arith.addf %7, %10 : vector<16x1xf32>
    %c0_6 = arith.constant 0 : index
    %c0_7 = arith.constant 0 : index
    %12 = vector.load %arg12[%c0_6, %c0_7] : memref<16x1xf32, #tpu.memory_space<vmem>>, vector<16x1xf32>
    tpu.vector_store %arg12[%c0_6, %c0_7], %11 {strides = array<i32>} : memref<16x1xf32, #tpu.memory_space<vmem>>, vector<16x1xf32>,
    %13 = vector.broadcast %6 : vector<1x128xf32> to vector<16x128xf32>
    %14 = arith.mulf %4, %13 : vector<16x128xf32>
    %15 = arith.truncf %14 : vector<16x128xf32> to vector<16x128xbf16>
    %c0_8 = arith.constant 0 : index
    %c0_9 = arith.constant 0 : index
    %16 = vector.load %arg11[%c0_8, %c0_9] : memref<16x256xf32, #tpu.memory_space<vmem>>, vector<16x256xf32>
    %c0_10 = arith.constant 0 : index
    %c0_11 = arith.constant 0 : index
    %17 = vector.load %arg4[%c0_10, %c0_11] : memref<128x256xbf16, #tpu.memory_space<vmem>>, vector<128x256xbf16>
    %cst_12 = arith.constant dense<0.000000e+00> : vector<16x256xf32>
    %18 = tpu.matmul %15, %17, %cst_12 {dimension_numbers = #tpu.dot_dimension_numbers<[1], [0], [0], [1], [0, 0, 1, 1], [], []>} : vector<16x128xbf16>, vector<128x256xbf16>, vector<16x256xf32> -> vector<16x256xf32>
    %19 = arith.addf %16, %18 : vector<16x256xf32>
    %c0_13 = arith.constant 0 : index
    %c0_14 = arith.constant 0 : index
    %20 = vector.load %arg11[%c0_13, %c0_14] : memref<16x256xf32, #tpu.memory_space<vmem>>, vector<16x256xf32>
    tpu.vector_store %arg11[%c0_13, %c0_14], %19 {strides = array<i32>} : memref<16x256xf32, #tpu.memory_space<vmem>>, vector<16x256xf32>,
    %c0_i32_15 = arith.constant 0 : i32
    %21 = arith.cmpi eq, %arg1, %c0_i32_15 : i32
    %22 = arith.extui %21 : i1 to i32
    %c0_i32_16 = arith.constant 0 : i32
    %23 = arith.cmpi ne, %22, %c0_i32_16 : i32
    scf.if %23 {
      %c0_17 = arith.constant 0 : index
      %c0_18 = arith.constant 0 : index
      %24 = vector.load %arg12[%c0_17, %c0_18] : memref<16x1xf32, #tpu.memory_space<vmem>>, vector<16x1xf32>
      %cst_19 = arith.constant 1.280000e+02 : f32
      %25 = vector.broadcast %cst_19 : f32 to vector<16x1xf32>
      %26 = arith.divf %24, %25 : vector<16x1xf32>
      %cst_20 = arith.constant 9.99999974E-6 : f32
      %27 = vector.broadcast %cst_20 : f32 to vector<16x1xf32>
      %28 = arith.addf %26, %27 : vector<16x1xf32>
      %29 = math.rsqrt %28 : vector<16x1xf32>
      %c0_21 = arith.constant 0 : index
      %c0_22 = arith.constant 0 : index
      %30 = vector.load %arg11[%c0_21, %c0_22] : memref<16x256xf32, #tpu.memory_space<vmem>>, vector<16x256xf32>
      %31 = vector.broadcast %29 : vector<16x1xf32> to vector<16x256xf32>
      %32 = arith.mulf %30, %31 : vector<16x256xf32>
      %c0_23 = arith.constant 0 : index
      %c0_24 = arith.constant 0 : index
      %33 = vector.load %arg5[%c0_23, %c0_24] : memref<1x256xbf16, #tpu.memory_space<vmem>>, vector<1x256xbf16>
      %34 = arith.extf %33 : vector<1x256xbf16> to vector<1x256xf32>
      %35 = vector.broadcast %34 : vector<1x256xf32> to vector<16x256xf32>
      %36 = arith.addf %32, %35 : vector<16x256xf32>
      %c0_25 = arith.constant 0 : index
      %c0_26 = arith.constant 0 : index
      %37 = vector.load %arg6[%c0_25, %c0_26] : memref<16x8xbf16, #tpu.memory_space<vmem>>, vector<16x8xbf16>
      %38 = arith.extf %37 : vector<16x8xbf16> to vector<16x8xf32>
      %c0_27 = arith.constant 0 : index
      %c0_28 = arith.constant 0 : index
      %39 = vector.load %arg7[%c0_27, %c0_28] : memref<16x8xbf16, #tpu.memory_space<vmem>>, vector<16x8xbf16>
      %40 = arith.extf %39 : vector<16x8xbf16> to vector<16x8xf32>
      %41 = vector.extract_strided_slice %36 {offsets = [0, 0], sizes = [16, 32], strides = [1, 1]} : vector<16x256xf32> to vector<16x32xf32>
      %42 = vector.extract_strided_slice %41 {offsets = [0, 0], sizes = [16, 8], strides = [1, 1]} : vector<16x32xf32> to vector<16x8xf32>
      %43 = vector.extract_strided_slice %41 {offsets = [0, 8], sizes = [16, 8], strides = [1, 1]} : vector<16x32xf32> to vector<16x8xf32>
      %44 = vector.extract_strided_slice %41 {offsets = [0, 16], sizes = [16, 16], strides = [1, 1]} : vector<16x32xf32> to vector<16x16xf32>
      %45 = arith.mulf %42, %38 : vector<16x8xf32>
      %46 = arith.mulf %43, %40 : vector<16x8xf32>
      %47 = arith.subf %45, %46 : vector<16x8xf32>
      %48 = arith.mulf %43, %38 : vector<16x8xf32>
      %49 = arith.mulf %42, %40 : vector<16x8xf32>
      %50 = arith.addf %48, %49 : vector<16x8xf32>
      %51 = tpu.concatenate %47, %50, %44 in 1 : vector<16x8xf32>, vector<16x8xf32>, vector<16x16xf32> -> vector<16x32xf32>
      %52 = vector.extract_strided_slice %36 {offsets = [0, 32], sizes = [16, 32], strides = [1, 1]} : vector<16x256xf32> to vector<16x32xf32>
      %53 = vector.extract_strided_slice %52 {offsets = [0, 0], sizes = [16, 8], strides = [1, 1]} : vector<16x32xf32> to vector<16x8xf32>
      %54 = vector.extract_strided_slice %52 {offsets = [0, 8], sizes = [16, 8], strides = [1, 1]} : vector<16x32xf32> to vector<16x8xf32>
      %55 = vector.extract_strided_slice %52 {offsets = [0, 16], sizes = [16, 16], strides = [1, 1]} : vector<16x32xf32> to vector<16x16xf32>
      %56 = arith.mulf %53, %38 : vector<16x8xf32>
      %57 = arith.mulf %54, %40 : vector<16x8xf32>
      %58 = arith.subf %56, %57 : vector<16x8xf32>
      %59 = arith.mulf %54, %38 : vector<16x8xf32>
      %60 = arith.mulf %53, %40 : vector<16x8xf32>
      %61 = arith.addf %59, %60 : vector<16x8xf32>
      %62 = tpu.concatenate %58, %61, %55 in 1 : vector<16x8xf32>, vector<16x8xf32>, vector<16x16xf32> -> vector<16x32xf32>
      %63 = vector.extract_strided_slice %36 {offsets = [0, 64], sizes = [16, 32], strides = [1, 1]} : vector<16x256xf32> to vector<16x32xf32>
      %64 = vector.extract_strided_slice %63 {offsets = [0, 0], sizes = [16, 8], strides = [1, 1]} : vector<16x32xf32> to vector<16x8xf32>
      %65 = vector.extract_strided_slice %63 {offsets = [0, 8], sizes = [16, 8], strides = [1, 1]} : vector<16x32xf32> to vector<16x8xf32>
      %66 = vector.extract_strided_slice %63 {offsets = [0, 16], sizes = [16, 16], strides = [1, 1]} : vector<16x32xf32> to vector<16x16xf32>
      %67 = arith.mulf %64, %38 : vector<16x8xf32>
      %68 = arith.mulf %65, %40 : vector<16x8xf32>
      %69 = arith.subf %67, %68 : vector<16x8xf32>
      %70 = arith.mulf %65, %38 : vector<16x8xf32>
      %71 = arith.mulf %64, %40 : vector<16x8xf32>
      %72 = arith.addf %70, %71 : vector<16x8xf32>
      %73 = tpu.concatenate %69, %72, %66 in 1 : vector<16x8xf32>, vector<16x8xf32>, vector<16x16xf32> -> vector<16x32xf32>
      %74 = vector.extract_strided_slice %36 {offsets = [0, 96], sizes = [16, 32], strides = [1, 1]} : vector<16x256xf32> to vector<16x32xf32>
      %75 = vector.extract_strided_slice %74 {offsets = [0, 0], sizes = [16, 8], strides = [1, 1]} : vector<16x32xf32> to vector<16x8xf32>
      %76 = vector.extract_strided_slice %74 {offsets = [0, 8], sizes = [16, 8], strides = [1, 1]} : vector<16x32xf32> to vector<16x8xf32>
      %77 = vector.extract_strided_slice %74 {offsets = [0, 16], sizes = [16, 16], strides = [1, 1]} : vector<16x32xf32> to vector<16x16xf32>
      %78 = arith.mulf %75, %38 : vector<16x8xf32>
      %79 = arith.mulf %76, %40 : vector<16x8xf32>
      %80 = arith.subf %78, %79 : vector<16x8xf32>
      %81 = arith.mulf %76, %38 : vector<16x8xf32>
      %82 = arith.mulf %75, %40 : vector<16x8xf32>
      %83 = arith.addf %81, %82 : vector<16x8xf32>
      %84 = tpu.concatenate %80, %83, %77 in 1 : vector<16x8xf32>, vector<16x8xf32>, vector<16x16xf32> -> vector<16x32xf32>
      %85 = tpu.concatenate %51, %62, %73, %84 in 1 : vector<16x32xf32>, vector<16x32xf32>, vector<16x32xf32>, vector<16x32xf32> -> vector<16x128xf32>
      %86 = arith.truncf %85 : vector<16x128xf32> to vector<16x128xbf16>
      %c0_29 = arith.constant 0 : index
      %c0_30 = arith.constant 0 : index
      %87 = vector.load %arg8[%c0_29, %c0_30] : memref<16x128xbf16, #tpu.memory_space<vmem>>, vector<16x128xbf16>
      tpu.vector_store %arg8[%c0_29, %c0_30], %86 {strides = array<i32>} : memref<16x128xbf16, #tpu.memory_space<vmem>>, vector<16x128xbf16>,
      %88 = vector.extract_strided_slice %36 {offsets = [0, 128], sizes = [16, 32], strides = [1, 1]} : vector<16x256xf32> to vector<16x32xf32>
      %89 = vector.extract_strided_slice %88 {offsets = [0, 0], sizes = [16, 8], strides = [1, 1]} : vector<16x32xf32> to vector<16x8xf32>
      %90 = vector.extract_strided_slice %88 {offsets = [0, 8], sizes = [16, 8], strides = [1, 1]} : vector<16x32xf32> to vector<16x8xf32>
      %91 = vector.extract_strided_slice %88 {offsets = [0, 16], sizes = [16, 16], strides = [1, 1]} : vector<16x32xf32> to vector<16x16xf32>
      %92 = arith.mulf %89, %38 : vector<16x8xf32>
      %93 = arith.mulf %90, %40 : vector<16x8xf32>
      %94 = arith.subf %92, %93 : vector<16x8xf32>
      %95 = arith.mulf %90, %38 : vector<16x8xf32>
      %96 = arith.mulf %89, %40 : vector<16x8xf32>
      %97 = arith.addf %95, %96 : vector<16x8xf32>
      %98 = tpu.concatenate %94, %97, %91 in 1 : vector<16x8xf32>, vector<16x8xf32>, vector<16x16xf32> -> vector<16x32xf32>
      %99 = vector.extract_strided_slice %36 {offsets = [0, 160], sizes = [16, 32], strides = [1, 1]} : vector<16x256xf32> to vector<16x32xf32>
      %100 = vector.extract_strided_slice %99 {offsets = [0, 0], sizes = [16, 8], strides = [1, 1]} : vector<16x32xf32> to vector<16x8xf32>
      %101 = vector.extract_strided_slice %99 {offsets = [0, 8], sizes = [16, 8], strides = [1, 1]} : vector<16x32xf32> to vector<16x8xf32>
      %102 = vector.extract_strided_slice %99 {offsets = [0, 16], sizes = [16, 16], strides = [1, 1]} : vector<16x32xf32> to vector<16x16xf32>
      %103 = arith.mulf %100, %38 : vector<16x8xf32>
      %104 = arith.mulf %101, %40 : vector<16x8xf32>
      %105 = arith.subf %103, %104 : vector<16x8xf32>
      %106 = arith.mulf %101, %38 : vector<16x8xf32>
      %107 = arith.mulf %100, %40 : vector<16x8xf32>
      %108 = arith.addf %106, %107 : vector<16x8xf32>
      %109 = tpu.concatenate %105, %108, %102 in 1 : vector<16x8xf32>, vector<16x8xf32>, vector<16x16xf32> -> vector<16x32xf32>
      %110 = tpu.concatenate %98, %109 in 1 : vector<16x32xf32>, vector<16x32xf32> -> vector<16x64xf32>
      %111 = arith.truncf %110 : vector<16x64xf32> to vector<16x64xbf16>
      %c0_31 = arith.constant 0 : index
      %c0_32 = arith.constant 0 : index
      %112 = vector.load %arg9[%c0_31, %c0_32] : memref<16x64xbf16, #tpu.memory_space<vmem>>, vector<16x64xbf16>
      tpu.vector_store %arg9[%c0_31, %c0_32], %111 {strides = array<i32>} : memref<16x64xbf16, #tpu.memory_space<vmem>>, vector<16x64xbf16>,
      %113 = vector.extract_strided_slice %36 {offsets = [0, 192], sizes = [16, 64], strides = [1, 1]} : vector<16x256xf32> to vector<16x64xf32>
      %114 = arith.truncf %113 : vector<16x64xf32> to vector<16x64xbf16>
      %c0_33 = arith.constant 0 : index
      %c0_34 = arith.constant 0 : index
      %115 = vector.load %arg10[%c0_33, %c0_34] : memref<16x64xbf16, #tpu.memory_space<vmem>>, vector<16x64xbf16>
      tpu.vector_store %arg10[%c0_33, %c0_34], %114 {strides = array<i32>} : memref<16x64xbf16, #tpu.memory_space<vmem>>, vector<16x64xbf16>,
    } else {
    }
    return
  }
  func.func @transform_0(%arg0: i32, %arg1: i32) -> (i32, i32) {
    %c0_i32 = arith.constant 0 : i32
    return %arg0, %arg1 : i32, i32
  }
  func.func @transform_1(%arg0: i32, %arg1: i32) -> (i32, i32) {
    %c0_i32 = arith.constant 0 : i32
    %c0_i32_0 = arith.constant 0 : i32
    return %c0_i32, %arg1 : i32, i32
  }
  func.func @transform_2(%arg0: i32, %arg1: i32) -> (i32, i32) {
    %c0_i32 = arith.constant 0 : i32
    %c0_i32_0 = arith.constant 0 : i32
    return %arg1, %c0_i32 : i32, i32
  }
  func.func @transform_3(%arg0: i32, %arg1: i32) -> (i32, i32) {
    %c0_i32 = arith.constant 0 : i32
    %c0_i32_0 = arith.constant 0 : i32
    %c0_i32_1 = arith.constant 0 : i32
    return %c0_i32, %c0_i32_0 : i32, i32
  }
  func.func @transform_4(%arg0: i32, %arg1: i32) -> (i32, i32) {
    %c1_i32 = arith.constant 1 : i32
    %c0_i32 = arith.constant 0 : i32
    %0 = arith.cmpi eq, %c1_i32, %c0_i32 : i32
    %c1_i32_0 = arith.constant 1 : i32
    %1 = arith.select %0, %c1_i32_0, %c1_i32 : i32
    %2 = arith.remsi %arg0, %1 : i32
    %c0_i32_1 = arith.constant 0 : i32
    %3 = arith.cmpi ne, %2, %c0_i32_1 : i32
    %c0_i32_2 = arith.constant 0 : i32
    %4 = arith.cmpi slt, %2, %c0_i32_2 : i32
    %c0_i32_3 = arith.constant 0 : i32
    %5 = arith.cmpi slt, %1, %c0_i32_3 : i32
    %6 = arith.xori %4, %5 : i1
    %7 = arith.andi %6, %3 : i1
    %8 = arith.addi %2, %1 : i32
    %9 = arith.select %7, %8, %2 : i32
    %c0_i32_4 = arith.constant 0 : i32
    %c0_i32_5 = arith.constant 0 : i32
    return %9, %c0_i32_4 : i32, i32
  }
  func.func @transform_5(%arg0: i32, %arg1: i32) -> (i32, i32) {
    %c1_i32 = arith.constant 1 : i32
    %c0_i32 = arith.constant 0 : i32
    %0 = arith.cmpi eq, %c1_i32, %c0_i32 : i32
    %c1_i32_0 = arith.constant 1 : i32
    %1 = arith.select %0, %c1_i32_0, %c1_i32 : i32
    %2 = arith.remsi %arg0, %1 : i32
    %c0_i32_1 = arith.constant 0 : i32
    %3 = arith.cmpi ne, %2, %c0_i32_1 : i32
    %c0_i32_2 = arith.constant 0 : i32
    %4 = arith.cmpi slt, %2, %c0_i32_2 : i32
    %c0_i32_3 = arith.constant 0 : i32
    %5 = arith.cmpi slt, %1, %c0_i32_3 : i32
    %6 = arith.xori %4, %5 : i1
    %7 = arith.andi %6, %3 : i1
    %8 = arith.addi %2, %1 : i32
    %9 = arith.select %7, %8, %2 : i32
    %c0_i32_4 = arith.constant 0 : i32
    %c0_i32_5 = arith.constant 0 : i32
    return %9, %c0_i32_4 : i32, i32
  }
  func.func @transform_6(%arg0: i32, %arg1: i32) -> (i32, i32) {
    %c0_i32 = arith.constant 0 : i32
    %c0_i32_0 = arith.constant 0 : i32
    return %arg0, %c0_i32 : i32, i32
  }
  func.func @transform_7(%arg0: i32, %arg1: i32) -> (i32, i32) {
    %c0_i32 = arith.constant 0 : i32
    %c0_i32_0 = arith.constant 0 : i32
    return %arg0, %c0_i32 : i32, i32
  }
  func.func @transform_8(%arg0: i32, %arg1: i32) -> (i32, i32) {
    %c0_i32 = arith.constant 0 : i32
    %c0_i32_0 = arith.constant 0 : i32
    return %arg0, %c0_i32 : i32, i32
  }
}

module attributes {stable_mosaic.version = 11 : i64} {
  func.func @_norm_qkv_rope_kernel(%arg0: i32, %arg1: i32, %arg2: memref<16x128xbf16, #tpu.memory_space<vmem>>, %arg3: memref<1x128xbf16, #tpu.memory_space<vmem>>, %arg4: memref<128x256xbf16, #tpu.memory_space<vmem>>, %arg5: memref<1x256xbf16, #tpu.memory_space<vmem>>, %arg6: memref<16x8xbf16, #tpu.memory_space<vmem>>, %arg7: memref<16x8xbf16, #tpu.memory_space<vmem>>, %arg8: memref<16x128xbf16, #tpu.memory_space<vmem>>, %arg9: memref<16x64xbf16, #tpu.memory_space<vmem>>, %arg10: memref<16x64xbf16, #tpu.memory_space<vmem>>, %arg11: memref<16x256xf32, #tpu.memory_space<vmem>>, %arg12: memref<16x1xf32, #tpu.memory_space<vmem>>) attributes {dimension_semantics = [#tpu.dimension_semantics<parallel>, #tpu.dimension_semantics<arbitrary>], iteration_bounds = array<i64: 2, 1>, scalar_prefetch = 0 : i64, scratch_operands = 2 : i64, tpu.core_type = #tpu.core_type<tc>, window_params = [{transform_indices = @transform_0, window_bounds = array<i64: 16, 128>}, {transform_indices = @transform_1, window_bounds = array<i64: 1, 128>}, {transform_indices = @transform_2, window_bounds = array<i64: 128, 256>}, {pipeline_mode = #tpu.pipeline_mode<synchronous>, transform_indices = @transform_3, window_bounds = array<i64: 1, 256>}, {transform_indices = @transform_4, window_bounds = array<i64: 16, 8>}, {transform_indices = @transform_5, window_bounds = array<i64: 16, 8>}, {transform_indices = @transform_6, window_bounds = array<i64: 16, 128>}, {transform_indices = @transform_7, window_bounds = array<i64: 16, 64>}, {transform_indices = @transform_8, window_bounds = array<i64: 16, 64>}]} {
    %c0_i32 = arith.constant 0 : i32
    %0 = arith.cmpi eq, %arg1, %c0_i32 : i32
    %1 = arith.extui %0 : i1 to i32
    %c0_i32_0 = arith.constant 0 : i32
    %2 = arith.cmpi ne, %1, %c0_i32_0 : i32
    scf.if %2 {
      %cst_17 = arith.constant 0.000000e+00 : f32
      %24 = vector.broadcast %cst_17 : f32 to vector<16x256xf32>
      %c0_18 = arith.constant 0 : index
      %c0_19 = arith.constant 0 : index
      %25 = vector.load %arg11[%c0_18, %c0_19] : memref<16x256xf32, #tpu.memory_space<vmem>>, vector<16x256xf32>
      tpu.vector_store %arg11[%c0_18, %c0_19], %24 {strides = array<i32>} : memref<16x256xf32, #tpu.memory_space<vmem>>, vector<16x256xf32>,
      %cst_20 = arith.constant 0.000000e+00 : f32
      %26 = vector.broadcast %cst_20 : f32 to vector<16x1xf32>
      %c0_21 = arith.constant 0 : index
      %c0_22 = arith.constant 0 : index
      %27 = vector.load %arg12[%c0_21, %c0_22] : memref<16x1xf32, #tpu.memory_space<vmem>>, vector<16x1xf32>
      tpu.vector_store %arg12[%c0_21, %c0_22], %26 {strides = array<i32>} : memref<16x1xf32, #tpu.memory_space<vmem>>, vector<16x1xf32>,
    } else {
    }
    %c0 = arith.constant 0 : index
    %c0_1 = arith.constant 0 : index
    %3 = vector.load %arg2[%c0, %c0_1] : memref<16x128xbf16, #tpu.memory_space<vmem>>, vector<16x128xbf16>
    %4 = arith.extf %3 : vector<16x128xbf16> to vector<16x128xf32>
    %c0_2 = arith.constant 0 : index
    %c0_3 = arith.constant 0 : index
    %5 = vector.load %arg3[%c0_2, %c0_3] : memref<1x128xbf16, #tpu.memory_space<vmem>>, vector<1x128xbf16>
    %6 = arith.extf %5 : vector<1x128xbf16> to vector<1x128xf32>
    %c0_4 = arith.constant 0 : index
    %c0_5 = arith.constant 0 : index
    %7 = vector.load %arg12[%c0_4, %c0_5] : memref<16x1xf32, #tpu.memory_space<vmem>>, vector<16x1xf32>
    %8 = arith.mulf %4, %4 : vector<16x128xf32>
    %cst = arith.constant dense<0.000000e+00> : vector<16xf32>
    %9 = vector.multi_reduction <add>, %8, %cst [1] : vector<16x128xf32> to vector<16xf32>
    %10 = vector.shape_cast %9 : vector<16xf32> to vector<16x1xf32>
    %11 = arith.addf %7, %10 : vector<16x1xf32>
    %c0_6 = arith.constant 0 : index
    %c0_7 = arith.constant 0 : index
    %12 = vector.load %arg12[%c0_6, %c0_7] : memref<16x1xf32, #tpu.memory_space<vmem>>, vector<16x1xf32>
    tpu.vector_store %arg12[%c0_6, %c0_7], %11 {strides = array<i32>} : memref<16x1xf32, #tpu.memory_space<vmem>>, vector<16x1xf32>,
    %13 = vector.broadcast %6 : vector<1x128xf32> to vector<16x128xf32>
    %14 = arith.mulf %4, %13 : vector<16x128xf32>
    %15 = arith.truncf %14 : vector<16x128xf32> to vector<16x128xbf16>
    %c0_8 = arith.constant 0 : index
    %c0_9 = arith.constant 0 : index
    %16 = vector.load %arg11[%c0_8, %c0_9] : memref<16x256xf32, #tpu.memory_space<vmem>>, vector<16x256xf32>
    %c0_10 = arith.constant 0 : index
    %c0_11 = arith.constant 0 : index
    %17 = vector.load %arg4[%c0_10, %c0_11] : memref<128x256xbf16, #tpu.memory_space<vmem>>, vector<128x256xbf16>
    %cst_12 = arith.constant dense<0.000000e+00> : vector<16x256xf32>
    %18 = tpu.matmul %15, %17, %cst_12 {dimension_numbers = #tpu.dot_dimension_numbers<[1], [0], [0], [1], [0, 0, 1, 1], [], []>} : vector<16x128xbf16>, vector<128x256xbf16>, vector<16x256xf32> -> vector<16x256xf32>
    %19 = arith.addf %16, %18 : vector<16x256xf32>
    %c0_13 = arith.constant 0 : index
    %c0_14 = arith.constant 0 : index
    %20 = vector.load %arg11[%c0_13, %c0_14] : memref<16x256xf32, #tpu.memory_space<vmem>>, vector<16x256xf32>
    tpu.vector_store %arg11[%c0_13, %c0_14], %19 {strides = array<i32>} : memref<16x256xf32, #tpu.memory_space<vmem>>, vector<16x256xf32>,
    %c0_i32_15 = arith.constant 0 : i32
    %21 = arith.cmpi eq, %arg1, %c0_i32_15 : i32
    %22 = arith.extui %21 : i1 to i32
    %c0_i32_16 = arith.constant 0 : i32
    %23 = arith.cmpi ne, %22, %c0_i32_16 : i32
    scf.if %23 {
      %c0_17 = arith.constant 0 : index
      %c0_18 = arith.constant 0 : index
      %24 = vector.load %arg12[%c0_17, %c0_18] : memref<16x1xf32, #tpu.memory_space<vmem>>, vector<16x1xf32>
      %cst_19 = arith.constant 1.280000e+02 : f32
      %25 = vector.broadcast %cst_19 : f32 to vector<16x1xf32>
      %26 = arith.divf %24, %25 : vector<16x1xf32>
      %cst_20 = arith.constant 9.99999974E-6 : f32
      %27 = vector.broadcast %cst_20 : f32 to vector<16x1xf32>
      %28 = arith.addf %26, %27 : vector<16x1xf32>
      %29 = math.rsqrt %28 : vector<16x1xf32>
      %c0_21 = arith.constant 0 : index
      %c0_22 = arith.constant 0 : index
      %30 = vector.load %arg11[%c0_21, %c0_22] : memref<16x256xf32, #tpu.memory_space<vmem>>, vector<16x256xf32>
      %31 = vector.broadcast %29 : vector<16x1xf32> to vector<16x256xf32>
      %32 = arith.mulf %30, %31 : vector<16x256xf32>
      %c0_23 = arith.constant 0 : index
      %c0_24 = arith.constant 0 : index
      %33 = vector.load %arg5[%c0_23, %c0_24] : memref<1x256xbf16, #tpu.memory_space<vmem>>, vector<1x256xbf16>
      %34 = arith.extf %33 : vector<1x256xbf16> to vector<1x256xf32>
      %35 = vector.broadcast %34 : vector<1x256xf32> to vector<16x256xf32>
      %36 = arith.addf %32, %35 : vector<16x256xf32>
      %c0_25 = arith.constant 0 : index
      %c0_26 = arith.constant 0 : index
      %37 = vector.load %arg6[%c0_25, %c0_26] : memref<16x8xbf16, #tpu.memory_space<vmem>>, vector<16x8xbf16>
      %38 = arith.extf %37 : vector<16x8xbf16> to vector<16x8xf32>
      %c0_27 = arith.constant 0 : index
      %c0_28 = arith.constant 0 : index
      %39 = vector.load %arg7[%c0_27, %c0_28] : memref<16x8xbf16, #tpu.memory_space<vmem>>, vector<16x8xbf16>
      %40 = arith.extf %39 : vector<16x8xbf16> to vector<16x8xf32>
      %41 = vector.extract_strided_slice %36 {offsets = [0, 0], sizes = [16, 32], strides = [1, 1]} : vector<16x256xf32> to vector<16x32xf32>
      %42 = vector.extract_strided_slice %41 {offsets = [0, 0], sizes = [16, 8], strides = [1, 1]} : vector<16x32xf32> to vector<16x8xf32>
      %43 = vector.extract_strided_slice %41 {offsets = [0, 8], sizes = [16, 8], strides = [1, 1]} : vector<16x32xf32> to vector<16x8xf32>
      %44 = vector.extract_strided_slice %41 {offsets = [0, 16], sizes = [16, 16], strides = [1, 1]} : vector<16x32xf32> to vector<16x16xf32>
      %45 = arith.mulf %42, %38 : vector<16x8xf32>
      %46 = arith.mulf %43, %40 : vector<16x8xf32>
      %47 = arith.subf %45, %46 : vector<16x8xf32>
      %48 = arith.mulf %43, %38 : vector<16x8xf32>
      %49 = arith.mulf %42, %40 : vector<16x8xf32>
      %50 = arith.addf %48, %49 : vector<16x8xf32>
      %51 = tpu.concatenate %47, %50, %44 in 1 : vector<16x8xf32>, vector<16x8xf32>, vector<16x16xf32> -> vector<16x32xf32>
      %52 = vector.extract_strided_slice %36 {offsets = [0, 32], sizes = [16, 32], strides = [1, 1]} : vector<16x256xf32> to vector<16x32xf32>
      %53 = vector.extract_strided_slice %52 {offsets = [0, 0], sizes = [16, 8], strides = [1, 1]} : vector<16x32xf32> to vector<16x8xf32>
      %54 = vector.extract_strided_slice %52 {offsets = [0, 8], sizes = [16, 8], strides = [1, 1]} : vector<16x32xf32> to vector<16x8xf32>
      %55 = vector.extract_strided_slice %52 {offsets = [0, 16], sizes = [16, 16], strides = [1, 1]} : vector<16x32xf32> to vector<16x16xf32>
      %56 = arith.mulf %53, %38 : vector<16x8xf32>
      %57 = arith.mulf %54, %40 : vector<16x8xf32>
      %58 = arith.subf %56, %57 : vector<16x8xf32>
      %59 = arith.mulf %54, %38 : vector<16x8xf32>
      %60 = arith.mulf %53, %40 : vector<16x8xf32>
      %61 = arith.addf %59, %60 : vector<16x8xf32>
      %62 = tpu.concatenate %58, %61, %55 in 1 : vector<16x8xf32>, vector<16x8xf32>, vector<16x16xf32> -> vector<16x32xf32>
      %63 = vector.extract_strided_slice %36 {offsets = [0, 64], sizes = [16, 32], strides = [1, 1]} : vector<16x256xf32> to vector<16x32xf32>
      %64 = vector.extract_strided_slice %63 {offsets = [0, 0], sizes = [16, 8], strides = [1, 1]} : vector<16x32xf32> to vector<16x8xf32>
      %65 = vector.extract_strided_slice %63 {offsets = [0, 8], sizes = [16, 8], strides = [1, 1]} : vector<16x32xf32> to vector<16x8xf32>
      %66 = vector.extract_strided_slice %63 {offsets = [0, 16], sizes = [16, 16], strides = [1, 1]} : vector<16x32xf32> to vector<16x16xf32>
      %67 = arith.mulf %64, %38 : vector<16x8xf32>
      %68 = arith.mulf %65, %40 : vector<16x8xf32>
      %69 = arith.subf %67, %68 : vector<16x8xf32>
      %70 = arith.mulf %65, %38 : vector<16x8xf32>
      %71 = arith.mulf %64, %40 : vector<16x8xf32>
      %72 = arith.addf %70, %71 : vector<16x8xf32>
      %73 = tpu.concatenate %69, %72, %66 in 1 : vector<16x8xf32>, vector<16x8xf32>, vector<16x16xf32> -> vector<16x32xf32>
      %74 = vector.extract_strided_slice %36 {offsets = [0, 96], sizes = [16, 32], strides = [1, 1]} : vector<16x256xf32> to vector<16x32xf32>
      %75 = vector.extract_strided_slice %74 {offsets = [0, 0], sizes = [16, 8], strides = [1, 1]} : vector<16x32xf32> to vector<16x8xf32>
      %76 = vector.extract_strided_slice %74 {offsets = [0, 8], sizes = [16, 8], strides = [1, 1]} : vector<16x32xf32> to vector<16x8xf32>
      %77 = vector.extract_strided_slice %74 {offsets = [0, 16], sizes = [16, 16], strides = [1, 1]} : vector<16x32xf32> to vector<16x16xf32>
      %78 = arith.mulf %75, %38 : vector<16x8xf32>
      %79 = arith.mulf %76, %40 : vector<16x8xf32>
      %80 = arith.subf %78, %79 : vector<16x8xf32>
      %81 = arith.mulf %76, %38 : vector<16x8xf32>
      %82 = arith.mulf %75, %40 : vector<16x8xf32>
      %83 = arith.addf %81, %82 : vector<16x8xf32>
      %84 = tpu.concatenate %80, %83, %77 in 1 : vector<16x8xf32>, vector<16x8xf32>, vector<16x16xf32> -> vector<16x32xf32>
      %85 = tpu.concatenate %51, %62, %73, %84 in 1 : vector<16x32xf32>, vector<16x32xf32>, vector<16x32xf32>, vector<16x32xf32> -> vector<16x128xf32>
      %86 = arith.truncf %85 : vector<16x128xf32> to vector<16x128xbf16>
      %c0_29 = arith.constant 0 : index
      %c0_30 = arith.constant 0 : index
      %87 = vector.load %arg8[%c0_29, %c0_30] : memref<16x128xbf16, #tpu.memory_space<vmem>>, vector<16x128xbf16>
      tpu.vector_store %arg8[%c0_29, %c0_30], %86 {strides = array<i32>} : memref<16x128xbf16, #tpu.memory_space<vmem>>, vector<16x128xbf16>,
      %88 = vector.extract_strided_slice %36 {offsets = [0, 128], sizes = [16, 32], strides = [1, 1]} : vector<16x256xf32> to vector<16x32xf32>
      %89 = vector.extract_strided_slice %88 {offsets = [0, 0], sizes = [16, 8], strides = [1, 1]} : vector<16x32xf32> to vector<16x8xf32>
      %90 = vector.extract_strided_slice %88 {offsets = [0, 8], sizes = [16, 8], strides = [1, 1]} : vector<16x32xf32> to vector<16x8xf32>
      %91 = vector.extract_strided_slice %88 {offsets = [0, 16], sizes = [16, 16], strides = [1, 1]} : vector<16x32xf32> to vector<16x16xf32>
      %92 = arith.mulf %89, %38 : vector<16x8xf32>
      %93 = arith.mulf %90, %40 : vector<16x8xf32>
      %94 = arith.subf %92, %93 : vector<16x8xf32>
      %95 = arith.mulf %90, %38 : vector<16x8xf32>
      %96 = arith.mulf %89, %40 : vector<16x8xf32>
      %97 = arith.addf %95, %96 : vector<16x8xf32>
      %98 = tpu.concatenate %94, %97, %91 in 1 : vector<16x8xf32>, vector<16x8xf32>, vector<16x16xf32> -> vector<16x32xf32>
      %99 = vector.extract_strided_slice %36 {offsets = [0, 160], sizes = [16, 32], strides = [1, 1]} : vector<16x256xf32> to vector<16x32xf32>
      %100 = vector.extract_strided_slice %99 {offsets = [0, 0], sizes = [16, 8], strides = [1, 1]} : vector<16x32xf32> to vector<16x8xf32>
      %101 = vector.extract_strided_slice %99 {offsets = [0, 8], sizes = [16, 8], strides = [1, 1]} : vector<16x32xf32> to vector<16x8xf32>
      %102 = vector.extract_strided_slice %99 {offsets = [0, 16], sizes = [16, 16], strides = [1, 1]} : vector<16x32xf32> to vector<16x16xf32>
      %103 = arith.mulf %100, %38 : vector<16x8xf32>
      %104 = arith.mulf %101, %40 : vector<16x8xf32>
      %105 = arith.subf %103, %104 : vector<16x8xf32>
      %106 = arith.mulf %101, %38 : vector<16x8xf32>
      %107 = arith.mulf %100, %40 : vector<16x8xf32>
      %108 = arith.addf %106, %107 : vector<16x8xf32>
      %109 = tpu.concatenate %105, %108, %102 in 1 : vector<16x8xf32>, vector<16x8xf32>, vector<16x16xf32> -> vector<16x32xf32>
      %110 = tpu.concatenate %98, %109 in 1 : vector<16x32xf32>, vector<16x32xf32> -> vector<16x64xf32>
      %111 = arith.truncf %110 : vector<16x64xf32> to vector<16x64xbf16>
      %c0_31 = arith.constant 0 : index
      %c0_32 = arith.constant 0 : index
      %112 = vector.load %arg9[%c0_31, %c0_32] : memref<16x64xbf16, #tpu.memory_space<vmem>>, vector<16x64xbf16>
      tpu.vector_store %arg9[%c0_31, %c0_32], %111 {strides = array<i32>} : memref<16x64xbf16, #tpu.memory_space<vmem>>, vector<16x64xbf16>,
      %113 = vector.extract_strided_slice %36 {offsets = [0, 192], sizes = [16, 64], strides = [1, 1]} : vector<16x256xf32> to vector<16x64xf32>
      %114 = arith.truncf %113 : vector<16x64xf32> to vector<16x64xbf16>
      %c0_33 = arith.constant 0 : index
      %c0_34 = arith.constant 0 : index
      %115 = vector.load %arg10[%c0_33, %c0_34] : memref<16x64xbf16, #tpu.memory_space<vmem>>, vector<16x64xbf16>
      tpu.vector_store %arg10[%c0_33, %c0_34], %114 {strides = array<i32>} : memref<16x64xbf16, #tpu.memory_space<vmem>>, vector<16x64xbf16>,
    } else {
    }
    return
  }
  func.func @transform_0(%arg0: i32, %arg1: i32) -> (i32, i32) {
    %c0_i32 = arith.constant 0 : i32
    return %arg0, %arg1 : i32, i32
  }
  func.func @transform_1(%arg0: i32, %arg1: i32) -> (i32, i32) {
    %c0_i32 = arith.constant 0 : i32
    %c0_i32_0 = arith.constant 0 : i32
    return %c0_i32, %arg1 : i32, i32
  }
  func.func @transform_2(%arg0: i32, %arg1: i32) -> (i32, i32) {
    %c0_i32 = arith.constant 0 : i32
    %c0_i32_0 = arith.constant 0 : i32
    return %arg1, %c0_i32 : i32, i32
  }
  func.func @transform_3(%arg0: i32, %arg1: i32) -> (i32, i32) {
    %c0_i32 = arith.constant 0 : i32
    %c0_i32_0 = arith.constant 0 : i32
    %c0_i32_1 = arith.constant 0 : i32
    return %c0_i32, %c0_i32_0 : i32, i32
  }
  func.func @transform_4(%arg0: i32, %arg1: i32) -> (i32, i32) {
    %c1_i32 = arith.constant 1 : i32
    %c0_i32 = arith.constant 0 : i32
    %0 = arith.cmpi eq, %c1_i32, %c0_i32 : i32
    %c1_i32_0 = arith.constant 1 : i32
    %1 = arith.select %0, %c1_i32_0, %c1_i32 : i32
    %2 = arith.remsi %arg0, %1 : i32
    %c0_i32_1 = arith.constant 0 : i32
    %3 = arith.cmpi ne, %2, %c0_i32_1 : i32
    %c0_i32_2 = arith.constant 0 : i32
    %4 = arith.cmpi slt, %2, %c0_i32_2 : i32
    %c0_i32_3 = arith.constant 0 : i32
    %5 = arith.cmpi slt, %1, %c0_i32_3 : i32
    %6 = arith.xori %4, %5 : i1
    %7 = arith.andi %6, %3 : i1
    %8 = arith.addi %2, %1 : i32
    %9 = arith.select %7, %8, %2 : i32
    %c0_i32_4 = arith.constant 0 : i32
    %c0_i32_5 = arith.constant 0 : i32
    return %9, %c0_i32_4 : i32, i32
  }
  func.func @transform_5(%arg0: i32, %arg1: i32) -> (i32, i32) {
    %c1_i32 = arith.constant 1 : i32
    %c0_i32 = arith.constant 0 : i32
    %0 = arith.cmpi eq, %c1_i32, %c0_i32 : i32
    %c1_i32_0 = arith.constant 1 : i32
    %1 = arith.select %0, %c1_i32_0, %c1_i32 : i32
    %2 = arith.remsi %arg0, %1 : i32
    %c0_i32_1 = arith.constant 0 : i32
    %3 = arith.cmpi ne, %2, %c0_i32_1 : i32
    %c0_i32_2 = arith.constant 0 : i32
    %4 = arith.cmpi slt, %2, %c0_i32_2 : i32
    %c0_i32_3 = arith.constant 0 : i32
    %5 = arith.cmpi slt, %1, %c0_i32_3 : i32
    %6 = arith.xori %4, %5 : i1
    %7 = arith.andi %6, %3 : i1
    %8 = arith.addi %2, %1 : i32
    %9 = arith.select %7, %8, %2 : i32
    %c0_i32_4 = arith.constant 0 : i32
    %c0_i32_5 = arith.constant 0 : i32
    return %9, %c0_i32_4 : i32, i32
  }
  func.func @transform_6(%arg0: i32, %arg1: i32) -> (i32, i32) {
    %c0_i32 = arith.constant 0 : i32
    %c0_i32_0 = arith.constant 0 : i32
    return %arg0, %c0_i32 : i32, i32
  }
  func.func @transform_7(%arg0: i32, %arg1: i32) -> (i32, i32) {
    %c0_i32 = arith.constant 0 : i32
    %c0_i32_0 = arith.constant 0 : i32
    return %arg0, %c0_i32 : i32, i32
  }
  func.func @transform_8(%arg0: i32, %arg1: i32) -> (i32, i32) {
    %c0_i32 = arith.constant 0 : i32
    %c0_i32_0 = arith.constant 0 : i32
    return %arg0, %c0_i32 : i32, i32
  }
}

module attributes {stable_mosaic.version = 11 : i64} {
  func.func @_rmsnorm_kernel(%arg0: i32, %arg1: memref<32x128xbf16, #tpu.memory_space<vmem>>, %arg2: memref<1x128xbf16, #tpu.memory_space<vmem>>, %arg3: memref<32x128xbf16, #tpu.memory_space<vmem>>) attributes {dimension_semantics = [#tpu.dimension_semantics<parallel>], iteration_bounds = array<i64: 1>, scalar_prefetch = 0 : i64, scratch_operands = 0 : i64, tpu.core_type = #tpu.core_type<tc>, window_params = [{transform_indices = @transform_0, window_bounds = array<i64: 32, 128>}, {pipeline_mode = #tpu.pipeline_mode<synchronous>, transform_indices = @transform_1, window_bounds = array<i64: 1, 128>}, {transform_indices = @transform_2, window_bounds = array<i64: 32, 128>}]} {
    %c0 = arith.constant 0 : index
    %c0_0 = arith.constant 0 : index
    %0 = vector.load %arg1[%c0, %c0_0] : memref<32x128xbf16, #tpu.memory_space<vmem>>, vector<32x128xbf16>
    %1 = arith.extf %0 : vector<32x128xbf16> to vector<32x128xf32>
    %2 = arith.mulf %1, %1 : vector<32x128xf32>
    %cst = arith.constant dense<0.000000e+00> : vector<32xf32>
    %3 = vector.multi_reduction <add>, %2, %cst [1] : vector<32x128xf32> to vector<32xf32>
    %4 = vector.shape_cast %3 : vector<32xf32> to vector<32x1xf32>
    %cst_1 = arith.constant 1.280000e+02 : f32
    %5 = vector.broadcast %cst_1 : f32 to vector<32x1xf32>
    %6 = arith.divf %4, %5 : vector<32x1xf32>
    %cst_2 = arith.constant 9.99999974E-6 : f32
    %7 = vector.broadcast %cst_2 : f32 to vector<32x1xf32>
    %8 = arith.addf %6, %7 : vector<32x1xf32>
    %9 = math.rsqrt %8 : vector<32x1xf32>
    %10 = vector.broadcast %9 : vector<32x1xf32> to vector<32x128xf32>
    %11 = arith.mulf %1, %10 : vector<32x128xf32>
    %c0_3 = arith.constant 0 : index
    %c0_4 = arith.constant 0 : index
    %12 = vector.load %arg2[%c0_3, %c0_4] : memref<1x128xbf16, #tpu.memory_space<vmem>>, vector<1x128xbf16>
    %13 = arith.extf %12 : vector<1x128xbf16> to vector<1x128xf32>
    %14 = vector.broadcast %13 : vector<1x128xf32> to vector<32x128xf32>
    %15 = arith.mulf %11, %14 : vector<32x128xf32>
    %16 = arith.truncf %15 : vector<32x128xf32> to vector<32x128xbf16>
    %c0_5 = arith.constant 0 : index
    %c0_6 = arith.constant 0 : index
    %17 = vector.load %arg3[%c0_5, %c0_6] : memref<32x128xbf16, #tpu.memory_space<vmem>>, vector<32x128xbf16>
    tpu.vector_store %arg3[%c0_5, %c0_6], %16 {strides = array<i32>} : memref<32x128xbf16, #tpu.memory_space<vmem>>, vector<32x128xbf16>,
    return
  }
  func.func @transform_0(%arg0: i32) -> (i32, i32) {
    %c0_i32 = arith.constant 0 : i32
    %c0_i32_0 = arith.constant 0 : i32
    return %arg0, %c0_i32 : i32, i32
  }
  func.func @transform_1(%arg0: i32) -> (i32, i32) {
    %c0_i32 = arith.constant 0 : i32
    %c0_i32_0 = arith.constant 0 : i32
    %c0_i32_1 = arith.constant 0 : i32
    return %c0_i32, %c0_i32_0 : i32, i32
  }
  func.func @transform_2(%arg0: i32) -> (i32, i32) {
    %c0_i32 = arith.constant 0 : i32
    %c0_i32_0 = arith.constant 0 : i32
    return %arg0, %c0_i32 : i32, i32
  }
}

</mosaic_0001>

<llo_original>
// kernel: _lambda_.7
$region0: #{_lambda_.7}
  #allocation0 [shape = 'u32[]', space=smem, size = 0x4, offset = 0x4, fixed_abs, tag = 'smem constant byte address 0x4 - core index']
  #allocation1 [shape = 'u32[72,128]{1,0:T(1,128)}', space=vmem, size = 0x9000, scoped, tag = 'internal scratch']
  #allocation2 [shape = 'f32[16,256]{1,0:T(8,128)}', space=vmem, size = 0x4000, scoped, tag = 'scratch operand']
  #allocation3 [shape = 'f32[16,1]{1,0:T(8,128)}', space=vmem, size = 0x2000, scoped, tag = 'scratch operand']
  %s0 = inlined_call_operand.vmem [shape: bf16[32,128], index: 0, kind: input, shape index: {}]
  %s1 = inlined_call_operand.vmem [shape: bf16[1,128], index: 1, kind: input, shape index: {}]
  %s2 = inlined_call_operand.hbm [shape: bf16[128,256], index: 2, kind: input, shape index: {}]
  %s3 = inlined_call_operand.vmem [shape: bf16[1,256], index: 3, kind: input, shape index: {}]
  %s4 = inlined_call_operand.vmem [shape: bf16[16,8], index: 4, kind: input, shape index: {}]
  %s5 = inlined_call_operand.vmem [shape: bf16[16,8], index: 5, kind: input, shape index: {}]
  %s6 = inlined_call_operand.vmem [shape: bf16[32,128], index: 6, kind: output, shape index: {0}]
  %s7 = inlined_call_operand.vmem [shape: bf16[32,64], index: 7, kind: output, shape index: {1}]
  %s8 = inlined_call_operand.vmem [shape: bf16[32,64], index: 8, kind: output, shape index: {2}]
  %9 = xla_tuple %s6, %s7, %s8
  %s10 = sld [smem:[#allocation0]]
  $region85: #{_lambda_.7} parent=0
    _
  %s12 = ssub.s32 1, %s10
  %s13 = scalar_select 0, %s12, %s10
  $region1: #{_lambda_.7} parent=0
    #allocation4 [shape = 'u8[65536]{0}', space=vmem, size = 0x10000, scoped, tag = 'input window, operand 2, single buffered']
    #allocation5 [shape = 's32[2]{0}', space=sflag, size = 0x8, scoped, tag = 'scoped memory for _lambda_.7']
    %14 = vsyncpa [#allocation5], 0
    loop: start=0, step=1, limit=4
    $region2: #{_lambda_.7} parent=1 // loop_pre_header
      _
    $region3: #{_lambda_.7} parent=1 // loop_header
      %s16 = sphi 0, %s20
      %p17 = scmp.ge.s32.totalorder %s16, 4
      %s23 = sphi 0, %s35
      %s24 = sphi 0, %s31
      %s25 = sphi 0, %s23
      %s26 = sphi 0, %s24
      %s27 = sphi 0, %s25
      %s28 = sphi 0, %s26
      %s40 = sphi 0, %s42
      %s43 = sphi 0, %s40
      %s44 = sphi 0, %s43
      %s60 = sphi 0, %s44
      %s66 = sphi 0, %s68
      %s69 = sphi 0, %s66
      %s70 = sphi 0, %s69
      %s86 = sphi 0, %s70
      %s92 = sphi 0, %s94
      %s95 = sphi 0, %s92
      %s96 = sphi 0, %s95
      %s112 = sphi 0, %s96
      %s116 = sphi 0, %s116
      %s118 = sphi 0, %s116
      %s119 = sphi 0, %s118
      %s133 = sphi 0, %s119
      %s137 = sphi 0, %s137
      %s139 = sphi 0, %s137
      %s140 = sphi 0, %s139
      %s154 = sphi 0, %s140
      %s158 = sphi 0, %s158
      %s160 = sphi 0, %s158
      %s161 = sphi 0, %s160
      %s175 = sphi 0, %s161
      %s181 = sphi 0, %s183
      %s184 = sphi 0, %s181
      %s185 = sphi 0, %s184
      %s201 = sphi 0, %s185
      %s207 = sphi 0, %s209
      %s210 = sphi 0, %s207
      %s211 = sphi 0, %s210
      %s227 = sphi 0, %s211
      %s233 = sphi 0, %s235
      %s236 = sphi 0, %s233
      %s237 = sphi 0, %s236
      %s253 = sphi 0, %s237
    $region4: #{_lambda_.7} parent=1 // loop_header_branch
      %19 = sbr.rel (%p17) target = $region8
    $region5: #{_lambda_.7} parent=1 // loop_body
      %s21 = ssub.s32 %s16, 1
      %s22 = ssub.s32 %s16, 2
      %s29 = sadd.s32 1, %s24
      %p30 = scmp.ge.s32.totalorder %s29, 1
      %s31 = scalar_select %p30, 0, %s29
      %s32 = sadd.s32 1, %s23
      %s33 = scalar_select %p30, %s32, %s23
      %p34 = scmp.ge.s32.totalorder %s33, 2
      %s35 = scalar_select %p34, 0, %s33
      %s36 = ssub.s32 %s23, %s35
      %s37 = ssub.s32 %s24, %s31
      %s38 = sor.u32 %s36, %s37
      %p39 = scmp.eq.s32.totalorder %s38, 0
      %s41 = sadd.s32 %s40, 1
      %s42 = scalar_select %p39, %s40, %s41
      %p45 = pneg %p39
      %p46 = scmp.eq.s32.totalorder %s16, 1
      %p47 = por %p45, %p46
      %p48 = scmp.ne.s32.totalorder %s40, %s43
      %p49 = scmp.eq.s32.totalorder %s16, 0
      %p50 = por %p48, %p49
      %p51 = scmp.ne.s32.totalorder %s40, %s43
      %p52 = scmp.eq.s32.totalorder %s21, 1
      %p53 = por %p51, %p52
      %p54 = scmp.ne.s32.totalorder %s43, %s44
      %p55 = scmp.eq.s32.totalorder %s21, 0
      %p56 = por %p54, %p55
      %p57 = scmp.ne.s32.totalorder %s43, %s44
      %p58 = scmp.eq.s32.totalorder %s22, 1
      %p59 = por %p57, %p58
      %p61 = scmp.ne.s32.totalorder %s44, %s60
      %p62 = scmp.eq.s32.totalorder %s22, 0
      %p63 = por %p61, %p62
      %s64 = ssub.s32 %s24, %s31
      %p65 = scmp.eq.s32.totalorder %s64, 0
      %s67 = sadd.s32 %s66, 1
      %s68 = scalar_select %p65, %s66, %s67
      %p71 = pneg %p65
      %p72 = scmp.eq.s32.totalorder %s16, 1
      %p73 = por %p71, %p72
      %p74 = scmp.ne.s32.totalorder %s66, %s69
      %p75 = scmp.eq.s32.totalorder %s16, 0
      %p76 = por %p74, %p75
      %p77 = scmp.ne.s32.totalorder %s66, %s69
      %p78 = scmp.eq.s32.totalorder %s21, 1
      %p79 = por %p77, %p78
      %p80 = scmp.ne.s32.totalorder %s69, %s70
      %p81 = scmp.eq.s32.totalorder %s21, 0
      %p82 = por %p80, %p81
      %p83 = scmp.ne.s32.totalorder %s69, %s70
      %p84 = scmp.eq.s32.totalorder %s22, 1
      %p85 = por %p83, %p84
      %p87 = scmp.ne.s32.totalorder %s70, %s86
      %p88 = scmp.eq.s32.totalorder %s22, 0
      %p89 = por %p87, %p88
      %s90 = ssub.s32 %s24, %s31
      %p91 = scmp.eq.s32.totalorder %s90, 0
      %s93 = sadd.s32 %s92, 1
      %s94 = scalar_select %p91, %s92, %s93
      %p97 = pneg %p91
      %p98 = scmp.eq.s32.totalorder %s16, 1
      %p99 = por %p97, %p98
      %p100 = scmp.ne.s32.totalorder %s92, %s95
      %p101 = scmp.eq.s32.totalorder %s16, 0
      %p102 = por %p100, %p101
      %p103 = scmp.ne.s32.totalorder %s92, %s95
      %p104 = scmp.eq.s32.totalorder %s21, 1
      %p105 = por %p103, %p104
      %p106 = scmp.ne.s32.totalorder %s95, %s96
      %p107 = scmp.eq.s32.totalorder %s21, 0
      %p108 = por %p106, %p107
      %p109 = scmp.ne.s32.totalorder %s95, %s96
      %p110 = scmp.eq.s32.totalorder %s22, 1
      %p111 = por %p109, %p110
      %p113 = scmp.ne.s32.totalorder %s96, %s112
      %p114 = scmp.eq.s32.totalorder %s22, 0
      %p115 = por %p113, %p114
      %s117 = sadd.s32 %s116, 1
      %p120 = scmp.eq.s32.totalorder %s16, 1
      %p121 = scmp.ne.s32.totalorder %s116, %s118
      %p122 = scmp.eq.s32.totalorder %s16, 0
      %p123 = por %p121, %p122
      %p124 = scmp.ne.s32.totalorder %s116, %s118
      %p125 = scmp.eq.s32.totalorder %s21, 1
      %p126 = por %p124, %p125
      %p127 = scmp.ne.s32.totalorder %s118, %s119
      %p128 = scmp.eq.s32.totalorder %s21, 0
      %p129 = por %p127, %p128
      %p130 = scmp.ne.s32.totalorder %s118, %s119
      %p131 = scmp.eq.s32.totalorder %s22, 1
      %p132 = por %p130, %p131
      %p134 = scmp.ne.s32.totalorder %s119, %s133
      %p135 = scmp.eq.s32.totalorder %s22, 0
      %p136 = por %p134, %p135
      %s138 = sadd.s32 %s137, 1
      %p141 = scmp.eq.s32.totalorder %s16, 1
      %p142 = scmp.ne.s32.totalorder %s137, %s139
      %p143 = scmp.eq.s32.totalorder %s16, 0
      %p144 = por %p142, %p143
      %p145 = scmp.ne.s32.totalorder %s137, %s139
      %p146 = scmp.eq.s32.totalorder %s21, 1
      %p147 = por %p145, %p146
      %p148 = scmp.ne.s32.totalorder %s139, %s140
      %p149 = scmp.eq.s32.totalorder %s21, 0
      %p150 = por %p148, %p149
      %p151 = scmp.ne.s32.totalorder %s139, %s140
      %p152 = scmp.eq.s32.totalorder %s22, 1
      %p153 = por %p151, %p152
      %p155 = scmp.ne.s32.totalorder %s140, %s154
      %p156 = scmp.eq.s32.totalorder %s22, 0
      %p157 = por %p155, %p156
      %s159 = sadd.s32 %s158, 1
      %p162 = scmp.eq.s32.totalorder %s16, 1
      %p163 = scmp.ne.s32.totalorder %s158, %s160
      %p164 = scmp.eq.s32.totalorder %s16, 0
      %p165 = por %p163, %p164
      %p166 = scmp.ne.s32.totalorder %s158, %s160
      %p167 = scmp.eq.s32.totalorder %s21, 1
      %p168 = por %p166, %p167
      %p169 = scmp.ne.s32.totalorder %s160, %s161
      %p170 = scmp.eq.s32.totalorder %s21, 0
      %p171 = por %p169, %p170
      %p172 = scmp.ne.s32.totalorder %s160, %s161
      %p173 = scmp.eq.s32.totalorder %s22, 1
      %p174 = por %p172, %p173
      %p176 = scmp.ne.s32.totalorder %s161, %s175
      %p177 = scmp.eq.s32.totalorder %s22, 0
      %p178 = por %p176, %p177
      %s179 = ssub.s32 %s23, %s35
      %p180 = scmp.eq.s32.totalorder %s179, 0
      %s182 = sadd.s32 %s181, 1
      %s183 = scalar_select %p180, %s181, %s182
      %p186 = pneg %p180
      %p187 = scmp.eq.s32.totalorder %s16, 1
      %p188 = por %p186, %p187
      %p189 = scmp.ne.s32.totalorder %s181, %s184
      %p190 = scmp.eq.s32.totalorder %s16, 0
      %p191 = por %p189, %p190
      %p192 = scmp.ne.s32.totalorder %s181, %s184
      %p193 = scmp.eq.s32.totalorder %s21, 1
      %p194 = por %p192, %p193
      %p195 = scmp.ne.s32.totalorder %s184, %s185
      %p196 = scmp.eq.s32.totalorder %s21, 0
      %p197 = por %p195, %p196
      %p198 = scmp.ne.s32.totalorder %s184, %s185
      %p199 = scmp.eq.s32.totalorder %s22, 1
      %p200 = por %p198, %p199
      %p202 = scmp.ne.s32.totalorder %s185, %s201
      %p203 = scmp.eq.s32.totalorder %s22, 0
      %p204 = por %p202, %p203
      %s205 = ssub.s32 %s23, %s35
      %p206 = scmp.eq.s32.totalorder %s205, 0
      %s208 = sadd.s32 %s207, 1
      %s209 = scalar_select %p206, %s207, %s208
      %p212 = pneg %p206
      %p213 = scmp.eq.s32.totalorder %s16, 1
      %p214 = por %p212, %p213
      %p215 = scmp.ne.s32.totalorder %s207, %s210
      %p216 = scmp.eq.s32.totalorder %s16, 0
      %p217 = por %p215, %p216
      %p218 = scmp.ne.s32.totalorder %s207, %s210
      %p219 = scmp.eq.s32.totalorder %s21, 1
      %p220 = por %p218, %p219
      %p221 = scmp.ne.s32.totalorder %s210, %s211
      %p222 = scmp.eq.s32.totalorder %s21, 0
      %p223 = por %p221, %p222
      %p224 = scmp.ne.s32.totalorder %s210, %s211
      %p225 = scmp.eq.s32.totalorder %s22, 1
      %p226 = por %p224, %p225
      %p228 = scmp.ne.s32.totalorder %s211, %s227
      %p229 = scmp.eq.s32.totalorder %s22, 0
      %p230 = por %p228, %p229
      %s231 = ssub.s32 %s23, %s35
      %p232 = scmp.eq.s32.totalorder %s231, 0
      %s234 = sadd.s32 %s233, 1
      %s235 = scalar_select %p232, %s233, %s234
      %p238 = pneg %p232
      %p239 = scmp.eq.s32.totalorder %s16, 1
      %p240 = por %p238, %p239
      %p241 = scmp.ne.s32.totalorder %s233, %s236
      %p242 = scmp.eq.s32.totalorder %s16, 0
      %p243 = por %p241, %p242
      %p244 = scmp.ne.s32.totalorder %s233, %s236
      %p245 = scmp.eq.s32.totalorder %s21, 1
      %p246 = por %p244, %p245
      %p247 = scmp.ne.s32.totalorder %s236, %s237
      %p248 = scmp.eq.s32.totalorder %s21, 0
      %p249 = por %p247, %p248
      %p250 = scmp.ne.s32.totalorder %s236, %s237
      %p251 = scmp.eq.s32.totalorder %s22, 1
      %p252 = por %p250, %p251
      %p254 = scmp.ne.s32.totalorder %s237, %s253
      %p255 = scmp.eq.s32.totalorder %s22, 0
      %p256 = por %p254, %p255
      %p257 = scmp.le.s32.totalorder 1, %s16
      %p258 = scmp.lt.s32.totalorder %s16, 3
      %p259 = pnand %p257, %p258
      %p260 = pneg %p259
      // Predicated region
      $region9: #{_lambda_.7} parent=5 // pred_check
        _
      $region10: #{_lambda_.7} parent=5 // pred_check_branch
        %262 = sbr.rel (%p259) target = $region12
      $region11: #{_lambda_.7} parent=5 // pred_region
        %s263 = ssub.s32 %s16, 1
        // Predicated region
        $region13: #{_lambda_.7} parent=11 // pred_check
          %p264 = pneg %p82
        $region14: #{_lambda_.7} parent=11 // pred_check_branch
          %266 = sbr.rel (%p264) target = $region16
        $region15: #{_lambda_.7} parent=11 // pred_region
          %p267 = scmp.lt.s32.totalorder %s26, 0
          %s268 = scalar_select %p267, %s26, 0
          %s269 = scalar_lea.vmem %s1, %s268
        $region16: #{_lambda_.7} parent=11 // pred_fallthru
          _
        // Predicated region
        $region17: #{_lambda_.7} parent=11 // pred_check
          %p270 = pneg %p108
        $region18: #{_lambda_.7} parent=11 // pred_check_branch
          %272 = sbr.rel (%p270) target = $region20
        $region19: #{_lambda_.7} parent=11 // pred_region
          %s273 = smul.u32 16, %s26
          %275 = vsyncadd [#allocation5], 0
          %s276 = smul.addr %s273, 2
          %s277 = smul.addr %s276, 4
          %s278 = scalar_lea.hbm %s2, %s277
          %s279 = sshll.u32 %s278, 4
          %s280 = int_to_ptr.hbm [resolvable:$true] %s279
          %s281 = sshll.u32 [#allocation4], 4
          %s282 = int_to_ptr.vmem [resolvable:$true] %s281
          %287 = dma.hbm_to_vmem [thread:$0]  %s280, 2048, %s282, [#allocation5], 128, 128, 8
        $region20: #{_lambda_.7} parent=11 // pred_fallthru
          _
        // Predicated region
        $region21: #{_lambda_.7} parent=11 // pred_check
          %p288 = pneg %p129
        $region22: #{_lambda_.7} parent=11 // pred_check_branch
          %290 = sbr.rel (%p288) target = $region24
        $region23: #{_lambda_.7} parent=11 // pred_region
          _
        $region24: #{_lambda_.7} parent=11 // pred_fallthru
          _
        // Predicated region
        $region25: #{_lambda_.7} parent=11 // pred_check
          %p291 = pneg %p150
        $region26: #{_lambda_.7} parent=11 // pred_check_branch
          %293 = sbr.rel (%p291) target = $region28
        $region27: #{_lambda_.7} parent=11 // pred_region
          _
        $region28: #{_lambda_.7} parent=11 // pred_fallthru
          _
        // Predicated region
        $region29: #{_lambda_.7} parent=11 // pred_check
          %p294 = pneg %p171
        $region30: #{_lambda_.7} parent=11 // pred_check_branch
          %296 = sbr.rel (%p294) target = $region32
        $region31: #{_lambda_.7} parent=11 // pred_region
          _
        $region32: #{_lambda_.7} parent=11 // pred_fallthru
          _
      $region12: #{_lambda_.7} parent=5 // pred_fallthru
        _
      %p297 = scmp.lt.s32.totalorder %s16, 2
      // Predicated region
      $region33: #{_lambda_.7} parent=5 // pred_check
        %p298 = pneg %p297
      $region34: #{_lambda_.7} parent=5 // pred_check_branch
        %300 = sbr.rel (%p298) target = $region36
      $region35: #{_lambda_.7} parent=5 // pred_region
        // Predicated region
        $region37: #{_lambda_.7} parent=35 // pred_check
          %p301 = pneg %p50
        $region38: #{_lambda_.7} parent=35 // pred_check_branch
          %303 = sbr.rel (%p301) target = $region40
        $region39: #{_lambda_.7} parent=35 // pred_region
          %s304 = smul.u32 2, %s23
          %p305 = scmp.lt.s32.totalorder %s304, 3
          %s306 = scalar_select %p305, %s304, 3
          %p307 = scmp.lt.s32.totalorder %s24, 0
          %s308 = scalar_select %p307, %s24, 0
          %s309 = sadd.s32 %s308, %s306
          %s310 = smul.addr %s309, 4
          %s311 = scalar_lea.vmem %s0, %s310
          %s312 = smul.u32 2, %s23
        $region40: #{_lambda_.7} parent=35 // pred_fallthru
          _
      $region36: #{_lambda_.7} parent=5 // pred_fallthru
        _
      %p313 = scmp.le.s32.totalorder 1, %s16
      %p314 = scmp.lt.s32.totalorder %s16, 3
      %p315 = pnand %p313, %p314
      %p316 = pneg %p315
      // Predicated region
      $region41: #{_lambda_.7} parent=5 // pred_check
        _
      $region42: #{_lambda_.7} parent=5 // pred_check_branch
        %318 = sbr.rel (%p315) target = $region44
      $region43: #{_lambda_.7} parent=5 // pred_region
        %s319 = ssub.s32 %s16, 1
        // Predicated region
        $region45: #{_lambda_.7} parent=43 // pred_check
          %p320 = pneg %p108
        $region46: #{_lambda_.7} parent=43 // pred_check_branch
          %322 = sbr.rel (%p320) target = $region48
        $region47: #{_lambda_.7} parent=43 // pred_region
          %324 = dma.done [#allocation5], 2048
        $region48: #{_lambda_.7} parent=43 // pred_fallthru
          _
        %s325 = smul.u32 2, %s25
        %p326 = scmp.lt.s32.totalorder %s325, 3
        %s327 = scalar_select %p326, %s325, 3
        %p328 = scmp.lt.s32.totalorder %s26, 0
        %s329 = scalar_select %p328, %s26, 0
        %s330 = sadd.s32 %s329, %s327
        %s331 = smul.addr %s330, 4
        %s332 = scalar_lea.vmem %s0, %s331
        %p333 = pneg %p56
        %p334 = pneg %p53
        %p335 = scmp.lt.s32.totalorder %s26, 0
        %s336 = scalar_select %p335, %s26, 0
        %s337 = scalar_lea.vmem %s1, %s336
        %p338 = pneg %p82
        %p339 = pneg %p79
        %p340 = pneg %p108
        %p341 = pneg %p105
        %p342 = pneg %p129
        %p343 = pneg %p126
        %p344 = pneg %p150
        %p345 = pneg %p147
        %p346 = pneg %p171
        %p347 = pneg %p168
        %p348 = pneg %p197
        %p349 = pneg %p194
        %s350 = smul.u32 2, %s25
        %p351 = scmp.lt.s32.totalorder %s350, 3
        %s352 = scalar_select %p351, %s350, 3
        %s353 = smul.addr %s352, 4
        %s354 = scalar_lea.vmem %s6, %s353
        %p355 = pneg %p223
        %p356 = pneg %p220
        %s357 = smul.u32 2, %s25
        %p358 = scmp.lt.s32.totalorder %s357, 3
        %s359 = scalar_select %p358, %s357, 3
        %s360 = smul.addr %s359, 4
        %s361 = scalar_lea.vmem %s7, %s360
        %p362 = pneg %p249
        %p363 = pneg %p246
        %s364 = smul.u32 2, %s25
        %p365 = scmp.lt.s32.totalorder %s364, 3
        %s366 = scalar_select %p365, %s364, 3
        %s367 = smul.addr %s366, 4
        %s368 = scalar_lea.vmem %s8, %s367
        %s369 = smul.u32 2, %s25
        %p370 = scmp.lt.s32.totalorder %s369, 3
        %s371 = scalar_select %p370, %s369, 3
        %p372 = scmp.lt.s32.totalorder %s26, 0
        %s373 = scalar_select %p372, %s26, 0
        %s374 = sadd.s32 %s373, %s371
        %s375 = smul.addr %s374, 4
        %s376 = scalar_lea.vmem %s0, %s375
        %s377 = smul.u32 2, %s25
        %p378 = scmp.lt.s32.totalorder %s26, 0
        %s379 = scalar_select %p378, %s26, 0
        %s380 = scalar_lea.vmem %s1, %s379
        %s381 = smul.u32 16, %s26
        %s382 = smul.u32 2, %s25
        %p383 = scmp.lt.s32.totalorder %s382, 3
        %s384 = scalar_select %p383, %s382, 3
        %s385 = smul.addr %s384, 4
        %s386 = scalar_lea.vmem %s6, %s385
        %s387 = smul.u32 2, %s25
        %s388 = smul.u32 2, %s25
        %p389 = scmp.lt.s32.totalorder %s388, 3
        %s390 = scalar_select %p389, %s388, 3
        %s391 = smul.addr %s390, 4
        %s392 = scalar_lea.vmem %s7, %s391
        %s393 = smul.u32 2, %s25
        %s394 = smul.u32 2, %s25
        %p395 = scmp.lt.s32.totalorder %s394, 3
        %s396 = scalar_select %p395, %s394, 3
        %s397 = smul.addr %s396, 4
        %s398 = scalar_lea.vmem %s8, %s397
        %s399 = smul.u32 2, %s25
        %p400 = scmp.eq.s32.totalorder %s26, 0
        // Predicated region
        $region49: #{_lambda_.7} parent=43 // pred_check
          %p401 = pneg %p400
        $region50: #{_lambda_.7} parent=43 // pred_check_branch
          %403 = sbr.rel (%p401) target = $region52
        $region51: #{_lambda_.7} parent=43 // pred_region
          %404 = vst [vmem:[#allocation2] sm:$0xff] 0.0
          %405 = vst [vmem:[#allocation2 + $0x8] sm:$0xff] 0.0
          %406 = vst [vmem:[#allocation2 + $0x10] sm:$0xff] 0.0
          %407 = vst [vmem:[#allocation2 + $0x18] sm:$0xff] 0.0
          %vm408 = vcmask 7168
          %409 = vst.msk [vmem:[#allocation3] sm:$0xff] %vm408, 0.0
          %410 = vst.msk [vmem:[#allocation3 + $0x8] sm:$0xff] %vm408, 0.0
        $region52: #{_lambda_.7} parent=43 // pred_fallthru
          _
        %v411 = vld [vmem:[%s376] sm:$0xf]
        %v412 = vld [vmem:[%s376 + $0x4] sm:$0xf]
        %v413 = vunpack.c.l.bf16 %v411
        %v414 = vunpack.c.l.bf16 %v412
        %v415 = vld [vmem:[%s380] sm:$0x1]
        %v416 = vunpack.c.l.bf16 %v415
        %v417 = vld [vmem:[#allocation3] sm:$0xff]
        %v418 = vld [vmem:[#allocation3 + $0x8] sm:$0xff]
        %v419 = vmul.f32 %v413, %v413
        %v420 = vmul.f32 %v414, %v414
        %421 = vadd.xlane.f32.xlu0 %v419
        %v422 = vpop.xlane.xlu0 %421
        %423 = vadd.xlane.f32.xlu0 %v420
        %v424 = vpop.xlane.xlu0 %423
        %v425 = vadd.f32 %v417, %v422
        %v426 = vadd.f32 %v418, %v424
        %vm427 = vcmask 7168
        %428 = vst.msk [vmem:[#allocation3] sm:$0xff] %vm427, %v425
        %429 = vst.msk [vmem:[#allocation3 + $0x8] sm:$0xff] %vm427, %v426
        %v430 = vperm.slane %v416, 0
        %v431 = vmul.f32 %v413, %v430
        %v432 = vmul.f32 %v414, %v430
        %v433 = vpack.c.bf16 %v432, %v431
        %v434 = vld [vmem:[#allocation2] sm:$0xff]
        %v435 = vld [vmem:[#allocation2 + $0x8] sm:$0xff]
        %v436 = vld [vmem:[#allocation2 + $0x10] sm:$0xff]
        %v437 = vld [vmem:[#allocation2 + $0x18] sm:$0xff]
        %v438 = vld [vmem:[#allocation4] sm:$0xff]
        %v439 = vld [vmem:[#allocation4 + $0x8] sm:$0xff]
        %v440 = vld [vmem:[#allocation4 + $0x10] sm:$0xff]
        %v441 = vld [vmem:[#allocation4 + $0x18] sm:$0xff]
        %v442 = vld [vmem:[#allocation4 + $0x20] sm:$0xff]
        %v443 = vld [vmem:[#allocation4 + $0x28] sm:$0xff]
        %v444 = vld [vmem:[#allocation4 + $0x30] sm:$0xff]
        %v445 = vld [vmem:[#allocation4 + $0x38] sm:$0xff]
        %v446 = vld [vmem:[#allocation4 + $0x40] sm:$0xff]
        %v447 = vld [vmem:[#allocation4 + $0x48] sm:$0xff]
        %v448 = vld [vmem:[#allocation4 + $0x50] sm:$0xff]
        %v449 = vld [vmem:[#allocation4 + $0x58] sm:$0xff]
        %v450 = vld [vmem:[#allocation4 + $0x60] sm:$0xff]
        %v451 = vld [vmem:[#allocation4 + $0x68] sm:$0xff]
        %v452 = vld [vmem:[#allocation4 + $0x70] sm:$0xff]
        %v453 = vld [vmem:[#allocation4 + $0x78] sm:$0xff]
        %v470 = vunpack.c.l.b16 %v438
        %v471 = vunpack.c.h.b16 %v438
        %v472 = vunpack.c.l.b16 %v439
        %v473 = vunpack.c.h.b16 %v439
        %v474 = vunpack.c.l.b16 %v440
        %v475 = vunpack.c.h.b16 %v440
        %v476 = vunpack.c.l.b16 %v441
        %v477 = vunpack.c.h.b16 %v441
        %v478 = vunpack.c.l.b16 %v442
        %v479 = vunpack.c.h.b16 %v442
        %v480 = vunpack.c.l.b16 %v443
        %v481 = vunpack.c.h.b16 %v443
        %v482 = vunpack.c.l.b16 %v444
        %v483 = vunpack.c.h.b16 %v444
        %v484 = vunpack.c.l.b16 %v445
        %v485 = vunpack.c.h.b16 %v445
        %v486 = vunpack.c.l.b16 %v446
        %v487 = vunpack.c.h.b16 %v446
        %v488 = vunpack.c.l.b16 %v447
        %v489 = vunpack.c.h.b16 %v447
        %v490 = vunpack.c.l.b16 %v448
        %v491 = vunpack.c.h.b16 %v448
        %v492 = vunpack.c.l.b16 %v449
        %v493 = vunpack.c.h.b16 %v449
        %v494 = vunpack.c.l.b16 %v450
        %v495 = vunpack.c.h.b16 %v450
        %v496 = vunpack.c.l.b16 %v451
        %v497 = vunpack.c.h.b16 %v451
        %v498 = vunpack.c.l.b16 %v452
        %v499 = vunpack.c.h.b16 %v452
        %v500 = vunpack.c.l.b16 %v453
        %v501 = vunpack.c.h.b16 %v453
        %v502 = vpack.c.b16 %v472, %v470
        %v503 = vpack.c.b16 %v473, %v471
        %v504 = vpack.c.b16 %v476, %v474
        %v505 = vpack.c.b16 %v477, %v475
        %v506 = vpack.c.b16 %v480, %v478
        %v507 = vpack.c.b16 %v481, %v479
        %v508 = vpack.c.b16 %v484, %v482
        %v509 = vpack.c.b16 %v485, %v483
        %v510 = vpack.c.b16 %v488, %v486
        %v511 = vpack.c.b16 %v489, %v487
        %v512 = vpack.c.b16 %v492, %v490
        %v513 = vpack.c.b16 %v493, %v491
        %v514 = vpack.c.b16 %v496, %v494
        %v515 = vpack.c.b16 %v497, %v495
        %v516 = vpack.c.b16 %v500, %v498
        %v517 = vpack.c.b16 %v501, %v499
        %534 = vmatpush.bf16.msra.mxu0 %v516
        %535 = vmatpush.bf16.msra.mxu0 %v514
        %536 = vmatpush.bf16.msra.mxu0 %v512
        %537 = vmatpush.bf16.msra.mxu0 %v510
        %538 = vmatpush.bf16.msra.mxu0 %v508
        %539 = vmatpush.bf16.msra.mxu0 %v506
        %540 = vmatpush.bf16.msra.mxu0 %v504
        %541 = vmatpush.bf16.msra.mxu0 %v502
        %542 = vmatmul.bf16.gmra.mxu0 %v433
        %v543 = vpop.f32.mrf.mxu0
        %v544 = vadd.f32 0.0, %v543
        %v545 = vpop.f32.mrf.mxu0
        %v546 = vadd.f32 0.0, %v545
        %547 = vdwg.mxu0
        %548 = vmatpush.bf16.msra.mxu0 %v517
        %549 = vmatpush.bf16.msra.mxu0 %v515
        %550 = vmatpush.bf16.msra.mxu0 %v513
        %551 = vmatpush.bf16.msra.mxu0 %v511
        %552 = vmatpush.bf16.msra.mxu0 %v509
        %553 = vmatpush.bf16.msra.mxu0 %v507
        %554 = vmatpush.bf16.msra.mxu0 %v505
        %555 = vmatpush.bf16.msra.mxu0 %v503
        %556 = vmatmul.bf16.gmra.mxu0 %v433
        %v557 = vpop.f32.mrf.mxu0
        %v558 = vadd.f32 0.0, %v557
        %v559 = vpop.f32.mrf.mxu0
        %v560 = vadd.f32 0.0, %v559
        %561 = vdwg.mxu0
        %v562 = vadd.f32 %v434, %v544
        %v563 = vadd.f32 %v435, %v558
        %v564 = vadd.f32 %v436, %v546
        %v565 = vadd.f32 %v437, %v560
        %566 = vst [vmem:[#allocation2] sm:$0xff] %v562
        %567 = vst [vmem:[#allocation2 + $0x8] sm:$0xff] %v563
        %568 = vst [vmem:[#allocation2 + $0x10] sm:$0xff] %v564
        %569 = vst [vmem:[#allocation2 + $0x18] sm:$0xff] %v565
        // Predicated region
        $region53: #{_lambda_.7} parent=43 // pred_check
          %p570 = pneg %p400
        $region54: #{_lambda_.7} parent=43 // pred_check_branch
          %572 = sbr.rel (%p570) target = $region56
        $region55: #{_lambda_.7} parent=43 // pred_region
          %v573 = vld [vmem:[#allocation3] sm:$0xff]
          %v574 = vld [vmem:[#allocation3 + $0x8] sm:$0xff]
          %v575 = vrcp.pop 128.0
          %v576 = vmul.f32 128.0, %v575
          %v577 = vsub.f32 1.0, %v576
          %v578 = vmul.f32 %v575, %v577
          %v579 = vadd.f32 %v575, %v578
          %vm580 = vweird.f32 %v575
          %v581 = vsel %vm580, %v575, %v579
          %v582 = vmul.f32 %v573, %v581
          %v583 = vmul.f32 %v574, %v581
          %v584 = vadd.f32 %v582, 1e-05
          %v585 = vadd.f32 %v583, 1e-05
          %v586 = vrsqrt.pop %v584
          %v587 = vmul.f32 %v586, %v584
          %v588 = vmul.f32 %v587, %v586
          %v589 = vmul.f32 0.5, %v588
          %v590 = vsub.f32 1.5, %v589
          %v591 = vmul.f32 %v586, %v590
          %vm592 = vweird.f32 %v584
          %vm593 = vweird.f32 %v586
          %vm594 = vmor %vm592, %vm593
          %v595 = vsel %vm594, %v586, %v591
          %v596 = vrsqrt.pop %v585
          %v597 = vmul.f32 %v596, %v585
          %v598 = vmul.f32 %v597, %v596
          %v599 = vmul.f32 0.5, %v598
          %v600 = vsub.f32 1.5, %v599
          %v601 = vmul.f32 %v596, %v600
          %vm602 = vweird.f32 %v585
          %vm603 = vweird.f32 %v596
          %vm604 = vmor %vm602, %vm603
          %v605 = vsel %vm604, %v596, %v601
          %v606 = vld [vmem:[#allocation2] sm:$0xff]
          %v607 = vld [vmem:[#allocation2 + $0x8] sm:$0xff]
          %v608 = vld [vmem:[#allocation2 + $0x10] sm:$0xff]
          %v609 = vld [vmem:[#allocation2 + $0x18] sm:$0xff]
          %611 = vset.pattern.permute.xlu0 0
          %612 = vperm.xlu0 %611, %v595
          %v613 = vpop.permute.xlu0 %612
          %616 = vset.pattern.permute.xlu0 0
          %617 = vperm.xlu0 %616, %v605
          %v618 = vpop.permute.xlu0 %617
          %v620 = vmul.f32 %v606, %v613
          %v621 = vmul.f32 %v607, %v613
          %v622 = vmul.f32 %v608, %v618
          %v623 = vmul.f32 %v609, %v618
          %v624 = vld [vmem:[%s3] sm:$0x3]
          %v625 = vunpack.c.l.bf16 %v624
          %v627 = vperm.slane %v625, 0
          %v628 = vperm.slane %v625, 2
          %v631 = vperm.slane %v627, 0
          %v632 = vperm.slane %v628, 0
          %v633 = vadd.f32 %v620, %v631
          %v634 = vadd.f32 %v621, %v632
          %v635 = vadd.f32 %v622, %v631
          %v636 = vadd.f32 %v623, %v632
          %v637 = vld [vmem:[%s4] sm:$0xf]
          %v638 = vld [vmem:[%s4 + $0x4] sm:$0xf]
          %v639 = vunpack.c.l.bf16 %v637
          %v640 = vunpack.c.l.bf16 %v638
          %v641 = vld [vmem:[%s5] sm:$0xf]
          %v642 = vld [vmem:[%s5 + $0x4] sm:$0xf]
          %v643 = vunpack.c.l.bf16 %v641
          %v644 = vunpack.c.l.bf16 %v642
          %v645 = vmul.f32 %v633, %v639
          %v646 = vmul.f32 %v635, %v640
          %649 = vrot.lane.b32.xlu0 %v643, 8
          %v650 = vpop.permute.xlu0 %649
          %651 = vrot.lane.b32.xlu0 %v644, 8
          %v652 = vpop.permute.xlu0 %651
          %v655 = vmul.f32 %v633, %v650
          %v656 = vmul.f32 %v635, %v652
          %659 = vrot.lane.b32.xlu0 %v655, 120
          %v660 = vpop.permute.xlu0 %659
          %661 = vrot.lane.b32.xlu0 %v656, 120
          %v662 = vpop.permute.xlu0 %661
          %v665 = vsub.f32 %v645, %v660
          %v666 = vsub.f32 %v646, %v662
          %669 = vrot.lane.b32.xlu0 %v639, 8
          %v670 = vpop.permute.xlu0 %669
          %671 = vrot.lane.b32.xlu0 %v640, 8
          %v672 = vpop.permute.xlu0 %671
          %v675 = vmul.f32 %v633, %v670
          %v676 = vmul.f32 %v635, %v672
          %v677 = vmul.f32 %v633, %v643
          %v678 = vmul.f32 %v635, %v644
          %681 = vrot.lane.b32.xlu0 %v677, 8
          %v682 = vpop.permute.xlu0 %681
          %683 = vrot.lane.b32.xlu0 %v678, 8
          %v684 = vpop.permute.xlu0 %683
          %v687 = vadd.f32 %v675, %v682
          %v688 = vadd.f32 %v676, %v684
          %vm689 = vcmask 64512
          %v690 = vsel %vm689, %v665, %v687
          %v691 = vsel %vm689, %v666, %v688
          %vm692 = vcmask 130048
          %v693 = vsel %vm692, %v690, %v633
          %v694 = vsel %vm692, %v691, %v635
          %695 = vrot.lane.b32.xlu0 %v639, 32
          %v696 = vpop.permute.xlu0 %695
          %697 = vrot.lane.b32.xlu0 %v640, 32
          %v698 = vpop.permute.xlu0 %697
          %v701 = vmul.f32 %v633, %v696
          %v702 = vmul.f32 %v635, %v698
          %703 = vrot.lane.b32.xlu0 %v643, 40
          %v704 = vpop.permute.xlu0 %703
          %705 = vrot.lane.b32.xlu0 %v644, 40
          %v706 = vpop.permute.xlu0 %705
          %v709 = vmul.f32 %v633, %v704
          %v710 = vmul.f32 %v635, %v706
          %713 = vrot.lane.b32.xlu0 %v709, 120
          %v714 = vpop.permute.xlu0 %713
          %715 = vrot.lane.b32.xlu0 %v710, 120
          %v716 = vpop.permute.xlu0 %715
          %v719 = vsub.f32 %v701, %v714
          %v720 = vsub.f32 %v702, %v716
          %721 = vrot.lane.b32.xlu0 %v639, 40
          %v722 = vpop.permute.xlu0 %721
          %723 = vrot.lane.b32.xlu0 %v640, 40
          %v724 = vpop.permute.xlu0 %723
          %v727 = vmul.f32 %v633, %v722
          %v728 = vmul.f32 %v635, %v724
          %729 = vrot.lane.b32.xlu0 %v643, 32
          %v730 = vpop.permute.xlu0 %729
          %731 = vrot.lane.b32.xlu0 %v644, 32
          %v732 = vpop.permute.xlu0 %731
          %v735 = vmul.f32 %v633, %v730
          %v736 = vmul.f32 %v635, %v732
          %739 = vrot.lane.b32.xlu0 %v735, 8
          %v740 = vpop.permute.xlu0 %739
          %741 = vrot.lane.b32.xlu0 %v736, 8
          %v742 = vpop.permute.xlu0 %741
          %v745 = vadd.f32 %v727, %v740
          %v746 = vadd.f32 %v728, %v742
          %749 = vrot.lane.b32.xlu0 %v719, 96
          %v750 = vpop.permute.xlu0 %749
          %751 = vrot.lane.b32.xlu0 %v720, 96
          %v752 = vpop.permute.xlu0 %751
          %757 = vrot.lane.b32.xlu0 %v745, 96
          %v758 = vpop.permute.xlu0 %757
          %759 = vrot.lane.b32.xlu0 %v746, 96
          %v760 = vpop.permute.xlu0 %759
          %765 = vrot.lane.b32.xlu0 %v633, 96
          %v766 = vpop.permute.xlu0 %765
          %767 = vrot.lane.b32.xlu0 %v635, 96
          %v768 = vpop.permute.xlu0 %767
          %v771 = vsel %vm689, %v750, %v758
          %v772 = vsel %vm689, %v752, %v760
          %v773 = vsel %vm692, %v771, %v766
          %v774 = vsel %vm692, %v772, %v768
          %775 = vrot.lane.b32.xlu0 %v639, 64
          %v776 = vpop.permute.xlu0 %775
          %777 = vrot.lane.b32.xlu0 %v640, 64
          %v778 = vpop.permute.xlu0 %777
          %v781 = vmul.f32 %v633, %v776
          %v782 = vmul.f32 %v635, %v778
          %783 = vrot.lane.b32.xlu0 %v643, 72
          %v784 = vpop.permute.xlu0 %783
          %785 = vrot.lane.b32.xlu0 %v644, 72
          %v786 = vpop.permute.xlu0 %785
          %v789 = vmul.f32 %v633, %v784
          %v790 = vmul.f32 %v635, %v786
          %793 = vrot.lane.b32.xlu0 %v789, 120
          %v794 = vpop.permute.xlu0 %793
          %795 = vrot.lane.b32.xlu0 %v790, 120
          %v796 = vpop.permute.xlu0 %795
          %v799 = vsub.f32 %v781, %v794
          %v800 = vsub.f32 %v782, %v796
          %801 = vrot.lane.b32.xlu0 %v639, 72
          %v802 = vpop.permute.xlu0 %801
          %803 = vrot.lane.b32.xlu0 %v640, 72
          %v804 = vpop.permute.xlu0 %803
          %v807 = vmul.f32 %v633, %v802
          %v808 = vmul.f32 %v635, %v804
          %809 = vrot.lane.b32.xlu0 %v643, 64
          %v810 = vpop.permute.xlu0 %809
          %811 = vrot.lane.b32.xlu0 %v644, 64
          %v812 = vpop.permute.xlu0 %811
          %v815 = vmul.f32 %v633, %v810
          %v816 = vmul.f32 %v635, %v812
          %819 = vrot.lane.b32.xlu0 %v815, 8
          %v820 = vpop.permute.xlu0 %819
          %821 = vrot.lane.b32.xlu0 %v816, 8
          %v822 = vpop.permute.xlu0 %821
          %v825 = vadd.f32 %v807, %v820
          %v826 = vadd.f32 %v808, %v822
          %829 = vrot.lane.b32.xlu0 %v799, 64
          %v830 = vpop.permute.xlu0 %829
          %831 = vrot.lane.b32.xlu0 %v800, 64
          %v832 = vpop.permute.xlu0 %831
          %837 = vrot.lane.b32.xlu0 %v825, 64
          %v838 = vpop.permute.xlu0 %837
          %839 = vrot.lane.b32.xlu0 %v826, 64
          %v840 = vpop.permute.xlu0 %839
          %843 = vrot.lane.b32.xlu0 %v633, 64
          %v844 = vpop.permute.xlu0 %843
          %845 = vrot.lane.b32.xlu0 %v635, 64
          %v846 = vpop.permute.xlu0 %845
          %v849 = vsel %vm689, %v830, %v838
          %v850 = vsel %vm689, %v832, %v840
          %v851 = vsel %vm692, %v849, %v844
          %v852 = vsel %vm692, %v850, %v846
          %853 = vrot.lane.b32.xlu0 %v639, 96
          %v854 = vpop.permute.xlu0 %853
          %855 = vrot.lane.b32.xlu0 %v640, 96
          %v856 = vpop.permute.xlu0 %855
          %v859 = vmul.f32 %v633, %v854
          %v860 = vmul.f32 %v635, %v856
          %861 = vrot.lane.b32.xlu0 %v643, 104
          %v862 = vpop.permute.xlu0 %861
          %863 = vrot.lane.b32.xlu0 %v644, 104
          %v864 = vpop.permute.xlu0 %863
          %v867 = vmul.f32 %v633, %v862
          %v868 = vmul.f32 %v635, %v864
          %871 = vrot.lane.b32.xlu0 %v867, 120
          %v872 = vpop.permute.xlu0 %871
          %873 = vrot.lane.b32.xlu0 %v868, 120
          %v874 = vpop.permute.xlu0 %873
          %v877 = vsub.f32 %v859, %v872
          %v878 = vsub.f32 %v860, %v874
          %879 = vrot.lane.b32.xlu0 %v639, 104
          %v880 = vpop.permute.xlu0 %879
          %881 = vrot.lane.b32.xlu0 %v640, 104
          %v882 = vpop.permute.xlu0 %881
          %v885 = vmul.f32 %v633, %v880
          %v886 = vmul.f32 %v635, %v882
          %887 = vrot.lane.b32.xlu0 %v643, 96
          %v888 = vpop.permute.xlu0 %887
          %889 = vrot.lane.b32.xlu0 %v644, 96
          %v890 = vpop.permute.xlu0 %889
          %v893 = vmul.f32 %v633, %v888
          %v894 = vmul.f32 %v635, %v890
          %897 = vrot.lane.b32.xlu0 %v893, 8
          %v898 = vpop.permute.xlu0 %897
          %899 = vrot.lane.b32.xlu0 %v894, 8
          %v900 = vpop.permute.xlu0 %899
          %v903 = vadd.f32 %v885, %v898
          %v904 = vadd.f32 %v886, %v900
          %907 = vrot.lane.b32.xlu0 %v877, 32
          %v908 = vpop.permute.xlu0 %907
          %909 = vrot.lane.b32.xlu0 %v878, 32
          %v910 = vpop.permute.xlu0 %909
          %915 = vrot.lane.b32.xlu0 %v903, 32
          %v916 = vpop.permute.xlu0 %915
          %917 = vrot.lane.b32.xlu0 %v904, 32
          %v918 = vpop.permute.xlu0 %917
          %921 = vrot.lane.b32.xlu0 %v633, 32
          %v922 = vpop.permute.xlu0 %921
          %923 = vrot.lane.b32.xlu0 %v635, 32
          %v924 = vpop.permute.xlu0 %923
          %v927 = vsel %vm689, %v908, %v916
          %v928 = vsel %vm689, %v910, %v918
          %v929 = vsel %vm692, %v927, %v922
          %v930 = vsel %vm692, %v928, %v924
          %933 = vrot.lane.b32.xlu0 %v773, 32
          %v934 = vpop.permute.xlu0 %933
          %935 = vrot.lane.b32.xlu0 %v774, 32
          %v936 = vpop.permute.xlu0 %935
          %941 = vrot.lane.b32.xlu0 %v851, 64
          %v942 = vpop.permute.xlu0 %941
          %943 = vrot.lane.b32.xlu0 %v852, 64
          %v944 = vpop.permute.xlu0 %943
          %949 = vrot.lane.b32.xlu0 %v929, 96
          %v950 = vpop.permute.xlu0 %949
          %951 = vrot.lane.b32.xlu0 %v930, 96
          %v952 = vpop.permute.xlu0 %951
          %vm955 = vcmask 261120
          %v956 = vsel %vm955, %v693, %v934
          %v957 = vsel %vm955, %v694, %v936
          %vm958 = vcmask 523264
          %v959 = vsel %vm958, %v956, %v942
          %v960 = vsel %vm958, %v957, %v944
          %vm961 = vcmask 785408
          %v962 = vsel %vm961, %v959, %v950
          %v963 = vsel %vm961, %v960, %v952
          %v964 = vpack.c.bf16 %v962, %v962
          %v965 = vpack.c.bf16 %v963, %v963
          %966 = vst [vmem:[%s386] sm:$0xf] %v964
          %967 = vst [vmem:[%s386 + $0x4] sm:$0xf] %v965
          %v968 = vmul.f32 %v634, %v639
          %v969 = vmul.f32 %v636, %v640
          %v970 = vmul.f32 %v634, %v650
          %v971 = vmul.f32 %v636, %v652
          %974 = vrot.lane.b32.xlu0 %v970, 120
          %v975 = vpop.permute.xlu0 %974
          %976 = vrot.lane.b32.xlu0 %v971, 120
          %v977 = vpop.permute.xlu0 %976
          %v980 = vsub.f32 %v968, %v975
          %v981 = vsub.f32 %v969, %v977
          %v982 = vmul.f32 %v634, %v670
          %v983 = vmul.f32 %v636, %v672
          %v984 = vmul.f32 %v634, %v643
          %v985 = vmul.f32 %v636, %v644
          %988 = vrot.lane.b32.xlu0 %v984, 8
          %v989 = vpop.permute.xlu0 %988
          %990 = vrot.lane.b32.xlu0 %v985, 8
          %v991 = vpop.permute.xlu0 %990
          %v994 = vadd.f32 %v982, %v989
          %v995 = vadd.f32 %v983, %v991
          %v996 = vsel %vm689, %v980, %v994
          %v997 = vsel %vm689, %v981, %v995
          %v998 = vsel %vm692, %v996, %v634
          %v999 = vsel %vm692, %v997, %v636
          %v1000 = vmul.f32 %v634, %v696
          %v1001 = vmul.f32 %v636, %v698
          %v1002 = vmul.f32 %v634, %v704
          %v1003 = vmul.f32 %v636, %v706
          %1006 = vrot.lane.b32.xlu0 %v1002, 120
          %v1007 = vpop.permute.xlu0 %1006
          %1008 = vrot.lane.b32.xlu0 %v1003, 120
          %v1009 = vpop.permute.xlu0 %1008
          %v1012 = vsub.f32 %v1000, %v1007
          %v1013 = vsub.f32 %v1001, %v1009
          %v1014 = vmul.f32 %v634, %v722
          %v1015 = vmul.f32 %v636, %v724
          %v1016 = vmul.f32 %v634, %v730
          %v1017 = vmul.f32 %v636, %v732
          %1020 = vrot.lane.b32.xlu0 %v1016, 8
          %v1021 = vpop.permute.xlu0 %1020
          %1022 = vrot.lane.b32.xlu0 %v1017, 8
          %v1023 = vpop.permute.xlu0 %1022
          %v1026 = vadd.f32 %v1014, %v1021
          %v1027 = vadd.f32 %v1015, %v1023
          %1030 = vrot.lane.b32.xlu0 %v1012, 96
          %v1031 = vpop.permute.xlu0 %1030
          %1032 = vrot.lane.b32.xlu0 %v1013, 96
          %v1033 = vpop.permute.xlu0 %1032
          %1038 = vrot.lane.b32.xlu0 %v1026, 96
          %v1039 = vpop.permute.xlu0 %1038
          %1040 = vrot.lane.b32.xlu0 %v1027, 96
          %v1041 = vpop.permute.xlu0 %1040
          %1046 = vrot.lane.b32.xlu0 %v634, 96
          %v1047 = vpop.permute.xlu0 %1046
          %1048 = vrot.lane.b32.xlu0 %v636, 96
          %v1049 = vpop.permute.xlu0 %1048
          %v1052 = vsel %vm689, %v1031, %v1039
          %v1053 = vsel %vm689, %v1033, %v1041
          %v1054 = vsel %vm692, %v1052, %v1047
          %v1055 = vsel %vm692, %v1053, %v1049
          %1058 = vrot.lane.b32.xlu0 %v1054, 32
          %v1059 = vpop.permute.xlu0 %1058
          %1060 = vrot.lane.b32.xlu0 %v1055, 32
          %v1061 = vpop.permute.xlu0 %1060
          %v1064 = vsel %vm955, %v998, %v1059
          %v1065 = vsel %vm955, %v999, %v1061
          %v1066 = vpack.c.bf16 %v1064, %v1064
          %v1067 = vpack.c.bf16 %v1065, %v1065
          %vm1068 = vcmask 519168
          %1069 = vst.msk [vmem:[%s392] sm:$0xf] %vm1068, %v1066
          %1070 = vst.msk [vmem:[%s392 + $0x4] sm:$0xf] %vm1068, %v1067
          %v1071 = vpack.c.bf16 %v634, %v634
          %v1072 = vpack.c.bf16 %v636, %v636
          %1075 = vrot.lane.b32.xlu0 %v1071, 64
          %v1076 = vpop.permute.xlu0 %1075
          %1077 = vrot.lane.b32.xlu0 %v1072, 64
          %v1078 = vpop.permute.xlu0 %1077
          %1081 = vst.msk [vmem:[%s398] sm:$0xf] %vm1068, %v1076
          %1082 = vst.msk [vmem:[%s398 + $0x4] sm:$0xf] %vm1068, %v1078
        $region56: #{_lambda_.7} parent=43 // pred_fallthru
          _
        %s1083 = smul.u32 2, %s25
        %p1084 = scmp.lt.s32.totalorder %s1083, 3
        %s1085 = scalar_select %p1084, %s1083, 3
        %s1086 = smul.addr %s1085, 4
        %s1087 = scalar_lea.vmem %s6, %s1086
        %s1088 = smul.u32 2, %s25
        %p1089 = scmp.lt.s32.totalorder %s1088, 3
        %s1090 = scalar_select %p1089, %s1088, 3
        %s1091 = smul.addr %s1090, 4
        %s1092 = scalar_lea.vmem %s7, %s1091
        %s1093 = smul.u32 2, %s25
        %p1094 = scmp.lt.s32.totalorder %s1093, 3
        %s1095 = scalar_select %p1094, %s1093, 3
        %s1096 = smul.addr %s1095, 4
        %s1097 = scalar_lea.vmem %s8, %s1096
        // Predicated region
        $region57: #{_lambda_.7} parent=43 // pred_check
          %p1098 = pneg %p194
        $region58: #{_lambda_.7} parent=43 // pred_check_branch
          %1100 = sbr.rel (%p1098) target = $region60
        $region59: #{_lambda_.7} parent=43 // pred_region
          %s1101 = smul.u32 2, %s25
        $region60: #{_lambda_.7} parent=43 // pred_fallthru
          _
        // Predicated region
        $region61: #{_lambda_.7} parent=43 // pred_check
          %p1102 = pneg %p220
        $region62: #{_lambda_.7} parent=43 // pred_check_branch
          %1104 = sbr.rel (%p1102) target = $region64
        $region63: #{_lambda_.7} parent=43 // pred_region
          %s1105 = smul.u32 2, %s25
        $region64: #{_lambda_.7} parent=43 // pred_fallthru
          _
        // Predicated region
        $region65: #{_lambda_.7} parent=43 // pred_check
          %p1106 = pneg %p246
        $region66: #{_lambda_.7} parent=43 // pred_check_branch
          %1108 = sbr.rel (%p1106) target = $region68
        $region67: #{_lambda_.7} parent=43 // pred_region
          %s1109 = smul.u32 2, %s25
        $region68: #{_lambda_.7} parent=43 // pred_fallthru
          _
      $region44: #{_lambda_.7} parent=5 // pred_fallthru
        _
      %p1110 = scmp.le.s32.totalorder 2, %s16
      // Predicated region
      $region69: #{_lambda_.7} parent=5 // pred_check
        %p1111 = pneg %p1110
      $region70: #{_lambda_.7} parent=5 // pred_check_branch
        %1113 = sbr.rel (%p1111) target = $region72
      $region71: #{_lambda_.7} parent=5 // pred_region
        %s1114 = ssub.s32 %s16, 2
        // Predicated region
        $region73: #{_lambda_.7} parent=71 // pred_check
          %p1115 = pneg %p200
        $region74: #{_lambda_.7} parent=71 // pred_check_branch
          %1117 = sbr.rel (%p1115) target = $region76
        $region75: #{_lambda_.7} parent=71 // pred_region
          %s1118 = smul.u32 2, %s27
          %p1119 = scmp.lt.s32.totalorder %s1118, 3
          %s1120 = scalar_select %p1119, %s1118, 3
          %s1121 = smul.addr %s1120, 4
          %s1122 = scalar_lea.vmem %s6, %s1121
        $region76: #{_lambda_.7} parent=71 // pred_fallthru
          _
        // Predicated region
        $region77: #{_lambda_.7} parent=71 // pred_check
          %p1123 = pneg %p226
        $region78: #{_lambda_.7} parent=71 // pred_check_branch
          %1125 = sbr.rel (%p1123) target = $region80
        $region79: #{_lambda_.7} parent=71 // pred_region
          %s1126 = smul.u32 2, %s27
          %p1127 = scmp.lt.s32.totalorder %s1126, 3
          %s1128 = scalar_select %p1127, %s1126, 3
          %s1129 = smul.addr %s1128, 4
          %s1130 = scalar_lea.vmem %s7, %s1129
        $region80: #{_lambda_.7} parent=71 // pred_fallthru
          _
        // Predicated region
        $region81: #{_lambda_.7} parent=71 // pred_check
          %p1131 = pneg %p252
        $region82: #{_lambda_.7} parent=71 // pred_check_branch
          %1133 = sbr.rel (%p1131) target = $region84
        $region83: #{_lambda_.7} parent=71 // pred_region
          %s1134 = smul.u32 2, %s27
          %p1135 = scmp.lt.s32.totalorder %s1134, 3
          %s1136 = scalar_select %p1135, %s1134, 3
          %s1137 = smul.addr %s1136, 4
          %s1138 = scalar_lea.vmem %s8, %s1137
        $region84: #{_lambda_.7} parent=71 // pred_fallthru
          _
      $region72: #{_lambda_.7} parent=5 // pred_fallthru
        _
    $region6: #{_lambda_.7} parent=1 // loop_footer
      %s20 = sadd.s32 1, %s16
    $region7: #{_lambda_.7} parent=1 // loop_footer_branch
      %15 = sbr.rel target = $region3
    $region8: #{_lambda_.7} parent=1 // loop_exit
      _
    %1139 = vsyncpa [#allocation5], 1
    %s1140 = scalar_lea.sflag [#allocation5], 1
    %1141 = vsyncpa %s1140, 1

// kernel: _lambda_.9
$region0: #{_lambda_.9}
  #allocation0 [shape = 'u32[]', space=smem, size = 0x4, offset = 0x4, fixed_abs, tag = 'smem constant byte address 0x4 - core index']
  #allocation1 [shape = 'u32[72,128]{1,0:T(1,128)}', space=vmem, size = 0x9000, scoped, tag = 'internal scratch']
  %s0 = inlined_call_operand.vmem [shape: bf16[32,128], index: 0, kind: input, shape index: {}]
  %s1 = inlined_call_operand.vmem [shape: bf16[32,128], index: 1, kind: input, shape index: {}]
  %s2 = inlined_call_operand.vmem [shape: bf16[128,128], index: 2, kind: input, shape index: {}]
  %s3 = inlined_call_operand.vmem [shape: bf16[1,128], index: 3, kind: input, shape index: {}]
  %s4 = inlined_call_operand.vmem [shape: bf16[128,256], index: 4, kind: input, shape index: {}]
  %s5 = inlined_call_operand.vmem [shape: bf16[128,128], index: 5, kind: input, shape index: {}]
  %s6 = inlined_call_operand.vmem [shape: bf16[32,128], index: 6, kind: output, shape index: {}]
  %s7 = sld [smem:[#allocation0]]
  $region34: #{_lambda_.9} parent=0
    _
  %s9 = ssub.s32 1, %s7
  %s10 = scalar_select 0, %s9, %s7
  // Predicated region
  $region2: #{_lambda_.9} parent=0 // pred_check
    _
  $region3: #{_lambda_.9} parent=0 // pred_check_branch
    %12 = sbr.rel (0) target = $region5
  $region4: #{_lambda_.9} parent=0 // pred_region
    _
  $region5: #{_lambda_.9} parent=0 // pred_fallthru
    _
  // Predicated region
  $region6: #{_lambda_.9} parent=0 // pred_check
    _
  $region7: #{_lambda_.9} parent=0 // pred_check_branch
    %14 = sbr.rel (0) target = $region9
  $region8: #{_lambda_.9} parent=0 // pred_region
    _
  $region9: #{_lambda_.9} parent=0 // pred_fallthru
    _
  // Predicated region
  $region10: #{_lambda_.9} parent=0 // pred_check
    _
  $region11: #{_lambda_.9} parent=0 // pred_check_branch
    %16 = sbr.rel (0) target = $region13
  $region12: #{_lambda_.9} parent=0 // pred_region
    _
  $region13: #{_lambda_.9} parent=0 // pred_fallthru
    _
  // Predicated region
  $region14: #{_lambda_.9} parent=0 // pred_check
    _
  $region15: #{_lambda_.9} parent=0 // pred_check_branch
    %18 = sbr.rel (0) target = $region17
  $region16: #{_lambda_.9} parent=0 // pred_region
    _
  $region17: #{_lambda_.9} parent=0 // pred_fallthru
    _
  // Predicated region
  $region18: #{_lambda_.9} parent=0 // pred_check
    _
  $region19: #{_lambda_.9} parent=0 // pred_check_branch
    %20 = sbr.rel (0) target = $region21
  $region20: #{_lambda_.9} parent=0 // pred_region
    _
  $region21: #{_lambda_.9} parent=0 // pred_fallthru
    _
  // Predicated region
  $region22: #{_lambda_.9} parent=0 // pred_check
    _
  $region23: #{_lambda_.9} parent=0 // pred_check_branch
    %22 = sbr.rel (0) target = $region25
  $region24: #{_lambda_.9} parent=0 // pred_region
    _
  $region25: #{_lambda_.9} parent=0 // pred_fallthru
    _
  %v23 = vld [vmem:[%s0] sm:$0xf]
  %v24 = vld [vmem:[%s0 + $0x4] sm:$0xf]
  %v25 = vld [vmem:[%s0 + $0x8] sm:$0xf]
  %v26 = vld [vmem:[%s0 + $0xc] sm:$0xf]
  %v27 = vld [vmem:[%s2] sm:$0xf]
  %v28 = vld [vmem:[%s2 + $0x4] sm:$0xf]
  %v29 = vld [vmem:[%s2 + $0x8] sm:$0xf]
  %v30 = vld [vmem:[%s2 + $0xc] sm:$0xf]
  %v31 = vld [vmem:[%s2 + $0x10] sm:$0xf]
  %v32 = vld [vmem:[%s2 + $0x14] sm:$0xf]
  %v33 = vld [vmem:[%s2 + $0x18] sm:$0xf]
  %v34 = vld [vmem:[%s2 + $0x1c] sm:$0xf]
  %v35 = vld [vmem:[%s2 + $0x20] sm:$0xf]
  %v36 = vld [vmem:[%s2 + $0x24] sm:$0xf]
  %v37 = vld [vmem:[%s2 + $0x28] sm:$0xf]
  %v38 = vld [vmem:[%s2 + $0x2c] sm:$0xf]
  %v39 = vld [vmem:[%s2 + $0x30] sm:$0xf]
  %v40 = vld [vmem:[%s2 + $0x34] sm:$0xf]
  %v41 = vld [vmem:[%s2 + $0x38] sm:$0xf]
  %v42 = vld [vmem:[%s2 + $0x3c] sm:$0xf]
  %v47 = vunpack.c.l.b16 %v23
  %v48 = vunpack.c.l.b16 %v24
  %v49 = vunpack.c.l.b16 %v25
  %v50 = vunpack.c.l.b16 %v26
  %v51 = vpack.c.b16 %v48, %v47
  %v52 = vpack.c.b16 %v50, %v49
  %v71 = vunpack.c.l.b16 %v27
  %v72 = vunpack.c.l.b16 %v28
  %v73 = vunpack.c.l.b16 %v29
  %v74 = vunpack.c.l.b16 %v30
  %v75 = vunpack.c.l.b16 %v31
  %v76 = vunpack.c.l.b16 %v32
  %v77 = vunpack.c.l.b16 %v33
  %v78 = vunpack.c.l.b16 %v34
  %v79 = vunpack.c.l.b16 %v35
  %v80 = vunpack.c.l.b16 %v36
  %v81 = vunpack.c.l.b16 %v37
  %v82 = vunpack.c.l.b16 %v38
  %v83 = vunpack.c.l.b16 %v39
  %v84 = vunpack.c.l.b16 %v40
  %v85 = vunpack.c.l.b16 %v41
  %v86 = vunpack.c.l.b16 %v42
  %v87 = vpack.c.b16 %v72, %v71
  %v88 = vpack.c.b16 %v74, %v73
  %v89 = vpack.c.b16 %v76, %v75
  %v90 = vpack.c.b16 %v78, %v77
  %v91 = vpack.c.b16 %v80, %v79
  %v92 = vpack.c.b16 %v82, %v81
  %v93 = vpack.c.b16 %v84, %v83
  %v94 = vpack.c.b16 %v86, %v85
  %103 = vmatpush.bf16.msra.mxu0 %v94
  %104 = vmatpush.bf16.msra.mxu0 %v93
  %105 = vmatpush.bf16.msra.mxu0 %v92
  %106 = vmatpush.bf16.msra.mxu0 %v91
  %107 = vmatpush.bf16.msra.mxu0 %v90
  %108 = vmatpush.bf16.msra.mxu0 %v89
  %109 = vmatpush.bf16.msra.mxu0 %v88
  %110 = vmatpush.bf16.msra.mxu0 %v87
  %111 = vmatmul.bf16.gmra.mxu0 %v51
  %v112 = vpop.f32.mrf.mxu0
  %v113 = vadd.f32 0.0, %v112
  %v114 = vpop.f32.mrf.mxu0
  %v115 = vadd.f32 0.0, %v114
  %116 = vmatmul.bf16.gmra.mxu0 %v52
  %v117 = vpop.f32.mrf.mxu0
  %v118 = vadd.f32 0.0, %v117
  %v119 = vpop.f32.mrf.mxu0
  %v120 = vadd.f32 0.0, %v119
  %121 = vdwg.mxu0
  %v122 = vld [vmem:[%s1] sm:$0xf]
  %v123 = vld [vmem:[%s1 + $0x4] sm:$0xf]
  %v124 = vld [vmem:[%s1 + $0x8] sm:$0xf]
  %v125 = vld [vmem:[%s1 + $0xc] sm:$0xf]
  %v126 = vunpack.c.l.bf16 %v122
  %v127 = vunpack.c.l.bf16 %v123
  %v128 = vunpack.c.l.bf16 %v124
  %v129 = vunpack.c.l.bf16 %v125
  %v130 = vadd.f32 %v126, %v113
  %v131 = vadd.f32 %v127, %v115
  %v132 = vadd.f32 %v128, %v118
  %v133 = vadd.f32 %v129, %v120
  %v134 = vmul.f32 %v130, %v130
  %v135 = vmul.f32 %v131, %v131
  %v136 = vmul.f32 %v132, %v132
  %v137 = vmul.f32 %v133, %v133
  %138 = vadd.xlane.f32.xlu0 %v134
  %v139 = vpop.xlane.xlu0 %138
  %140 = vadd.xlane.f32.xlu0 %v135
  %v141 = vpop.xlane.xlu0 %140
  %142 = vadd.xlane.f32.xlu0 %v136
  %v143 = vpop.xlane.xlu0 %142
  %144 = vadd.xlane.f32.xlu0 %v137
  %v145 = vpop.xlane.xlu0 %144
  %v146 = vrcp.pop 128.0
  %v147 = vmul.f32 128.0, %v146
  %v148 = vsub.f32 1.0, %v147
  %v149 = vmul.f32 %v146, %v148
  %v150 = vadd.f32 %v146, %v149
  %vm151 = vweird.f32 %v146
  %v152 = vsel %vm151, %v146, %v150
  %v153 = vmul.f32 %v139, %v152
  %v154 = vmul.f32 %v141, %v152
  %v155 = vmul.f32 %v143, %v152
  %v156 = vmul.f32 %v145, %v152
  %v157 = vadd.f32 %v153, 1e-05
  %v158 = vadd.f32 %v154, 1e-05
  %v159 = vadd.f32 %v155, 1e-05
  %v160 = vadd.f32 %v156, 1e-05
  %v161 = vrsqrt.pop %v157
  %v162 = vmul.f32 %v161, %v157
  %v163 = vmul.f32 %v162, %v161
  %v164 = vmul.f32 0.5, %v163
  %v165 = vsub.f32 1.5, %v164
  %v166 = vmul.f32 %v161, %v165
  %vm167 = vweird.f32 %v157
  %vm168 = vweird.f32 %v161
  %vm169 = vmor %vm167, %vm168
  %v170 = vsel %vm169, %v161, %v166
  %v171 = vrsqrt.pop %v158
  %v172 = vmul.f32 %v171, %v158
  %v173 = vmul.f32 %v172, %v171
  %v174 = vmul.f32 0.5, %v173
  %v175 = vsub.f32 1.5, %v174
  %v176 = vmul.f32 %v171, %v175
  %vm177 = vweird.f32 %v158
  %vm178 = vweird.f32 %v171
  %vm179 = vmor %vm177, %vm178
  %v180 = vsel %vm179, %v171, %v176
  %v181 = vrsqrt.pop %v159
  %v182 = vmul.f32 %v181, %v159
  %v183 = vmul.f32 %v182, %v181
  %v184 = vmul.f32 0.5, %v183
  %v185 = vsub.f32 1.5, %v184
  %v186 = vmul.f32 %v181, %v185
  %vm187 = vweird.f32 %v159
  %vm188 = vweird.f32 %v181
  %vm189 = vmor %vm187, %vm188
  %v190 = vsel %vm189, %v181, %v186
  %v191 = vrsqrt.pop %v160
  %v192 = vmul.f32 %v191, %v160
  %v193 = vmul.f32 %v192, %v191
  %v194 = vmul.f32 0.5, %v193
  %v195 = vsub.f32 1.5, %v194
  %v196 = vmul.f32 %v191, %v195
  %vm197 = vweird.f32 %v160
  %vm198 = vweird.f32 %v191
  %vm199 = vmor %vm197, %vm198
  %v200 = vsel %vm199, %v191, %v196
  %v201 = vmul.f32 %v130, %v170
  %v202 = vmul.f32 %v131, %v180
  %v203 = vmul.f32 %v132, %v190
  %v204 = vmul.f32 %v133, %v200
  %v205 = vld [vmem:[%s3] sm:$0x1]
  %v206 = vunpack.c.l.bf16 %v205
  %v207 = vperm.slane %v206, 0
  %v208 = vmul.f32 %v201, %v207
  %v209 = vmul.f32 %v202, %v207
  %v210 = vmul.f32 %v203, %v207
  %v211 = vmul.f32 %v204, %v207
  %v212 = vpack.c.bf16 %v209, %v208
  %v213 = vpack.c.bf16 %v211, %v210
  %v214 = vld [vmem:[%s4] sm:$0xff]
  %v215 = vld [vmem:[%s4 + $0x8] sm:$0xff]
  %v216 = vld [vmem:[%s4 + $0x10] sm:$0xff]
  %v217 = vld [vmem:[%s4 + $0x18] sm:$0xff]
  %v218 = vld [vmem:[%s4 + $0x20] sm:$0xff]
  %v219 = vld [vmem:[%s4 + $0x28] sm:$0xff]
  %v220 = vld [vmem:[%s4 + $0x30] sm:$0xff]
  %v221 = vld [vmem:[%s4 + $0x38] sm:$0xff]
  %v222 = vld [vmem:[%s4 + $0x40] sm:$0xff]
  %v223 = vld [vmem:[%s4 + $0x48] sm:$0xff]
  %v224 = vld [vmem:[%s4 + $0x50] sm:$0xff]
  %v225 = vld [vmem:[%s4 + $0x58] sm:$0xff]
  %v226 = vld [vmem:[%s4 + $0x60] sm:$0xff]
  %v227 = vld [vmem:[%s4 + $0x68] sm:$0xff]
  %v228 = vld [vmem:[%s4 + $0x70] sm:$0xff]
  %v229 = vld [vmem:[%s4 + $0x78] sm:$0xff]
  %v246 = vunpack.c.l.b16 %v214
  %v247 = vunpack.c.h.b16 %v214
  %v248 = vunpack.c.l.b16 %v215
  %v249 = vunpack.c.h.b16 %v215
  %v250 = vunpack.c.l.b16 %v216
  %v251 = vunpack.c.h.b16 %v216
  %v252 = vunpack.c.l.b16 %v217
  %v253 = vunpack.c.h.b16 %v217
  %v254 = vunpack.c.l.b16 %v218
  %v255 = vunpack.c.h.b16 %v218
  %v256 = vunpack.c.l.b16 %v219
  %v257 = vunpack.c.h.b16 %v219
  %v258 = vunpack.c.l.b16 %v220
  %v259 = vunpack.c.h.b16 %v220
  %v260 = vunpack.c.l.b16 %v221
  %v261 = vunpack.c.h.b16 %v221
  %v262 = vunpack.c.l.b16 %v222
  %v263 = vunpack.c.h.b16 %v222
  %v264 = vunpack.c.l.b16 %v223
  %v265 = vunpack.c.h.b16 %v223
  %v266 = vunpack.c.l.b16 %v224
  %v267 = vunpack.c.h.b16 %v224
  %v268 = vunpack.c.l.b16 %v225
  %v269 = vunpack.c.h.b16 %v225
  %v270 = vunpack.c.l.b16 %v226
  %v271 = vunpack.c.h.b16 %v226
  %v272 = vunpack.c.l.b16 %v227
  %v273 = vunpack.c.h.b16 %v227
  %v274 = vunpack.c.l.b16 %v228
  %v275 = vunpack.c.h.b16 %v228
  %v276 = vunpack.c.l.b16 %v229
  %v277 = vunpack.c.h.b16 %v229
  %v278 = vpack.c.b16 %v248, %v246
  %v279 = vpack.c.b16 %v249, %v247
  %v280 = vpack.c.b16 %v252, %v250
  %v281 = vpack.c.b16 %v253, %v251
  %v282 = vpack.c.b16 %v256, %v254
  %v283 = vpack.c.b16 %v257, %v255
  %v284 = vpack.c.b16 %v260, %v258
  %v285 = vpack.c.b16 %v261, %v259
  %v286 = vpack.c.b16 %v264, %v262
  %v287 = vpack.c.b16 %v265, %v263
  %v288 = vpack.c.b16 %v268, %v266
  %v289 = vpack.c.b16 %v269, %v267
  %v290 = vpack.c.b16 %v272, %v270
  %v291 = vpack.c.b16 %v273, %v271
  %v292 = vpack.c.b16 %v276, %v274
  %v293 = vpack.c.b16 %v277, %v275
  %310 = vmatpush.bf16.msra.mxu0 %v292
  %311 = vmatpush.bf16.msra.mxu0 %v290
  %312 = vmatpush.bf16.msra.mxu0 %v288
  %313 = vmatpush.bf16.msra.mxu0 %v286
  %314 = vmatpush.bf16.msra.mxu0 %v284
  %315 = vmatpush.bf16.msra.mxu0 %v282
  %316 = vmatpush.bf16.msra.mxu0 %v280
  %317 = vmatpush.bf16.msra.mxu0 %v278
  %318 = vmatmul.bf16.gmra.mxu0 %v212
  %v319 = vpop.f32.mrf.mxu0
  %v320 = vadd.f32 0.0, %v319
  %v321 = vpop.f32.mrf.mxu0
  %v322 = vadd.f32 0.0, %v321
  %323 = vmatmul.bf16.gmra.mxu0 %v213
  %v324 = vpop.f32.mrf.mxu0
  %v325 = vadd.f32 0.0, %v324
  %v326 = vpop.f32.mrf.mxu0
  %v327 = vadd.f32 0.0, %v326
  %328 = vdwg.mxu0
  %329 = vmatpush.bf16.msra.mxu0 %v293
  %330 = vmatpush.bf16.msra.mxu0 %v291
  %331 = vmatpush.bf16.msra.mxu0 %v289
  %332 = vmatpush.bf16.msra.mxu0 %v287
  %333 = vmatpush.bf16.msra.mxu0 %v285
  %334 = vmatpush.bf16.msra.mxu0 %v283
  %335 = vmatpush.bf16.msra.mxu0 %v281
  %336 = vmatpush.bf16.msra.mxu0 %v279
  %337 = vmatmul.bf16.gmra.mxu0 %v212
  %v338 = vpop.f32.mrf.mxu0
  %v339 = vadd.f32 0.0, %v338
  %v340 = vpop.f32.mrf.mxu0
  %v341 = vadd.f32 0.0, %v340
  %342 = vmatmul.bf16.gmra.mxu0 %v213
  %v343 = vpop.f32.mrf.mxu0
  %v344 = vadd.f32 0.0, %v343
  %v345 = vpop.f32.mrf.mxu0
  %v346 = vadd.f32 0.0, %v345
  %347 = vdwg.mxu0
  %v348 = vxor.u32 %v320, 2147483648
  %v349 = vxor.u32 %v322, 2147483648
  %v350 = vxor.u32 %v325, 2147483648
  %v351 = vxor.u32 %v327, 2147483648
  %v352 = vmul.f32 %v348, 1.442695
  %v353 = vpow.pop %v352
  %v354 = vmul.f32 %v349, 1.442695
  %v355 = vpow.pop %v354
  %v356 = vmul.f32 %v350, 1.442695
  %v357 = vpow.pop %v356
  %v358 = vmul.f32 %v351, 1.442695
  %v359 = vpow.pop %v358
  %v360 = vadd.f32 %v353, 1.0
  %v361 = vadd.f32 %v355, 1.0
  %v362 = vadd.f32 %v357, 1.0
  %v363 = vadd.f32 %v359, 1.0
  %v364 = vrcp.pop %v360
  %v365 = vmul.f32 %v360, %v364
  %v366 = vsub.f32 1.0, %v365
  %v367 = vmul.f32 %v364, %v366
  %v368 = vadd.f32 %v364, %v367
  %vm369 = vweird.f32 %v360
  %vm370 = vweird.f32 %v364
  %vm371 = vmor %vm369, %vm370
  %v372 = vsel %vm371, %v364, %v368
  %v373 = vand.u32 2147483647, %v360
  %vm374 = vcmp.eq.f32.partialorder %v373, 8.507059e+37
  %v375 = vand.u32 %v360, 2147483648
  %v376 = vor.u32 1.1754944e-38, %v375
  %v377 = vsel %vm374, %v376, %v372
  %v378 = vmul.f32 1.0, %v377
  %v379 = vrcp.pop %v361
  %v380 = vmul.f32 %v361, %v379
  %v381 = vsub.f32 1.0, %v380
  %v382 = vmul.f32 %v379, %v381
  %v383 = vadd.f32 %v379, %v382
  %vm384 = vweird.f32 %v361
  %vm385 = vweird.f32 %v379
  %vm386 = vmor %vm384, %vm385
  %v387 = vsel %vm386, %v379, %v383
  %v388 = vand.u32 2147483647, %v361
  %vm389 = vcmp.eq.f32.partialorder %v388, 8.507059e+37
  %v390 = vand.u32 %v361, 2147483648
  %v391 = vor.u32 1.1754944e-38, %v390
  %v392 = vsel %vm389, %v391, %v387
  %v393 = vmul.f32 1.0, %v392
  %v394 = vrcp.pop %v362
  %v395 = vmul.f32 %v362, %v394
  %v396 = vsub.f32 1.0, %v395
  %v397 = vmul.f32 %v394, %v396
  %v398 = vadd.f32 %v394, %v397
  %vm399 = vweird.f32 %v362
  %vm400 = vweird.f32 %v394
  %vm401 = vmor %vm399, %vm400
  %v402 = vsel %vm401, %v394, %v398
  %v403 = vand.u32 2147483647, %v362
  %vm404 = vcmp.eq.f32.partialorder %v403, 8.507059e+37
  %v405 = vand.u32 %v362, 2147483648
  %v406 = vor.u32 1.1754944e-38, %v405
  %v407 = vsel %vm404, %v406, %v402
  %v408 = vmul.f32 1.0, %v407
  %v409 = vrcp.pop %v363
  %v410 = vmul.f32 %v363, %v409
  %v411 = vsub.f32 1.0, %v410
  %v412 = vmul.f32 %v409, %v411
  %v413 = vadd.f32 %v409, %v412
  %vm414 = vweird.f32 %v363
  %vm415 = vweird.f32 %v409
  %vm416 = vmor %vm414, %vm415
  %v417 = vsel %vm416, %v409, %v413
  %v418 = vand.u32 2147483647, %v363
  %vm419 = vcmp.eq.f32.partialorder %v418, 8.507059e+37
  %v420 = vand.u32 %v363, 2147483648
  %v421 = vor.u32 1.1754944e-38, %v420
  %v422 = vsel %vm419, %v421, %v417
  %v423 = vmul.f32 1.0, %v422
  %v424 = vmul.f32 %v320, %v378
  %v425 = vmul.f32 %v322, %v393
  %v426 = vmul.f32 %v325, %v408
  %v427 = vmul.f32 %v327, %v423
  %v428 = vmul.f32 %v424, %v339
  %v429 = vmul.f32 %v425, %v341
  %v430 = vmul.f32 %v426, %v344
  %v431 = vmul.f32 %v427, %v346
  %v432 = vpack.c.bf16 %v429, %v428
  %v433 = vpack.c.bf16 %v431, %v430
  %v434 = vld [vmem:[%s5] sm:$0xf]
  %v435 = vld [vmem:[%s5 + $0x4] sm:$0xf]
  %v436 = vld [vmem:[%s5 + $0x8] sm:$0xf]
  %v437 = vld [vmem:[%s5 + $0xc] sm:$0xf]
  %v438 = vld [vmem:[%s5 + $0x10] sm:$0xf]
  %v439 = vld [vmem:[%s5 + $0x14] sm:$0xf]
  %v440 = vld [vmem:[%s5 + $0x18] sm:$0xf]
  %v441 = vld [vmem:[%s5 + $0x1c] sm:$0xf]
  %v442 = vld [vmem:[%s5 + $0x20] sm:$0xf]
  %v443 = vld [vmem:[%s5 + $0x24] sm:$0xf]
  %v444 = vld [vmem:[%s5 + $0x28] sm:$0xf]
  %v445 = vld [vmem:[%s5 + $0x2c] sm:$0xf]
  %v446 = vld [vmem:[%s5 + $0x30] sm:$0xf]
  %v447 = vld [vmem:[%s5 + $0x34] sm:$0xf]
  %v448 = vld [vmem:[%s5 + $0x38] sm:$0xf]
  %v449 = vld [vmem:[%s5 + $0x3c] sm:$0xf]
  %v466 = vunpack.c.l.b16 %v434
  %v467 = vunpack.c.l.b16 %v435
  %v468 = vunpack.c.l.b16 %v436
  %v469 = vunpack.c.l.b16 %v437
  %v470 = vunpack.c.l.b16 %v438
  %v471 = vunpack.c.l.b16 %v439
  %v472 = vunpack.c.l.b16 %v440
  %v473 = vunpack.c.l.b16 %v441
  %v474 = vunpack.c.l.b16 %v442
  %v475 = vunpack.c.l.b16 %v443
  %v476 = vunpack.c.l.b16 %v444
  %v477 = vunpack.c.l.b16 %v445
  %v478 = vunpack.c.l.b16 %v446
  %v479 = vunpack.c.l.b16 %v447
  %v480 = vunpack.c.l.b16 %v448
  %v481 = vunpack.c.l.b16 %v449
  %v482 = vpack.c.b16 %v467, %v466
  %v483 = vpack.c.b16 %v469, %v468
  %v484 = vpack.c.b16 %v471, %v470
  %v485 = vpack.c.b16 %v473, %v472
  %v486 = vpack.c.b16 %v475, %v474
  %v487 = vpack.c.b16 %v477, %v476
  %v488 = vpack.c.b16 %v479, %v478
  %v489 = vpack.c.b16 %v481, %v480
  %498 = vmatpush.bf16.msra.mxu0 %v489
  %499 = vmatpush.bf16.msra.mxu0 %v488
  %500 = vmatpush.bf16.msra.mxu0 %v487
  %501 = vmatpush.bf16.msra.mxu0 %v486
  %502 = vmatpush.bf16.msra.mxu0 %v485
  %503 = vmatpush.bf16.msra.mxu0 %v484
  %504 = vmatpush.bf16.msra.mxu0 %v483
  %505 = vmatpush.bf16.msra.mxu0 %v482
  %506 = vmatmul.bf16.gmra.mxu0 %v432
  %v507 = vpop.f32.mrf.mxu0
  %v508 = vadd.f32 0.0, %v507
  %v509 = vpop.f32.mrf.mxu0
  %v510 = vadd.f32 0.0, %v509
  %511 = vmatmul.bf16.gmra.mxu0 %v433
  %v512 = vpop.f32.mrf.mxu0
  %v513 = vadd.f32 0.0, %v512
  %v514 = vpop.f32.mrf.mxu0
  %v515 = vadd.f32 0.0, %v514
  %516 = vdwg.mxu0
  %v517 = vadd.f32 %v130, %v508
  %v518 = vadd.f32 %v131, %v510
  %v519 = vadd.f32 %v132, %v513
  %v520 = vadd.f32 %v133, %v515
  %v521 = vpack.c.bf16 %v517, %v517
  %v522 = vpack.c.bf16 %v518, %v518
  %v523 = vpack.c.bf16 %v519, %v519
  %v524 = vpack.c.bf16 %v520, %v520
  %525 = vst [vmem:[%s6] sm:$0xf] %v521
  %526 = vst [vmem:[%s6 + $0x4] sm:$0xf] %v522
  %527 = vst [vmem:[%s6 + $0x8] sm:$0xf] %v523
  %528 = vst [vmem:[%s6 + $0xc] sm:$0xf] %v524
  // Predicated region
  $region26: #{_lambda_.9} parent=0 // pred_check
    _
  $region27: #{_lambda_.9} parent=0 // pred_check_branch
    %530 = sbr.rel (0) target = $region29
  $region28: #{_lambda_.9} parent=0 // pred_region
    _
  $region29: #{_lambda_.9} parent=0 // pred_fallthru
    _
  // Predicated region
  $region30: #{_lambda_.9} parent=0 // pred_check
    _
  $region31: #{_lambda_.9} parent=0 // pred_check_branch
    %532 = sbr.rel (0) target = $region33
  $region32: #{_lambda_.9} parent=0 // pred_region
    _
  $region33: #{_lambda_.9} parent=0 // pred_fallthru
    _

// kernel: _lambda_.10
$region0: #{_lambda_.10}
  #allocation0 [shape = 'u32[]', space=smem, size = 0x4, offset = 0x4, fixed_abs, tag = 'smem constant byte address 0x4 - core index']
  #allocation1 [shape = 'u32[72,128]{1,0:T(1,128)}', space=vmem, size = 0x9000, scoped, tag = 'internal scratch']
  #allocation2 [shape = 'f32[16,256]{1,0:T(8,128)}', space=vmem, size = 0x4000, scoped, tag = 'scratch operand']
  #allocation3 [shape = 'f32[16,1]{1,0:T(8,128)}', space=vmem, size = 0x2000, scoped, tag = 'scratch operand']
  %s0 = inlined_call_operand.vmem [shape: bf16[32,128], index: 0, kind: input, shape index: {}]
  %s1 = inlined_call_operand.vmem [shape: bf16[1,128], index: 1, kind: input, shape index: {}]
  %s2 = inlined_call_operand.vmem [shape: bf16[128,256], index: 2, kind: input, shape index: {}]
  %s3 = inlined_call_operand.vmem [shape: bf16[1,256], index: 3, kind: input, shape index: {}]
  %s4 = inlined_call_operand.vmem [shape: bf16[16,8], index: 4, kind: input, shape index: {}]
  %s5 = inlined_call_operand.vmem [shape: bf16[16,8], index: 5, kind: input, shape index: {}]
  %s6 = inlined_call_operand.vmem [shape: bf16[32,128], index: 6, kind: output, shape index: {0}]
  %s7 = inlined_call_operand.vmem [shape: bf16[32,64], index: 7, kind: output, shape index: {1}]
  %s8 = inlined_call_operand.vmem [shape: bf16[32,64], index: 8, kind: output, shape index: {2}]
  %9 = xla_tuple %s6, %s7, %s8
  %s10 = sld [smem:[#allocation0]]
  $region81: #{_lambda_.10} parent=0
    _
  %s12 = ssub.s32 1, %s10
  %s13 = scalar_select 0, %s12, %s10
  loop: start=0, step=1, limit=4
  $region2: #{_lambda_.10} parent=0 // loop_pre_header
    _
  $region3: #{_lambda_.10} parent=0 // loop_header
    %s15 = sphi 0, %s19
    %p16 = scmp.ge.s32.totalorder %s15, 4
    %s22 = sphi 0, %s34
    %s23 = sphi 0, %s30
    %s24 = sphi 0, %s22
    %s25 = sphi 0, %s23
    %s26 = sphi 0, %s24
    %s27 = sphi 0, %s25
    %s39 = sphi 0, %s41
    %s42 = sphi 0, %s39
    %s43 = sphi 0, %s42
    %s59 = sphi 0, %s43
    %s65 = sphi 0, %s67
    %s68 = sphi 0, %s65
    %s69 = sphi 0, %s68
    %s85 = sphi 0, %s69
    %s91 = sphi 0, %s93
    %s94 = sphi 0, %s91
    %s95 = sphi 0, %s94
    %s111 = sphi 0, %s95
    %s115 = sphi 0, %s115
    %s117 = sphi 0, %s115
    %s118 = sphi 0, %s117
    %s132 = sphi 0, %s118
    %s136 = sphi 0, %s136
    %s138 = sphi 0, %s136
    %s139 = sphi 0, %s138
    %s153 = sphi 0, %s139
    %s157 = sphi 0, %s157
    %s159 = sphi 0, %s157
    %s160 = sphi 0, %s159
    %s174 = sphi 0, %s160
    %s180 = sphi 0, %s182
    %s183 = sphi 0, %s180
    %s184 = sphi 0, %s183
    %s200 = sphi 0, %s184
    %s206 = sphi 0, %s208
    %s209 = sphi 0, %s206
    %s210 = sphi 0, %s209
    %s226 = sphi 0, %s210
    %s232 = sphi 0, %s234
    %s235 = sphi 0, %s232
    %s236 = sphi 0, %s235
    %s252 = sphi 0, %s236
  $region4: #{_lambda_.10} parent=0 // loop_header_branch
    %18 = sbr.rel (%p16) target = $region8
  $region5: #{_lambda_.10} parent=0 // loop_body
    %s20 = ssub.s32 %s15, 1
    %s21 = ssub.s32 %s15, 2
    %s28 = sadd.s32 1, %s23
    %p29 = scmp.ge.s32.totalorder %s28, 1
    %s30 = scalar_select %p29, 0, %s28
    %s31 = sadd.s32 1, %s22
    %s32 = scalar_select %p29, %s31, %s22
    %p33 = scmp.ge.s32.totalorder %s32, 2
    %s34 = scalar_select %p33, 0, %s32
    %s35 = ssub.s32 %s22, %s34
    %s36 = ssub.s32 %s23, %s30
    %s37 = sor.u32 %s35, %s36
    %p38 = scmp.eq.s32.totalorder %s37, 0
    %s40 = sadd.s32 %s39, 1
    %s41 = scalar_select %p38, %s39, %s40
    %p44 = pneg %p38
    %p45 = scmp.eq.s32.totalorder %s15, 1
    %p46 = por %p44, %p45
    %p47 = scmp.ne.s32.totalorder %s39, %s42
    %p48 = scmp.eq.s32.totalorder %s15, 0
    %p49 = por %p47, %p48
    %p50 = scmp.ne.s32.totalorder %s39, %s42
    %p51 = scmp.eq.s32.totalorder %s20, 1
    %p52 = por %p50, %p51
    %p53 = scmp.ne.s32.totalorder %s42, %s43
    %p54 = scmp.eq.s32.totalorder %s20, 0
    %p55 = por %p53, %p54
    %p56 = scmp.ne.s32.totalorder %s42, %s43
    %p57 = scmp.eq.s32.totalorder %s21, 1
    %p58 = por %p56, %p57
    %p60 = scmp.ne.s32.totalorder %s43, %s59
    %p61 = scmp.eq.s32.totalorder %s21, 0
    %p62 = por %p60, %p61
    %s63 = ssub.s32 %s23, %s30
    %p64 = scmp.eq.s32.totalorder %s63, 0
    %s66 = sadd.s32 %s65, 1
    %s67 = scalar_select %p64, %s65, %s66
    %p70 = pneg %p64
    %p71 = scmp.eq.s32.totalorder %s15, 1
    %p72 = por %p70, %p71
    %p73 = scmp.ne.s32.totalorder %s65, %s68
    %p74 = scmp.eq.s32.totalorder %s15, 0
    %p75 = por %p73, %p74
    %p76 = scmp.ne.s32.totalorder %s65, %s68
    %p77 = scmp.eq.s32.totalorder %s20, 1
    %p78 = por %p76, %p77
    %p79 = scmp.ne.s32.totalorder %s68, %s69
    %p80 = scmp.eq.s32.totalorder %s20, 0
    %p81 = por %p79, %p80
    %p82 = scmp.ne.s32.totalorder %s68, %s69
    %p83 = scmp.eq.s32.totalorder %s21, 1
    %p84 = por %p82, %p83
    %p86 = scmp.ne.s32.totalorder %s69, %s85
    %p87 = scmp.eq.s32.totalorder %s21, 0
    %p88 = por %p86, %p87
    %s89 = ssub.s32 %s23, %s30
    %p90 = scmp.eq.s32.totalorder %s89, 0
    %s92 = sadd.s32 %s91, 1
    %s93 = scalar_select %p90, %s91, %s92
    %p96 = pneg %p90
    %p97 = scmp.eq.s32.totalorder %s15, 1
    %p98 = por %p96, %p97
    %p99 = scmp.ne.s32.totalorder %s91, %s94
    %p100 = scmp.eq.s32.totalorder %s15, 0
    %p101 = por %p99, %p100
    %p102 = scmp.ne.s32.totalorder %s91, %s94
    %p103 = scmp.eq.s32.totalorder %s20, 1
    %p104 = por %p102, %p103
    %p105 = scmp.ne.s32.totalorder %s94, %s95
    %p106 = scmp.eq.s32.totalorder %s20, 0
    %p107 = por %p105, %p106
    %p108 = scmp.ne.s32.totalorder %s94, %s95
    %p109 = scmp.eq.s32.totalorder %s21, 1
    %p110 = por %p108, %p109
    %p112 = scmp.ne.s32.totalorder %s95, %s111
    %p113 = scmp.eq.s32.totalorder %s21, 0
    %p114 = por %p112, %p113
    %s116 = sadd.s32 %s115, 1
    %p119 = scmp.eq.s32.totalorder %s15, 1
    %p120 = scmp.ne.s32.totalorder %s115, %s117
    %p121 = scmp.eq.s32.totalorder %s15, 0
    %p122 = por %p120, %p121
    %p123 = scmp.ne.s32.totalorder %s115, %s117
    %p124 = scmp.eq.s32.totalorder %s20, 1
    %p125 = por %p123, %p124
    %p126 = scmp.ne.s32.totalorder %s117, %s118
    %p127 = scmp.eq.s32.totalorder %s20, 0
    %p128 = por %p126, %p127
    %p129 = scmp.ne.s32.totalorder %s117, %s118
    %p130 = scmp.eq.s32.totalorder %s21, 1
    %p131 = por %p129, %p130
    %p133 = scmp.ne.s32.totalorder %s118, %s132
    %p134 = scmp.eq.s32.totalorder %s21, 0
    %p135 = por %p133, %p134
    %s137 = sadd.s32 %s136, 1
    %p140 = scmp.eq.s32.totalorder %s15, 1
    %p141 = scmp.ne.s32.totalorder %s136, %s138
    %p142 = scmp.eq.s32.totalorder %s15, 0
    %p143 = por %p141, %p142
    %p144 = scmp.ne.s32.totalorder %s136, %s138
    %p145 = scmp.eq.s32.totalorder %s20, 1
    %p146 = por %p144, %p145
    %p147 = scmp.ne.s32.totalorder %s138, %s139
    %p148 = scmp.eq.s32.totalorder %s20, 0
    %p149 = por %p147, %p148
    %p150 = scmp.ne.s32.totalorder %s138, %s139
    %p151 = scmp.eq.s32.totalorder %s21, 1
    %p152 = por %p150, %p151
    %p154 = scmp.ne.s32.totalorder %s139, %s153
    %p155 = scmp.eq.s32.totalorder %s21, 0
    %p156 = por %p154, %p155
    %s158 = sadd.s32 %s157, 1
    %p161 = scmp.eq.s32.totalorder %s15, 1
    %p162 = scmp.ne.s32.totalorder %s157, %s159
    %p163 = scmp.eq.s32.totalorder %s15, 0
    %p164 = por %p162, %p163
    %p165 = scmp.ne.s32.totalorder %s157, %s159
    %p166 = scmp.eq.s32.totalorder %s20, 1
    %p167 = por %p165, %p166
    %p168 = scmp.ne.s32.totalorder %s159, %s160
    %p169 = scmp.eq.s32.totalorder %s20, 0
    %p170 = por %p168, %p169
    %p171 = scmp.ne.s32.totalorder %s159, %s160
    %p172 = scmp.eq.s32.totalorder %s21, 1
    %p173 = por %p171, %p172
    %p175 = scmp.ne.s32.totalorder %s160, %s174
    %p176 = scmp.eq.s32.totalorder %s21, 0
    %p177 = por %p175, %p176
    %s178 = ssub.s32 %s22, %s34
    %p179 = scmp.eq.s32.totalorder %s178, 0
    %s181 = sadd.s32 %s180, 1
    %s182 = scalar_select %p179, %s180, %s181
    %p185 = pneg %p179
    %p186 = scmp.eq.s32.totalorder %s15, 1
    %p187 = por %p185, %p186
    %p188 = scmp.ne.s32.totalorder %s180, %s183
    %p189 = scmp.eq.s32.totalorder %s15, 0
    %p190 = por %p188, %p189
    %p191 = scmp.ne.s32.totalorder %s180, %s183
    %p192 = scmp.eq.s32.totalorder %s20, 1
    %p193 = por %p191, %p192
    %p194 = scmp.ne.s32.totalorder %s183, %s184
    %p195 = scmp.eq.s32.totalorder %s20, 0
    %p196 = por %p194, %p195
    %p197 = scmp.ne.s32.totalorder %s183, %s184
    %p198 = scmp.eq.s32.totalorder %s21, 1
    %p199 = por %p197, %p198
    %p201 = scmp.ne.s32.totalorder %s184, %s200
    %p202 = scmp.eq.s32.totalorder %s21, 0
    %p203 = por %p201, %p202
    %s204 = ssub.s32 %s22, %s34
    %p205 = scmp.eq.s32.totalorder %s204, 0
    %s207 = sadd.s32 %s206, 1
    %s208 = scalar_select %p205, %s206, %s207
    %p211 = pneg %p205
    %p212 = scmp.eq.s32.totalorder %s15, 1
    %p213 = por %p211, %p212
    %p214 = scmp.ne.s32.totalorder %s206, %s209
    %p215 = scmp.eq.s32.totalorder %s15, 0
    %p216 = por %p214, %p215
    %p217 = scmp.ne.s32.totalorder %s206, %s209
    %p218 = scmp.eq.s32.totalorder %s20, 1
    %p219 = por %p217, %p218
    %p220 = scmp.ne.s32.totalorder %s209, %s210
    %p221 = scmp.eq.s32.totalorder %s20, 0
    %p222 = por %p220, %p221
    %p223 = scmp.ne.s32.totalorder %s209, %s210
    %p224 = scmp.eq.s32.totalorder %s21, 1
    %p225 = por %p223, %p224
    %p227 = scmp.ne.s32.totalorder %s210, %s226
    %p228 = scmp.eq.s32.totalorder %s21, 0
    %p229 = por %p227, %p228
    %s230 = ssub.s32 %s22, %s34
    %p231 = scmp.eq.s32.totalorder %s230, 0
    %s233 = sadd.s32 %s232, 1
    %s234 = scalar_select %p231, %s232, %s233
    %p237 = pneg %p231
    %p238 = scmp.eq.s32.totalorder %s15, 1
    %p239 = por %p237, %p238
    %p240 = scmp.ne.s32.totalorder %s232, %s235
    %p241 = scmp.eq.s32.totalorder %s15, 0
    %p242 = por %p240, %p241
    %p243 = scmp.ne.s32.totalorder %s232, %s235
    %p244 = scmp.eq.s32.totalorder %s20, 1
    %p245 = por %p243, %p244
    %p246 = scmp.ne.s32.totalorder %s235, %s236
    %p247 = scmp.eq.s32.totalorder %s20, 0
    %p248 = por %p246, %p247
    %p249 = scmp.ne.s32.totalorder %s235, %s236
    %p250 = scmp.eq.s32.totalorder %s21, 1
    %p251 = por %p249, %p250
    %p253 = scmp.ne.s32.totalorder %s236, %s252
    %p254 = scmp.eq.s32.totalorder %s21, 0
    %p255 = por %p253, %p254
    %p256 = scmp.le.s32.totalorder 1, %s15
    %p257 = scmp.lt.s32.totalorder %s15, 3
    %p258 = pnand %p256, %p257
    %p259 = pneg %p258
    // Predicated region
    $region9: #{_lambda_.10} parent=5 // pred_check
      _
    $region10: #{_lambda_.10} parent=5 // pred_check_branch
      %261 = sbr.rel (%p258) target = $region12
    $region11: #{_lambda_.10} parent=5 // pred_region
      %s262 = ssub.s32 %s15, 1
      // Predicated region
      $region13: #{_lambda_.10} parent=11 // pred_check
        %p263 = pneg %p81
      $region14: #{_lambda_.10} parent=11 // pred_check_branch
        %265 = sbr.rel (%p263) target = $region16
      $region15: #{_lambda_.10} parent=11 // pred_region
        %p266 = scmp.lt.s32.totalorder %s25, 0
        %s267 = scalar_select %p266, %s25, 0
        %s268 = scalar_lea.vmem %s1, %s267
      $region16: #{_lambda_.10} parent=11 // pred_fallthru
        _
      // Predicated region
      $region17: #{_lambda_.10} parent=11 // pred_check
        %p269 = pneg %p107
      $region18: #{_lambda_.10} parent=11 // pred_check_branch
        %271 = sbr.rel (%p269) target = $region20
      $region19: #{_lambda_.10} parent=11 // pred_region
        %s272 = smul.u32 16, %s25
        %p273 = scmp.lt.s32.totalorder %s272, 15
        %s274 = scalar_select %p273, %s272, 15
        %s275 = smul.addr %s274, 2
        %s276 = smul.addr %s275, 4
        %s277 = scalar_lea.vmem %s2, %s276
        %s278 = smul.u32 16, %s25
      $region20: #{_lambda_.10} parent=11 // pred_fallthru
        _
      // Predicated region
      $region21: #{_lambda_.10} parent=11 // pred_check
        %p279 = pneg %p128
      $region22: #{_lambda_.10} parent=11 // pred_check_branch
        %281 = sbr.rel (%p279) target = $region24
      $region23: #{_lambda_.10} parent=11 // pred_region
        _
      $region24: #{_lambda_.10} parent=11 // pred_fallthru
        _
      // Predicated region
      $region25: #{_lambda_.10} parent=11 // pred_check
        %p282 = pneg %p149
      $region26: #{_lambda_.10} parent=11 // pred_check_branch
        %284 = sbr.rel (%p282) target = $region28
      $region27: #{_lambda_.10} parent=11 // pred_region
        _
      $region28: #{_lambda_.10} parent=11 // pred_fallthru
        _
      // Predicated region
      $region29: #{_lambda_.10} parent=11 // pred_check
        %p285 = pneg %p170
      $region30: #{_lambda_.10} parent=11 // pred_check_branch
        %287 = sbr.rel (%p285) target = $region32
      $region31: #{_lambda_.10} parent=11 // pred_region
        _
      $region32: #{_lambda_.10} parent=11 // pred_fallthru
        _
    $region12: #{_lambda_.10} parent=5 // pred_fallthru
      _
    %p288 = scmp.lt.s32.totalorder %s15, 2
    // Predicated region
    $region33: #{_lambda_.10} parent=5 // pred_check
      %p289 = pneg %p288
    $region34: #{_lambda_.10} parent=5 // pred_check_branch
      %291 = sbr.rel (%p289) target = $region36
    $region35: #{_lambda_.10} parent=5 // pred_region
      // Predicated region
      $region37: #{_lambda_.10} parent=35 // pred_check
        %p292 = pneg %p49
      $region38: #{_lambda_.10} parent=35 // pred_check_branch
        %294 = sbr.rel (%p292) target = $region40
      $region39: #{_lambda_.10} parent=35 // pred_region
        %s295 = smul.u32 2, %s22
        %p296 = scmp.lt.s32.totalorder %s295, 3
        %s297 = scalar_select %p296, %s295, 3
        %p298 = scmp.lt.s32.totalorder %s23, 0
        %s299 = scalar_select %p298, %s23, 0
        %s300 = sadd.s32 %s299, %s297
        %s301 = smul.addr %s300, 4
        %s302 = scalar_lea.vmem %s0, %s301
        %s303 = smul.u32 2, %s22
      $region40: #{_lambda_.10} parent=35 // pred_fallthru
        _
    $region36: #{_lambda_.10} parent=5 // pred_fallthru
      _
    %p304 = scmp.le.s32.totalorder 1, %s15
    %p305 = scmp.lt.s32.totalorder %s15, 3
    %p306 = pnand %p304, %p305
    %p307 = pneg %p306
    // Predicated region
    $region41: #{_lambda_.10} parent=5 // pred_check
      _
    $region42: #{_lambda_.10} parent=5 // pred_check_branch
      %309 = sbr.rel (%p306) target = $region44
    $region43: #{_lambda_.10} parent=5 // pred_region
      %s310 = ssub.s32 %s15, 1
      %s311 = smul.u32 2, %s24
      %p312 = scmp.lt.s32.totalorder %s311, 3
      %s313 = scalar_select %p312, %s311, 3
      %p314 = scmp.lt.s32.totalorder %s25, 0
      %s315 = scalar_select %p314, %s25, 0
      %s316 = sadd.s32 %s315, %s313
      %s317 = smul.addr %s316, 4
      %s318 = scalar_lea.vmem %s0, %s317
      %p319 = pneg %p55
      %p320 = pneg %p52
      %p321 = scmp.lt.s32.totalorder %s25, 0
      %s322 = scalar_select %p321, %s25, 0
      %s323 = scalar_lea.vmem %s1, %s322
      %p324 = pneg %p81
      %p325 = pneg %p78
      %s326 = smul.u32 16, %s25
      %p327 = scmp.lt.s32.totalorder %s326, 15
      %s328 = scalar_select %p327, %s326, 15
      %s329 = smul.addr %s328, 2
      %s330 = smul.addr %s329, 4
      %s331 = scalar_lea.vmem %s2, %s330
      %p332 = pneg %p107
      %p333 = pneg %p104
      %p334 = pneg %p128
      %p335 = pneg %p125
      %p336 = pneg %p149
      %p337 = pneg %p146
      %p338 = pneg %p170
      %p339 = pneg %p167
      %p340 = pneg %p196
      %p341 = pneg %p193
      %s342 = smul.u32 2, %s24
      %p343 = scmp.lt.s32.totalorder %s342, 3
      %s344 = scalar_select %p343, %s342, 3
      %s345 = smul.addr %s344, 4
      %s346 = scalar_lea.vmem %s6, %s345
      %p347 = pneg %p222
      %p348 = pneg %p219
      %s349 = smul.u32 2, %s24
      %p350 = scmp.lt.s32.totalorder %s349, 3
      %s351 = scalar_select %p350, %s349, 3
      %s352 = smul.addr %s351, 4
      %s353 = scalar_lea.vmem %s7, %s352
      %p354 = pneg %p248
      %p355 = pneg %p245
      %s356 = smul.u32 2, %s24
      %p357 = scmp.lt.s32.totalorder %s356, 3
      %s358 = scalar_select %p357, %s356, 3
      %s359 = smul.addr %s358, 4
      %s360 = scalar_lea.vmem %s8, %s359
      %s361 = smul.u32 2, %s24
      %p362 = scmp.lt.s32.totalorder %s361, 3
      %s363 = scalar_select %p362, %s361, 3
      %p364 = scmp.lt.s32.totalorder %s25, 0
      %s365 = scalar_select %p364, %s25, 0
      %s366 = sadd.s32 %s365, %s363
      %s367 = smul.addr %s366, 4
      %s368 = scalar_lea.vmem %s0, %s367
      %s369 = smul.u32 2, %s24
      %p370 = scmp.lt.s32.totalorder %s25, 0
      %s371 = scalar_select %p370, %s25, 0
      %s372 = scalar_lea.vmem %s1, %s371
      %s373 = smul.u32 16, %s25
      %p374 = scmp.lt.s32.totalorder %s373, 15
      %s375 = scalar_select %p374, %s373, 15
      %s376 = smul.addr %s375, 2
      %s377 = smul.addr %s376, 4
      %s378 = scalar_lea.vmem %s2, %s377
      %s379 = smul.u32 16, %s25
      %s380 = smul.u32 2, %s24
      %p381 = scmp.lt.s32.totalorder %s380, 3
      %s382 = scalar_select %p381, %s380, 3
      %s383 = smul.addr %s382, 4
      %s384 = scalar_lea.vmem %s6, %s383
      %s385 = smul.u32 2, %s24
      %s386 = smul.u32 2, %s24
      %p387 = scmp.lt.s32.totalorder %s386, 3
      %s388 = scalar_select %p387, %s386, 3
      %s389 = smul.addr %s388, 4
      %s390 = scalar_lea.vmem %s7, %s389
      %s391 = smul.u32 2, %s24
      %s392 = smul.u32 2, %s24
      %p393 = scmp.lt.s32.totalorder %s392, 3
      %s394 = scalar_select %p393, %s392, 3
      %s395 = smul.addr %s394, 4
      %s396 = scalar_lea.vmem %s8, %s395
      %s397 = smul.u32 2, %s24
      %p398 = scmp.eq.s32.totalorder %s25, 0
      // Predicated region
      $region45: #{_lambda_.10} parent=43 // pred_check
        %p399 = pneg %p398
      $region46: #{_lambda_.10} parent=43 // pred_check_branch
        %401 = sbr.rel (%p399) target = $region48
      $region47: #{_lambda_.10} parent=43 // pred_region
        %402 = vst [vmem:[#allocation2] sm:$0xff] 0.0
        %403 = vst [vmem:[#allocation2 + $0x8] sm:$0xff] 0.0
        %404 = vst [vmem:[#allocation2 + $0x10] sm:$0xff] 0.0
        %405 = vst [vmem:[#allocation2 + $0x18] sm:$0xff] 0.0
        %vm406 = vcmask 7168
        %407 = vst.msk [vmem:[#allocation3] sm:$0xff] %vm406, 0.0
        %408 = vst.msk [vmem:[#allocation3 + $0x8] sm:$0xff] %vm406, 0.0
      $region48: #{_lambda_.10} parent=43 // pred_fallthru
        _
      %v409 = vld [vmem:[%s368] sm:$0xf]
      %v410 = vld [vmem:[%s368 + $0x4] sm:$0xf]
      %v411 = vunpack.c.l.bf16 %v409
      %v412 = vunpack.c.l.bf16 %v410
      %v413 = vld [vmem:[%s372] sm:$0x1]
      %v414 = vunpack.c.l.bf16 %v413
      %v415 = vld [vmem:[#allocation3] sm:$0xff]
      %v416 = vld [vmem:[#allocation3 + $0x8] sm:$0xff]
      %v417 = vmul.f32 %v411, %v411
      %v418 = vmul.f32 %v412, %v412
      %419 = vadd.xlane.f32.xlu0 %v417
      %v420 = vpop.xlane.xlu0 %419
      %421 = vadd.xlane.f32.xlu0 %v418
      %v422 = vpop.xlane.xlu0 %421
      %v423 = vadd.f32 %v415, %v420
      %v424 = vadd.f32 %v416, %v422
      %vm425 = vcmask 7168
      %426 = vst.msk [vmem:[#allocation3] sm:$0xff] %vm425, %v423
      %427 = vst.msk [vmem:[#allocation3 + $0x8] sm:$0xff] %vm425, %v424
      %v428 = vperm.slane %v414, 0
      %v429 = vmul.f32 %v411, %v428
      %v430 = vmul.f32 %v412, %v428
      %v431 = vpack.c.bf16 %v430, %v429
      %v432 = vld [vmem:[#allocation2] sm:$0xff]
      %v433 = vld [vmem:[#allocation2 + $0x8] sm:$0xff]
      %v434 = vld [vmem:[#allocation2 + $0x10] sm:$0xff]
      %v435 = vld [vmem:[#allocation2 + $0x18] sm:$0xff]
      %v436 = vld [vmem:[%s378] sm:$0xff]
      %v437 = vld [vmem:[%s378 + $0x8] sm:$0xff]
      %v438 = vld [vmem:[%s378 + $0x10] sm:$0xff]
      %v439 = vld [vmem:[%s378 + $0x18] sm:$0xff]
      %v440 = vld [vmem:[%s378 + $0x20] sm:$0xff]
      %v441 = vld [vmem:[%s378 + $0x28] sm:$0xff]
      %v442 = vld [vmem:[%s378 + $0x30] sm:$0xff]
      %v443 = vld [vmem:[%s378 + $0x38] sm:$0xff]
      %v444 = vld [vmem:[%s378 + $0x40] sm:$0xff]
      %v445 = vld [vmem:[%s378 + $0x48] sm:$0xff]
      %v446 = vld [vmem:[%s378 + $0x50] sm:$0xff]
      %v447 = vld [vmem:[%s378 + $0x58] sm:$0xff]
      %v448 = vld [vmem:[%s378 + $0x60] sm:$0xff]
      %v449 = vld [vmem:[%s378 + $0x68] sm:$0xff]
      %v450 = vld [vmem:[%s378 + $0x70] sm:$0xff]
      %v451 = vld [vmem:[%s378 + $0x78] sm:$0xff]
      %v468 = vunpack.c.l.b16 %v436
      %v469 = vunpack.c.h.b16 %v436
      %v470 = vunpack.c.l.b16 %v437
      %v471 = vunpack.c.h.b16 %v437
      %v472 = vunpack.c.l.b16 %v438
      %v473 = vunpack.c.h.b16 %v438
      %v474 = vunpack.c.l.b16 %v439
      %v475 = vunpack.c.h.b16 %v439
      %v476 = vunpack.c.l.b16 %v440
      %v477 = vunpack.c.h.b16 %v440
      %v478 = vunpack.c.l.b16 %v441
      %v479 = vunpack.c.h.b16 %v441
      %v480 = vunpack.c.l.b16 %v442
      %v481 = vunpack.c.h.b16 %v442
      %v482 = vunpack.c.l.b16 %v443
      %v483 = vunpack.c.h.b16 %v443
      %v484 = vunpack.c.l.b16 %v444
      %v485 = vunpack.c.h.b16 %v444
      %v486 = vunpack.c.l.b16 %v445
      %v487 = vunpack.c.h.b16 %v445
      %v488 = vunpack.c.l.b16 %v446
      %v489 = vunpack.c.h.b16 %v446
      %v490 = vunpack.c.l.b16 %v447
      %v491 = vunpack.c.h.b16 %v447
      %v492 = vunpack.c.l.b16 %v448
      %v493 = vunpack.c.h.b16 %v448
      %v494 = vunpack.c.l.b16 %v449
      %v495 = vunpack.c.h.b16 %v449
      %v496 = vunpack.c.l.b16 %v450
      %v497 = vunpack.c.h.b16 %v450
      %v498 = vunpack.c.l.b16 %v451
      %v499 = vunpack.c.h.b16 %v451
      %v500 = vpack.c.b16 %v470, %v468
      %v501 = vpack.c.b16 %v471, %v469
      %v502 = vpack.c.b16 %v474, %v472
      %v503 = vpack.c.b16 %v475, %v473
      %v504 = vpack.c.b16 %v478, %v476
      %v505 = vpack.c.b16 %v479, %v477
      %v506 = vpack.c.b16 %v482, %v480
      %v507 = vpack.c.b16 %v483, %v481
      %v508 = vpack.c.b16 %v486, %v484
      %v509 = vpack.c.b16 %v487, %v485
      %v510 = vpack.c.b16 %v490, %v488
      %v511 = vpack.c.b16 %v491, %v489
      %v512 = vpack.c.b16 %v494, %v492
      %v513 = vpack.c.b16 %v495, %v493
      %v514 = vpack.c.b16 %v498, %v496
      %v515 = vpack.c.b16 %v499, %v497
      %532 = vmatpush.bf16.msra.mxu0 %v514
      %533 = vmatpush.bf16.msra.mxu0 %v512
      %534 = vmatpush.bf16.msra.mxu0 %v510
      %535 = vmatpush.bf16.msra.mxu0 %v508
      %536 = vmatpush.bf16.msra.mxu0 %v506
      %537 = vmatpush.bf16.msra.mxu0 %v504
      %538 = vmatpush.bf16.msra.mxu0 %v502
      %539 = vmatpush.bf16.msra.mxu0 %v500
      %540 = vmatmul.bf16.gmra.mxu0 %v431
      %v541 = vpop.f32.mrf.mxu0
      %v542 = vadd.f32 0.0, %v541
      %v543 = vpop.f32.mrf.mxu0
      %v544 = vadd.f32 0.0, %v543
      %545 = vdwg.mxu0
      %546 = vmatpush.bf16.msra.mxu0 %v515
      %547 = vmatpush.bf16.msra.mxu0 %v513
      %548 = vmatpush.bf16.msra.mxu0 %v511
      %549 = vmatpush.bf16.msra.mxu0 %v509
      %550 = vmatpush.bf16.msra.mxu0 %v507
      %551 = vmatpush.bf16.msra.mxu0 %v505
      %552 = vmatpush.bf16.msra.mxu0 %v503
      %553 = vmatpush.bf16.msra.mxu0 %v501
      %554 = vmatmul.bf16.gmra.mxu0 %v431
      %v555 = vpop.f32.mrf.mxu0
      %v556 = vadd.f32 0.0, %v555
      %v557 = vpop.f32.mrf.mxu0
      %v558 = vadd.f32 0.0, %v557
      %559 = vdwg.mxu0
      %v560 = vadd.f32 %v432, %v542
      %v561 = vadd.f32 %v433, %v556
      %v562 = vadd.f32 %v434, %v544
      %v563 = vadd.f32 %v435, %v558
      %564 = vst [vmem:[#allocation2] sm:$0xff] %v560
      %565 = vst [vmem:[#allocation2 + $0x8] sm:$0xff] %v561
      %566 = vst [vmem:[#allocation2 + $0x10] sm:$0xff] %v562
      %567 = vst [vmem:[#allocation2 + $0x18] sm:$0xff] %v563
      // Predicated region
      $region49: #{_lambda_.10} parent=43 // pred_check
        %p568 = pneg %p398
      $region50: #{_lambda_.10} parent=43 // pred_check_branch
        %570 = sbr.rel (%p568) target = $region52
      $region51: #{_lambda_.10} parent=43 // pred_region
        %v571 = vld [vmem:[#allocation3] sm:$0xff]
        %v572 = vld [vmem:[#allocation3 + $0x8] sm:$0xff]
        %v573 = vrcp.pop 128.0
        %v574 = vmul.f32 128.0, %v573
        %v575 = vsub.f32 1.0, %v574
        %v576 = vmul.f32 %v573, %v575
        %v577 = vadd.f32 %v573, %v576
        %vm578 = vweird.f32 %v573
        %v579 = vsel %vm578, %v573, %v577
        %v580 = vmul.f32 %v571, %v579
        %v581 = vmul.f32 %v572, %v579
        %v582 = vadd.f32 %v580, 1e-05
        %v583 = vadd.f32 %v581, 1e-05
        %v584 = vrsqrt.pop %v582
        %v585 = vmul.f32 %v584, %v582
        %v586 = vmul.f32 %v585, %v584
        %v587 = vmul.f32 0.5, %v586
        %v588 = vsub.f32 1.5, %v587
        %v589 = vmul.f32 %v584, %v588
        %vm590 = vweird.f32 %v582
        %vm591 = vweird.f32 %v584
        %vm592 = vmor %vm590, %vm591
        %v593 = vsel %vm592, %v584, %v589
        %v594 = vrsqrt.pop %v583
        %v595 = vmul.f32 %v594, %v583
        %v596 = vmul.f32 %v595, %v594
        %v597 = vmul.f32 0.5, %v596
        %v598 = vsub.f32 1.5, %v597
        %v599 = vmul.f32 %v594, %v598
        %vm600 = vweird.f32 %v583
        %vm601 = vweird.f32 %v594
        %vm602 = vmor %vm600, %vm601
        %v603 = vsel %vm602, %v594, %v599
        %v604 = vld [vmem:[#allocation2] sm:$0xff]
        %v605 = vld [vmem:[#allocation2 + $0x8] sm:$0xff]
        %v606 = vld [vmem:[#allocation2 + $0x10] sm:$0xff]
        %v607 = vld [vmem:[#allocation2 + $0x18] sm:$0xff]
        %609 = vset.pattern.permute.xlu0 0
        %610 = vperm.xlu0 %609, %v593
        %v611 = vpop.permute.xlu0 %610
        %614 = vset.pattern.permute.xlu0 0
        %615 = vperm.xlu0 %614, %v603
        %v616 = vpop.permute.xlu0 %615
        %v618 = vmul.f32 %v604, %v611
        %v619 = vmul.f32 %v605, %v611
        %v620 = vmul.f32 %v606, %v616
        %v621 = vmul.f32 %v607, %v616
        %v622 = vld [vmem:[%s3] sm:$0x3]
        %v623 = vunpack.c.l.bf16 %v622
        %v625 = vperm.slane %v623, 0
        %v626 = vperm.slane %v623, 2
        %v629 = vperm.slane %v625, 0
        %v630 = vperm.slane %v626, 0
        %v631 = vadd.f32 %v618, %v629
        %v632 = vadd.f32 %v619, %v630
        %v633 = vadd.f32 %v620, %v629
        %v634 = vadd.f32 %v621, %v630
        %v635 = vld [vmem:[%s4] sm:$0xf]
        %v636 = vld [vmem:[%s4 + $0x4] sm:$0xf]
        %v637 = vunpack.c.l.bf16 %v635
        %v638 = vunpack.c.l.bf16 %v636
        %v639 = vld [vmem:[%s5] sm:$0xf]
        %v640 = vld [vmem:[%s5 + $0x4] sm:$0xf]
        %v641 = vunpack.c.l.bf16 %v639
        %v642 = vunpack.c.l.bf16 %v640
        %v643 = vmul.f32 %v631, %v637
        %v644 = vmul.f32 %v633, %v638
        %647 = vrot.lane.b32.xlu0 %v641, 8
        %v648 = vpop.permute.xlu0 %647
        %649 = vrot.lane.b32.xlu0 %v642, 8
        %v650 = vpop.permute.xlu0 %649
        %v653 = vmul.f32 %v631, %v648
        %v654 = vmul.f32 %v633, %v650
        %657 = vrot.lane.b32.xlu0 %v653, 120
        %v658 = vpop.permute.xlu0 %657
        %659 = vrot.lane.b32.xlu0 %v654, 120
        %v660 = vpop.permute.xlu0 %659
        %v663 = vsub.f32 %v643, %v658
        %v664 = vsub.f32 %v644, %v660
        %667 = vrot.lane.b32.xlu0 %v637, 8
        %v668 = vpop.permute.xlu0 %667
        %669 = vrot.lane.b32.xlu0 %v638, 8
        %v670 = vpop.permute.xlu0 %669
        %v673 = vmul.f32 %v631, %v668
        %v674 = vmul.f32 %v633, %v670
        %v675 = vmul.f32 %v631, %v641
        %v676 = vmul.f32 %v633, %v642
        %679 = vrot.lane.b32.xlu0 %v675, 8
        %v680 = vpop.permute.xlu0 %679
        %681 = vrot.lane.b32.xlu0 %v676, 8
        %v682 = vpop.permute.xlu0 %681
        %v685 = vadd.f32 %v673, %v680
        %v686 = vadd.f32 %v674, %v682
        %vm687 = vcmask 64512
        %v688 = vsel %vm687, %v663, %v685
        %v689 = vsel %vm687, %v664, %v686
        %vm690 = vcmask 130048
        %v691 = vsel %vm690, %v688, %v631
        %v692 = vsel %vm690, %v689, %v633
        %693 = vrot.lane.b32.xlu0 %v637, 32
        %v694 = vpop.permute.xlu0 %693
        %695 = vrot.lane.b32.xlu0 %v638, 32
        %v696 = vpop.permute.xlu0 %695
        %v699 = vmul.f32 %v631, %v694
        %v700 = vmul.f32 %v633, %v696
        %701 = vrot.lane.b32.xlu0 %v641, 40
        %v702 = vpop.permute.xlu0 %701
        %703 = vrot.lane.b32.xlu0 %v642, 40
        %v704 = vpop.permute.xlu0 %703
        %v707 = vmul.f32 %v631, %v702
        %v708 = vmul.f32 %v633, %v704
        %711 = vrot.lane.b32.xlu0 %v707, 120
        %v712 = vpop.permute.xlu0 %711
        %713 = vrot.lane.b32.xlu0 %v708, 120
        %v714 = vpop.permute.xlu0 %713
        %v717 = vsub.f32 %v699, %v712
        %v718 = vsub.f32 %v700, %v714
        %719 = vrot.lane.b32.xlu0 %v637, 40
        %v720 = vpop.permute.xlu0 %719
        %721 = vrot.lane.b32.xlu0 %v638, 40
        %v722 = vpop.permute.xlu0 %721
        %v725 = vmul.f32 %v631, %v720
        %v726 = vmul.f32 %v633, %v722
        %727 = vrot.lane.b32.xlu0 %v641, 32
        %v728 = vpop.permute.xlu0 %727
        %729 = vrot.lane.b32.xlu0 %v642, 32
        %v730 = vpop.permute.xlu0 %729
        %v733 = vmul.f32 %v631, %v728
        %v734 = vmul.f32 %v633, %v730
        %737 = vrot.lane.b32.xlu0 %v733, 8
        %v738 = vpop.permute.xlu0 %737
        %739 = vrot.lane.b32.xlu0 %v734, 8
        %v740 = vpop.permute.xlu0 %739
        %v743 = vadd.f32 %v725, %v738
        %v744 = vadd.f32 %v726, %v740
        %747 = vrot.lane.b32.xlu0 %v717, 96
        %v748 = vpop.permute.xlu0 %747
        %749 = vrot.lane.b32.xlu0 %v718, 96
        %v750 = vpop.permute.xlu0 %749
        %755 = vrot.lane.b32.xlu0 %v743, 96
        %v756 = vpop.permute.xlu0 %755
        %757 = vrot.lane.b32.xlu0 %v744, 96
        %v758 = vpop.permute.xlu0 %757
        %763 = vrot.lane.b32.xlu0 %v631, 96
        %v764 = vpop.permute.xlu0 %763
        %765 = vrot.lane.b32.xlu0 %v633, 96
        %v766 = vpop.permute.xlu0 %765
        %v769 = vsel %vm687, %v748, %v756
        %v770 = vsel %vm687, %v750, %v758
        %v771 = vsel %vm690, %v769, %v764
        %v772 = vsel %vm690, %v770, %v766
        %773 = vrot.lane.b32.xlu0 %v637, 64
        %v774 = vpop.permute.xlu0 %773
        %775 = vrot.lane.b32.xlu0 %v638, 64
        %v776 = vpop.permute.xlu0 %775
        %v779 = vmul.f32 %v631, %v774
        %v780 = vmul.f32 %v633, %v776
        %781 = vrot.lane.b32.xlu0 %v641, 72
        %v782 = vpop.permute.xlu0 %781
        %783 = vrot.lane.b32.xlu0 %v642, 72
        %v784 = vpop.permute.xlu0 %783
        %v787 = vmul.f32 %v631, %v782
        %v788 = vmul.f32 %v633, %v784
        %791 = vrot.lane.b32.xlu0 %v787, 120
        %v792 = vpop.permute.xlu0 %791
        %793 = vrot.lane.b32.xlu0 %v788, 120
        %v794 = vpop.permute.xlu0 %793
        %v797 = vsub.f32 %v779, %v792
        %v798 = vsub.f32 %v780, %v794
        %799 = vrot.lane.b32.xlu0 %v637, 72
        %v800 = vpop.permute.xlu0 %799
        %801 = vrot.lane.b32.xlu0 %v638, 72
        %v802 = vpop.permute.xlu0 %801
        %v805 = vmul.f32 %v631, %v800
        %v806 = vmul.f32 %v633, %v802
        %807 = vrot.lane.b32.xlu0 %v641, 64
        %v808 = vpop.permute.xlu0 %807
        %809 = vrot.lane.b32.xlu0 %v642, 64
        %v810 = vpop.permute.xlu0 %809
        %v813 = vmul.f32 %v631, %v808
        %v814 = vmul.f32 %v633, %v810
        %817 = vrot.lane.b32.xlu0 %v813, 8
        %v818 = vpop.permute.xlu0 %817
        %819 = vrot.lane.b32.xlu0 %v814, 8
        %v820 = vpop.permute.xlu0 %819
        %v823 = vadd.f32 %v805, %v818
        %v824 = vadd.f32 %v806, %v820
        %827 = vrot.lane.b32.xlu0 %v797, 64
        %v828 = vpop.permute.xlu0 %827
        %829 = vrot.lane.b32.xlu0 %v798, 64
        %v830 = vpop.permute.xlu0 %829
        %835 = vrot.lane.b32.xlu0 %v823, 64
        %v836 = vpop.permute.xlu0 %835
        %837 = vrot.lane.b32.xlu0 %v824, 64
        %v838 = vpop.permute.xlu0 %837
        %841 = vrot.lane.b32.xlu0 %v631, 64
        %v842 = vpop.permute.xlu0 %841
        %843 = vrot.lane.b32.xlu0 %v633, 64
        %v844 = vpop.permute.xlu0 %843
        %v847 = vsel %vm687, %v828, %v836
        %v848 = vsel %vm687, %v830, %v838
        %v849 = vsel %vm690, %v847, %v842
        %v850 = vsel %vm690, %v848, %v844
        %851 = vrot.lane.b32.xlu0 %v637, 96
        %v852 = vpop.permute.xlu0 %851
        %853 = vrot.lane.b32.xlu0 %v638, 96
        %v854 = vpop.permute.xlu0 %853
        %v857 = vmul.f32 %v631, %v852
        %v858 = vmul.f32 %v633, %v854
        %859 = vrot.lane.b32.xlu0 %v641, 104
        %v860 = vpop.permute.xlu0 %859
        %861 = vrot.lane.b32.xlu0 %v642, 104
        %v862 = vpop.permute.xlu0 %861
        %v865 = vmul.f32 %v631, %v860
        %v866 = vmul.f32 %v633, %v862
        %869 = vrot.lane.b32.xlu0 %v865, 120
        %v870 = vpop.permute.xlu0 %869
        %871 = vrot.lane.b32.xlu0 %v866, 120
        %v872 = vpop.permute.xlu0 %871
        %v875 = vsub.f32 %v857, %v870
        %v876 = vsub.f32 %v858, %v872
        %877 = vrot.lane.b32.xlu0 %v637, 104
        %v878 = vpop.permute.xlu0 %877
        %879 = vrot.lane.b32.xlu0 %v638, 104
        %v880 = vpop.permute.xlu0 %879
        %v883 = vmul.f32 %v631, %v878
        %v884 = vmul.f32 %v633, %v880
        %885 = vrot.lane.b32.xlu0 %v641, 96
        %v886 = vpop.permute.xlu0 %885
        %887 = vrot.lane.b32.xlu0 %v642, 96
        %v888 = vpop.permute.xlu0 %887
        %v891 = vmul.f32 %v631, %v886
        %v892 = vmul.f32 %v633, %v888
        %895 = vrot.lane.b32.xlu0 %v891, 8
        %v896 = vpop.permute.xlu0 %895
        %897 = vrot.lane.b32.xlu0 %v892, 8
        %v898 = vpop.permute.xlu0 %897
        %v901 = vadd.f32 %v883, %v896
        %v902 = vadd.f32 %v884, %v898
        %905 = vrot.lane.b32.xlu0 %v875, 32
        %v906 = vpop.permute.xlu0 %905
        %907 = vrot.lane.b32.xlu0 %v876, 32
        %v908 = vpop.permute.xlu0 %907
        %913 = vrot.lane.b32.xlu0 %v901, 32
        %v914 = vpop.permute.xlu0 %913
        %915 = vrot.lane.b32.xlu0 %v902, 32
        %v916 = vpop.permute.xlu0 %915
        %919 = vrot.lane.b32.xlu0 %v631, 32
        %v920 = vpop.permute.xlu0 %919
        %921 = vrot.lane.b32.xlu0 %v633, 32
        %v922 = vpop.permute.xlu0 %921
        %v925 = vsel %vm687, %v906, %v914
        %v926 = vsel %vm687, %v908, %v916
        %v927 = vsel %vm690, %v925, %v920
        %v928 = vsel %vm690, %v926, %v922
        %931 = vrot.lane.b32.xlu0 %v771, 32
        %v932 = vpop.permute.xlu0 %931
        %933 = vrot.lane.b32.xlu0 %v772, 32
        %v934 = vpop.permute.xlu0 %933
        %939 = vrot.lane.b32.xlu0 %v849, 64
        %v940 = vpop.permute.xlu0 %939
        %941 = vrot.lane.b32.xlu0 %v850, 64
        %v942 = vpop.permute.xlu0 %941
        %947 = vrot.lane.b32.xlu0 %v927, 96
        %v948 = vpop.permute.xlu0 %947
        %949 = vrot.lane.b32.xlu0 %v928, 96
        %v950 = vpop.permute.xlu0 %949
        %vm953 = vcmask 261120
        %v954 = vsel %vm953, %v691, %v932
        %v955 = vsel %vm953, %v692, %v934
        %vm956 = vcmask 523264
        %v957 = vsel %vm956, %v954, %v940
        %v958 = vsel %vm956, %v955, %v942
        %vm959 = vcmask 785408
        %v960 = vsel %vm959, %v957, %v948
        %v961 = vsel %vm959, %v958, %v950
        %v962 = vpack.c.bf16 %v960, %v960
        %v963 = vpack.c.bf16 %v961, %v961
        %964 = vst [vmem:[%s384] sm:$0xf] %v962
        %965 = vst [vmem:[%s384 + $0x4] sm:$0xf] %v963
        %v966 = vmul.f32 %v632, %v637
        %v967 = vmul.f32 %v634, %v638
        %v968 = vmul.f32 %v632, %v648
        %v969 = vmul.f32 %v634, %v650
        %972 = vrot.lane.b32.xlu0 %v968, 120
        %v973 = vpop.permute.xlu0 %972
        %974 = vrot.lane.b32.xlu0 %v969, 120
        %v975 = vpop.permute.xlu0 %974
        %v978 = vsub.f32 %v966, %v973
        %v979 = vsub.f32 %v967, %v975
        %v980 = vmul.f32 %v632, %v668
        %v981 = vmul.f32 %v634, %v670
        %v982 = vmul.f32 %v632, %v641
        %v983 = vmul.f32 %v634, %v642
        %986 = vrot.lane.b32.xlu0 %v982, 8
        %v987 = vpop.permute.xlu0 %986
        %988 = vrot.lane.b32.xlu0 %v983, 8
        %v989 = vpop.permute.xlu0 %988
        %v992 = vadd.f32 %v980, %v987
        %v993 = vadd.f32 %v981, %v989
        %v994 = vsel %vm687, %v978, %v992
        %v995 = vsel %vm687, %v979, %v993
        %v996 = vsel %vm690, %v994, %v632
        %v997 = vsel %vm690, %v995, %v634
        %v998 = vmul.f32 %v632, %v694
        %v999 = vmul.f32 %v634, %v696
        %v1000 = vmul.f32 %v632, %v702
        %v1001 = vmul.f32 %v634, %v704
        %1004 = vrot.lane.b32.xlu0 %v1000, 120
        %v1005 = vpop.permute.xlu0 %1004
        %1006 = vrot.lane.b32.xlu0 %v1001, 120
        %v1007 = vpop.permute.xlu0 %1006
        %v1010 = vsub.f32 %v998, %v1005
        %v1011 = vsub.f32 %v999, %v1007
        %v1012 = vmul.f32 %v632, %v720
        %v1013 = vmul.f32 %v634, %v722
        %v1014 = vmul.f32 %v632, %v728
        %v1015 = vmul.f32 %v634, %v730
        %1018 = vrot.lane.b32.xlu0 %v1014, 8
        %v1019 = vpop.permute.xlu0 %1018
        %1020 = vrot.lane.b32.xlu0 %v1015, 8
        %v1021 = vpop.permute.xlu0 %1020
        %v1024 = vadd.f32 %v1012, %v1019
        %v1025 = vadd.f32 %v1013, %v1021
        %1028 = vrot.lane.b32.xlu0 %v1010, 96
        %v1029 = vpop.permute.xlu0 %1028
        %1030 = vrot.lane.b32.xlu0 %v1011, 96
        %v1031 = vpop.permute.xlu0 %1030
        %1036 = vrot.lane.b32.xlu0 %v1024, 96
        %v1037 = vpop.permute.xlu0 %1036
        %1038 = vrot.lane.b32.xlu0 %v1025, 96
        %v1039 = vpop.permute.xlu0 %1038
        %1044 = vrot.lane.b32.xlu0 %v632, 96
        %v1045 = vpop.permute.xlu0 %1044
        %1046 = vrot.lane.b32.xlu0 %v634, 96
        %v1047 = vpop.permute.xlu0 %1046
        %v1050 = vsel %vm687, %v1029, %v1037
        %v1051 = vsel %vm687, %v1031, %v1039
        %v1052 = vsel %vm690, %v1050, %v1045
        %v1053 = vsel %vm690, %v1051, %v1047
        %1056 = vrot.lane.b32.xlu0 %v1052, 32
        %v1057 = vpop.permute.xlu0 %1056
        %1058 = vrot.lane.b32.xlu0 %v1053, 32
        %v1059 = vpop.permute.xlu0 %1058
        %v1062 = vsel %vm953, %v996, %v1057
        %v1063 = vsel %vm953, %v997, %v1059
        %v1064 = vpack.c.bf16 %v1062, %v1062
        %v1065 = vpack.c.bf16 %v1063, %v1063
        %vm1066 = vcmask 519168
        %1067 = vst.msk [vmem:[%s390] sm:$0xf] %vm1066, %v1064
        %1068 = vst.msk [vmem:[%s390 + $0x4] sm:$0xf] %vm1066, %v1065
        %v1069 = vpack.c.bf16 %v632, %v632
        %v1070 = vpack.c.bf16 %v634, %v634
        %1073 = vrot.lane.b32.xlu0 %v1069, 64
        %v1074 = vpop.permute.xlu0 %1073
        %1075 = vrot.lane.b32.xlu0 %v1070, 64
        %v1076 = vpop.permute.xlu0 %1075
        %1079 = vst.msk [vmem:[%s396] sm:$0xf] %vm1066, %v1074
        %1080 = vst.msk [vmem:[%s396 + $0x4] sm:$0xf] %vm1066, %v1076
      $region52: #{_lambda_.10} parent=43 // pred_fallthru
        _
      %s1081 = smul.u32 2, %s24
      %p1082 = scmp.lt.s32.totalorder %s1081, 3
      %s1083 = scalar_select %p1082, %s1081, 3
      %s1084 = smul.addr %s1083, 4
      %s1085 = scalar_lea.vmem %s6, %s1084
      %s1086 = smul.u32 2, %s24
      %p1087 = scmp.lt.s32.totalorder %s1086, 3
      %s1088 = scalar_select %p1087, %s1086, 3
      %s1089 = smul.addr %s1088, 4
      %s1090 = scalar_lea.vmem %s7, %s1089
      %s1091 = smul.u32 2, %s24
      %p1092 = scmp.lt.s32.totalorder %s1091, 3
      %s1093 = scalar_select %p1092, %s1091, 3
      %s1094 = smul.addr %s1093, 4
      %s1095 = scalar_lea.vmem %s8, %s1094
      // Predicated region
      $region53: #{_lambda_.10} parent=43 // pred_check
        %p1096 = pneg %p193
      $region54: #{_lambda_.10} parent=43 // pred_check_branch
        %1098 = sbr.rel (%p1096) target = $region56
      $region55: #{_lambda_.10} parent=43 // pred_region
        %s1099 = smul.u32 2, %s24
      $region56: #{_lambda_.10} parent=43 // pred_fallthru
        _
      // Predicated region
      $region57: #{_lambda_.10} parent=43 // pred_check
        %p1100 = pneg %p219
      $region58: #{_lambda_.10} parent=43 // pred_check_branch
        %1102 = sbr.rel (%p1100) target = $region60
      $region59: #{_lambda_.10} parent=43 // pred_region
        %s1103 = smul.u32 2, %s24
      $region60: #{_lambda_.10} parent=43 // pred_fallthru
        _
      // Predicated region
      $region61: #{_lambda_.10} parent=43 // pred_check
        %p1104 = pneg %p245
      $region62: #{_lambda_.10} parent=43 // pred_check_branch
        %1106 = sbr.rel (%p1104) target = $region64
      $region63: #{_lambda_.10} parent=43 // pred_region
        %s1107 = smul.u32 2, %s24
      $region64: #{_lambda_.10} parent=43 // pred_fallthru
        _
    $region44: #{_lambda_.10} parent=5 // pred_fallthru
      _
    %p1108 = scmp.le.s32.totalorder 2, %s15
    // Predicated region
    $region65: #{_lambda_.10} parent=5 // pred_check
      %p1109 = pneg %p1108
    $region66: #{_lambda_.10} parent=5 // pred_check_branch
      %1111 = sbr.rel (%p1109) target = $region68
    $region67: #{_lambda_.10} parent=5 // pred_region
      %s1112 = ssub.s32 %s15, 2
      // Predicated region
      $region69: #{_lambda_.10} parent=67 // pred_check
        %p1113 = pneg %p199
      $region70: #{_lambda_.10} parent=67 // pred_check_branch
        %1115 = sbr.rel (%p1113) target = $region72
      $region71: #{_lambda_.10} parent=67 // pred_region
        %s1116 = smul.u32 2, %s26
        %p1117 = scmp.lt.s32.totalorder %s1116, 3
        %s1118 = scalar_select %p1117, %s1116, 3
        %s1119 = smul.addr %s1118, 4
        %s1120 = scalar_lea.vmem %s6, %s1119
      $region72: #{_lambda_.10} parent=67 // pred_fallthru
        _
      // Predicated region
      $region73: #{_lambda_.10} parent=67 // pred_check
        %p1121 = pneg %p225
      $region74: #{_lambda_.10} parent=67 // pred_check_branch
        %1123 = sbr.rel (%p1121) target = $region76
      $region75: #{_lambda_.10} parent=67 // pred_region
        %s1124 = smul.u32 2, %s26
        %p1125 = scmp.lt.s32.totalorder %s1124, 3
        %s1126 = scalar_select %p1125, %s1124, 3
        %s1127 = smul.addr %s1126, 4
        %s1128 = scalar_lea.vmem %s7, %s1127
      $region76: #{_lambda_.10} parent=67 // pred_fallthru
        _
      // Predicated region
      $region77: #{_lambda_.10} parent=67 // pred_check
        %p1129 = pneg %p251
      $region78: #{_lambda_.10} parent=67 // pred_check_branch
        %1131 = sbr.rel (%p1129) target = $region80
      $region79: #{_lambda_.10} parent=67 // pred_region
        %s1132 = smul.u32 2, %s26
        %p1133 = scmp.lt.s32.totalorder %s1132, 3
        %s1134 = scalar_select %p1133, %s1132, 3
        %s1135 = smul.addr %s1134, 4
        %s1136 = scalar_lea.vmem %s8, %s1135
      $region80: #{_lambda_.10} parent=67 // pred_fallthru
        _
    $region68: #{_lambda_.10} parent=5 // pred_fallthru
      _
  $region6: #{_lambda_.10} parent=0 // loop_footer
    %s19 = sadd.s32 1, %s15
  $region7: #{_lambda_.10} parent=0 // loop_footer_branch
    %14 = sbr.rel target = $region3
  $region8: #{_lambda_.10} parent=0 // loop_exit
    _

// kernel: _lambda_.8
$region0: #{_lambda_.8}
  #allocation0 [shape = 'u32[]', space=smem, size = 0x4, offset = 0x4, fixed_abs, tag = 'smem constant byte address 0x4 - core index']
  #allocation1 [shape = 'u32[72,128]{1,0:T(1,128)}', space=vmem, size = 0x9000, scoped, tag = 'internal scratch']
  #allocation2 [shape = 'f32[4,16,1]{2,1,0:T(8,128)}', space=vmem, size = 0x8000, scoped, tag = 'scratch operand']
  #allocation3 [shape = 'f32[4,16,1]{2,1,0:T(8,128)}', space=vmem, size = 0x8000, scoped, tag = 'scratch operand']
  #allocation4 [shape = 'f32[4,16,32]{2,1,0:T(8,128)}', space=vmem, size = 0x8000, scoped, tag = 'scratch operand']
  %s0 = inlined_call_operand.vmem [shape: bf16[32,128], index: 0, kind: input, shape index: {}]
  %s1 = inlined_call_operand.vmem [shape: bf16[32,64], index: 1, kind: input, shape index: {}]
  %s2 = inlined_call_operand.vmem [shape: bf16[32,64], index: 2, kind: input, shape index: {}]
  %s3 = inlined_call_operand.vmem [shape: bf16[32,128], index: 3, kind: output, shape index: {}]
  %s4 = sld [smem:[#allocation0]]
  $region57: #{_lambda_.8} parent=0
    _
  %s6 = ssub.s32 1, %s4
  %s7 = scalar_select 0, %s6, %s4
  loop: start=0, step=1, limit=4
  $region2: #{_lambda_.8} parent=0 // loop_pre_header
    _
  $region3: #{_lambda_.8} parent=0 // loop_header
    %s9 = sphi 0, %s13
    %p10 = scmp.ge.s32.totalorder %s9, 4
    %s16 = sphi 0, %s35
    %s17 = sphi 0, %s31
    %s18 = sphi 0, %s27
    %s19 = sphi 0, %s16
    %s20 = sphi 0, %s17
    %s21 = sphi 0, %s18
    %s22 = sphi 0, %s19
    %s23 = sphi 0, %s20
    %s24 = sphi 0, %s21
    %s40 = sphi 0, %s42
    %s43 = sphi 0, %s40
    %s44 = sphi 0, %s43
    %s60 = sphi 0, %s44
    %s68 = sphi 0, %s70
    %s71 = sphi 0, %s68
    %s72 = sphi 0, %s71
    %s88 = sphi 0, %s72
    %s96 = sphi 0, %s98
    %s99 = sphi 0, %s96
    %s100 = sphi 0, %s99
    %s116 = sphi 0, %s100
    %s124 = sphi 0, %s126
    %s127 = sphi 0, %s124
    %s128 = sphi 0, %s127
    %s144 = sphi 0, %s128
  $region4: #{_lambda_.8} parent=0 // loop_header_branch
    %12 = sbr.rel (%p10) target = $region8
  $region5: #{_lambda_.8} parent=0 // loop_body
    %s14 = ssub.s32 %s9, 1
    %s15 = ssub.s32 %s9, 2
    %s25 = sadd.s32 1, %s18
    %p26 = scmp.ge.s32.totalorder %s25, 1
    %s27 = scalar_select %p26, 0, %s25
    %s28 = sadd.s32 1, %s17
    %s29 = scalar_select %p26, %s28, %s17
    %p30 = scmp.ge.s32.totalorder %s29, 1
    %s31 = scalar_select %p30, 0, %s29
    %s32 = sadd.s32 1, %s16
    %s33 = scalar_select %p30, %s32, %s16
    %p34 = scmp.ge.s32.totalorder %s33, 2
    %s35 = scalar_select %p34, 0, %s33
    %s36 = sadd.s32 %s16, %s17
    %s37 = sadd.s32 %s35, %s31
    %s38 = ssub.s32 %s36, %s37
    %p39 = scmp.eq.s32.totalorder %s38, 0
    %s41 = sadd.s32 %s40, 1
    %s42 = scalar_select %p39, %s40, %s41
    %p45 = pneg %p39
    %p46 = scmp.eq.s32.totalorder %s9, 1
    %p47 = por %p45, %p46
    %p48 = scmp.ne.s32.totalorder %s40, %s43
    %p49 = scmp.eq.s32.totalorder %s9, 0
    %p50 = por %p48, %p49
    %p51 = scmp.ne.s32.totalorder %s40, %s43
    %p52 = scmp.eq.s32.totalorder %s14, 1
    %p53 = por %p51, %p52
    %p54 = scmp.ne.s32.totalorder %s43, %s44
    %p55 = scmp.eq.s32.totalorder %s14, 0
    %p56 = por %p54, %p55
    %p57 = scmp.ne.s32.totalorder %s43, %s44
    %p58 = scmp.eq.s32.totalorder %s15, 1
    %p59 = por %p57, %p58
    %p61 = scmp.ne.s32.totalorder %s44, %s60
    %p62 = scmp.eq.s32.totalorder %s15, 0
    %p63 = por %p61, %p62
    %s64 = sadd.s32 %s16, %s18
    %s65 = sadd.s32 %s35, %s27
    %s66 = ssub.s32 %s64, %s65
    %p67 = scmp.eq.s32.totalorder %s66, 0
    %s69 = sadd.s32 %s68, 1
    %s70 = scalar_select %p67, %s68, %s69
    %p73 = pneg %p67
    %p74 = scmp.eq.s32.totalorder %s9, 1
    %p75 = por %p73, %p74
    %p76 = scmp.ne.s32.totalorder %s68, %s71
    %p77 = scmp.eq.s32.totalorder %s9, 0
    %p78 = por %p76, %p77
    %p79 = scmp.ne.s32.totalorder %s68, %s71
    %p80 = scmp.eq.s32.totalorder %s14, 1
    %p81 = por %p79, %p80
    %p82 = scmp.ne.s32.totalorder %s71, %s72
    %p83 = scmp.eq.s32.totalorder %s14, 0
    %p84 = por %p82, %p83
    %p85 = scmp.ne.s32.totalorder %s71, %s72
    %p86 = scmp.eq.s32.totalorder %s15, 1
    %p87 = por %p85, %p86
    %p89 = scmp.ne.s32.totalorder %s72, %s88
    %p90 = scmp.eq.s32.totalorder %s15, 0
    %p91 = por %p89, %p90
    %s92 = sadd.s32 %s16, %s18
    %s93 = sadd.s32 %s35, %s27
    %s94 = ssub.s32 %s92, %s93
    %p95 = scmp.eq.s32.totalorder %s94, 0
    %s97 = sadd.s32 %s96, 1
    %s98 = scalar_select %p95, %s96, %s97
    %p101 = pneg %p95
    %p102 = scmp.eq.s32.totalorder %s9, 1
    %p103 = por %p101, %p102
    %p104 = scmp.ne.s32.totalorder %s96, %s99
    %p105 = scmp.eq.s32.totalorder %s9, 0
    %p106 = por %p104, %p105
    %p107 = scmp.ne.s32.totalorder %s96, %s99
    %p108 = scmp.eq.s32.totalorder %s14, 1
    %p109 = por %p107, %p108
    %p110 = scmp.ne.s32.totalorder %s99, %s100
    %p111 = scmp.eq.s32.totalorder %s14, 0
    %p112 = por %p110, %p111
    %p113 = scmp.ne.s32.totalorder %s99, %s100
    %p114 = scmp.eq.s32.totalorder %s15, 1
    %p115 = por %p113, %p114
    %p117 = scmp.ne.s32.totalorder %s100, %s116
    %p118 = scmp.eq.s32.totalorder %s15, 0
    %p119 = por %p117, %p118
    %s120 = sadd.s32 %s16, %s17
    %s121 = sadd.s32 %s35, %s31
    %s122 = ssub.s32 %s120, %s121
    %p123 = scmp.eq.s32.totalorder %s122, 0
    %s125 = sadd.s32 %s124, 1
    %s126 = scalar_select %p123, %s124, %s125
    %p129 = pneg %p123
    %p130 = scmp.eq.s32.totalorder %s9, 1
    %p131 = por %p129, %p130
    %p132 = scmp.ne.s32.totalorder %s124, %s127
    %p133 = scmp.eq.s32.totalorder %s9, 0
    %p134 = por %p132, %p133
    %p135 = scmp.ne.s32.totalorder %s124, %s127
    %p136 = scmp.eq.s32.totalorder %s14, 1
    %p137 = por %p135, %p136
    %p138 = scmp.ne.s32.totalorder %s127, %s128
    %p139 = scmp.eq.s32.totalorder %s14, 0
    %p140 = por %p138, %p139
    %p141 = scmp.ne.s32.totalorder %s127, %s128
    %p142 = scmp.eq.s32.totalorder %s15, 1
    %p143 = por %p141, %p142
    %p145 = scmp.ne.s32.totalorder %s128, %s144
    %p146 = scmp.eq.s32.totalorder %s15, 0
    %p147 = por %p145, %p146
    %p148 = scmp.le.s32.totalorder 1, %s9
    %p149 = scmp.lt.s32.totalorder %s9, 3
    %p150 = pnand %p148, %p149
    %p151 = pneg %p150
    // Predicated region
    $region9: #{_lambda_.8} parent=5 // pred_check
      _
    $region10: #{_lambda_.8} parent=5 // pred_check_branch
      %153 = sbr.rel (%p150) target = $region12
    $region11: #{_lambda_.8} parent=5 // pred_region
      %s154 = ssub.s32 %s9, 1
    $region12: #{_lambda_.8} parent=5 // pred_fallthru
      _
    %p155 = scmp.lt.s32.totalorder %s9, 2
    // Predicated region
    $region13: #{_lambda_.8} parent=5 // pred_check
      %p156 = pneg %p155
    $region14: #{_lambda_.8} parent=5 // pred_check_branch
      %158 = sbr.rel (%p156) target = $region16
    $region15: #{_lambda_.8} parent=5 // pred_region
      // Predicated region
      $region17: #{_lambda_.8} parent=15 // pred_check
        %p159 = pneg %p50
      $region18: #{_lambda_.8} parent=15 // pred_check_branch
        %161 = sbr.rel (%p159) target = $region20
      $region19: #{_lambda_.8} parent=15 // pred_region
        %s162 = sadd.s32 %s16, %s17
        %s163 = smul.u32 2, %s162
        %p164 = scmp.lt.s32.totalorder %s163, 3
        %s165 = scalar_select %p164, %s163, 3
        %s166 = smul.addr %s165, 4
        %s167 = scalar_lea.vmem %s0, %s166
        %s168 = sadd.s32 %s16, %s17
        %s169 = smul.u32 2, %s168
      $region20: #{_lambda_.8} parent=15 // pred_fallthru
        _
      // Predicated region
      $region21: #{_lambda_.8} parent=15 // pred_check
        %p170 = pneg %p78
      $region22: #{_lambda_.8} parent=15 // pred_check_branch
        %172 = sbr.rel (%p170) target = $region24
      $region23: #{_lambda_.8} parent=15 // pred_region
        %s173 = sadd.s32 %s16, %s18
        %s174 = smul.u32 2, %s173
        %p175 = scmp.lt.s32.totalorder %s174, 3
        %s176 = scalar_select %p175, %s174, 3
        %s177 = smul.addr %s176, 4
        %s178 = scalar_lea.vmem %s1, %s177
        %s179 = sadd.s32 %s16, %s18
        %s180 = smul.u32 2, %s179
      $region24: #{_lambda_.8} parent=15 // pred_fallthru
        _
      // Predicated region
      $region25: #{_lambda_.8} parent=15 // pred_check
        %p181 = pneg %p106
      $region26: #{_lambda_.8} parent=15 // pred_check_branch
        %183 = sbr.rel (%p181) target = $region28
      $region27: #{_lambda_.8} parent=15 // pred_region
        %s184 = sadd.s32 %s16, %s18
        %s185 = smul.u32 2, %s184
        %p186 = scmp.lt.s32.totalorder %s185, 3
        %s187 = scalar_select %p186, %s185, 3
        %s188 = smul.addr %s187, 4
        %s189 = scalar_lea.vmem %s2, %s188
        %s190 = sadd.s32 %s16, %s18
        %s191 = smul.u32 2, %s190
      $region28: #{_lambda_.8} parent=15 // pred_fallthru
        _
    $region16: #{_lambda_.8} parent=5 // pred_fallthru
      _
    %p192 = scmp.le.s32.totalorder 1, %s9
    %p193 = scmp.lt.s32.totalorder %s9, 3
    %p194 = pnand %p192, %p193
    %p195 = pneg %p194
    // Predicated region
    $region29: #{_lambda_.8} parent=5 // pred_check
      _
    $region30: #{_lambda_.8} parent=5 // pred_check_branch
      %197 = sbr.rel (%p194) target = $region32
    $region31: #{_lambda_.8} parent=5 // pred_region
      %s198 = ssub.s32 %s9, 1
      %s199 = sadd.s32 %s19, %s20
      %s200 = smul.u32 2, %s199
      %p201 = scmp.lt.s32.totalorder %s200, 3
      %s202 = scalar_select %p201, %s200, 3
      %s203 = smul.addr %s202, 4
      %s204 = scalar_lea.vmem %s0, %s203
      %p205 = pneg %p56
      %p206 = pneg %p53
      %s207 = sadd.s32 %s19, %s21
      %s208 = smul.u32 2, %s207
      %p209 = scmp.lt.s32.totalorder %s208, 3
      %s210 = scalar_select %p209, %s208, 3
      %s211 = smul.addr %s210, 4
      %s212 = scalar_lea.vmem %s1, %s211
      %p213 = pneg %p84
      %p214 = pneg %p81
      %s215 = sadd.s32 %s19, %s21
      %s216 = smul.u32 2, %s215
      %p217 = scmp.lt.s32.totalorder %s216, 3
      %s218 = scalar_select %p217, %s216, 3
      %s219 = smul.addr %s218, 4
      %s220 = scalar_lea.vmem %s2, %s219
      %p221 = pneg %p112
      %p222 = pneg %p109
      %p223 = pneg %p140
      %p224 = pneg %p137
      %s225 = sadd.s32 %s19, %s20
      %s226 = smul.u32 2, %s225
      %p227 = scmp.lt.s32.totalorder %s226, 3
      %s228 = scalar_select %p227, %s226, 3
      %s229 = smul.addr %s228, 4
      %s230 = scalar_lea.vmem %s3, %s229
      %s231 = sadd.s32 %s19, %s20
      %s232 = smul.u32 2, %s231
      %p233 = scmp.lt.s32.totalorder %s232, 3
      %s234 = scalar_select %p233, %s232, 3
      %s235 = smul.addr %s234, 4
      %s236 = scalar_lea.vmem %s0, %s235
      %s237 = sadd.s32 %s19, %s20
      %s238 = smul.u32 2, %s237
      %s239 = sadd.s32 %s19, %s21
      %s240 = smul.u32 2, %s239
      %p241 = scmp.lt.s32.totalorder %s240, 3
      %s242 = scalar_select %p241, %s240, 3
      %s243 = smul.addr %s242, 4
      %s244 = scalar_lea.vmem %s1, %s243
      %s245 = sadd.s32 %s19, %s21
      %s246 = smul.u32 2, %s245
      %s247 = sadd.s32 %s19, %s21
      %s248 = smul.u32 2, %s247
      %p249 = scmp.lt.s32.totalorder %s248, 3
      %s250 = scalar_select %p249, %s248, 3
      %s251 = smul.addr %s250, 4
      %s252 = scalar_lea.vmem %s2, %s251
      %s253 = sadd.s32 %s19, %s21
      %s254 = smul.u32 2, %s253
      %s255 = sadd.s32 %s19, %s20
      %s256 = smul.u32 2, %s255
      %p257 = scmp.lt.s32.totalorder %s256, 3
      %s258 = scalar_select %p257, %s256, 3
      %s259 = smul.addr %s258, 4
      %s260 = scalar_lea.vmem %s3, %s259
      %s261 = sadd.s32 %s19, %s20
      %s262 = smul.u32 2, %s261
      %p264 = scmp.eq.s32.totalorder %s21, 0
      // Predicated region
      $region33: #{_lambda_.8} parent=31 // pred_check
        %p265 = pneg %p264
      $region34: #{_lambda_.8} parent=31 // pred_check_branch
        %267 = sbr.rel (%p265) target = $region36
      $region35: #{_lambda_.8} parent=31 // pred_region
        %vm268 = vcmask 7168
        %269 = vst.msk [vmem:[#allocation2] sm:$0xff] %vm268, -1e+30
        %270 = vst.msk [vmem:[#allocation2 + $0x8] sm:$0xff] %vm268, -1e+30
        %271 = vst.msk [vmem:[#allocation2 + $0x10] sm:$0xff] %vm268, -1e+30
        %272 = vst.msk [vmem:[#allocation2 + $0x18] sm:$0xff] %vm268, -1e+30
        %273 = vst.msk [vmem:[#allocation2 + $0x20] sm:$0xff] %vm268, -1e+30
        %274 = vst.msk [vmem:[#allocation2 + $0x28] sm:$0xff] %vm268, -1e+30
        %275 = vst.msk [vmem:[#allocation2 + $0x30] sm:$0xff] %vm268, -1e+30
        %276 = vst.msk [vmem:[#allocation2 + $0x38] sm:$0xff] %vm268, -1e+30
        %277 = vst.msk [vmem:[#allocation3] sm:$0xff] %vm268, 0.0
        %278 = vst.msk [vmem:[#allocation3 + $0x8] sm:$0xff] %vm268, 0.0
        %279 = vst.msk [vmem:[#allocation3 + $0x10] sm:$0xff] %vm268, 0.0
        %280 = vst.msk [vmem:[#allocation3 + $0x18] sm:$0xff] %vm268, 0.0
        %281 = vst.msk [vmem:[#allocation3 + $0x20] sm:$0xff] %vm268, 0.0
        %282 = vst.msk [vmem:[#allocation3 + $0x28] sm:$0xff] %vm268, 0.0
        %283 = vst.msk [vmem:[#allocation3 + $0x30] sm:$0xff] %vm268, 0.0
        %284 = vst.msk [vmem:[#allocation3 + $0x38] sm:$0xff] %vm268, 0.0
        %vm285 = vcmask 261120
        %286 = vst.msk [vmem:[#allocation4] sm:$0xff] %vm285, 0.0
        %287 = vst.msk [vmem:[#allocation4 + $0x8] sm:$0xff] %vm285, 0.0
        %288 = vst.msk [vmem:[#allocation4 + $0x10] sm:$0xff] %vm285, 0.0
        %289 = vst.msk [vmem:[#allocation4 + $0x18] sm:$0xff] %vm285, 0.0
        %290 = vst.msk [vmem:[#allocation4 + $0x20] sm:$0xff] %vm285, 0.0
        %291 = vst.msk [vmem:[#allocation4 + $0x28] sm:$0xff] %vm285, 0.0
        %292 = vst.msk [vmem:[#allocation4 + $0x30] sm:$0xff] %vm285, 0.0
        %293 = vst.msk [vmem:[#allocation4 + $0x38] sm:$0xff] %vm285, 0.0
      $region36: #{_lambda_.8} parent=31 // pred_fallthru
        _
      %s294 = smul.u32 %s21, 16
      %s295 = smul.u32 %s20, 16
      %s296 = sadd.s32 %s295, 15
      %p297 = scmp.le.s32.totalorder %s294, %s296
      // Predicated region
      $region37: #{_lambda_.8} parent=31 // pred_check
        %p298 = pneg %p297
      $region38: #{_lambda_.8} parent=31 // pred_check_branch
        %300 = sbr.rel (%p298) target = $region40
      $region39: #{_lambda_.8} parent=31 // pred_region
        %v301 = vlaneseq
        %v302 = vshrl.u32 %v301, 7
        %v303 = vadd.s32 %v302, 8
        %v304 = vstv %s295
        %v305 = vadd.s32 %v304, %v302
        %v306 = vadd.s32 %v304, %v303
        %v307 = vlaneseq
        %v308 = vand.u32 %v307, 127
        %v309 = vstv %s294
        %v310 = vadd.s32 %v309, %v308
        %vm311 = vcmp.ge.s32.totalorder %v305, %v310
        %vm312 = vcmp.ge.s32.totalorder %v306, %v310
        %v313 = vld [vmem:[%s244] sm:$0xf]
        %v314 = vld [vmem:[%s244 + $0x4] sm:$0xf]
        %v315 = vld [vmem:[%s252] sm:$0xf]
        %v316 = vld [vmem:[%s252 + $0x4] sm:$0xf]
        %v317 = vld [vmem:[%s236] sm:$0xf]
        %v318 = vld [vmem:[%s236 + $0x4] sm:$0xf]
        %v319 = vunpack.c.l.bf16 %v317
        %v320 = vunpack.c.l.bf16 %v318
        %v321 = vmul.f32 %v319, 0.17677669
        %v322 = vmul.f32 %v320, 0.17677669
        %v323 = vpack.c.bf16 %v322, %v321
        %v326 = vunpack.c.l.b16 %v313
        %v327 = vunpack.c.l.b16 %v314
        %v328 = vpack.c.b16 %v327, %v326
        %vm329 = vcmask 261120
        %v331 = vsel %vm329, %v323, 0
        %v334 = vsel %vm329, %v328, 0
        %336 = vmatpush.bf16.xpose.msra.mxu0 0
        %337 = vmatpush.bf16.xpose.msra.mxu0 0
        %338 = vmatpush.bf16.xpose.msra.mxu0 0
        %339 = vmatpush.bf16.xpose.msra.mxu0 0
        %340 = vmatpush.bf16.xpose.msra.mxu0 0
        %341 = vmatpush.bf16.xpose.msra.mxu0 0
        %342 = vmatpush.bf16.xpose.msra.mxu0 0
        %343 = vmatpush.bf16.xpose.msra.mxu0 %v334
        %344 = vmatmul.bf16.gmra.mxu0 %v331
        %v345 = vpop.f32.mrf.mxu0
        %v346 = vadd.f32 0.0, %v345
        %v347 = vpop.f32.mrf.mxu0
        %v348 = vadd.f32 0.0, %v347
        %349 = vdwg.mxu0
        %v350 = vsel %vm311, %v346, -1e+30
        %v351 = vsel %vm312, %v348, -1e+30
        %v352 = vld [vmem:[#allocation2] sm:$0xff]
        %v353 = vld [vmem:[#allocation2 + $0x8] sm:$0xff]
        %vm354 = vcmask 130048
        %v355 = vsel %vm354, %v350, -inf
        %356 = vmax.xlane.f32.xlu0 %v355
        %v357 = vpop.xlane.xlu0 %356
        %v358 = vsel %vm354, %v351, -inf
        %359 = vmax.xlane.f32.xlu0 %v358
        %v360 = vpop.xlane.xlu0 %359
        %v361 = vmax.f32 %v352, %v357
        %v362 = vmax.f32 %v353, %v360
        %v363 = vsub.f32 %v352, %v361
        %v364 = vsub.f32 %v353, %v362
        %v365 = vmul.f32 %v363, 1.442695
        %v366 = vpow.pop %v365
        %v367 = vmul.f32 %v364, 1.442695
        %v368 = vpow.pop %v367
        %370 = vset.pattern.permute.xlu0 0
        %371 = vperm.xlu0 %370, %v361
        %v372 = vpop.permute.xlu0 %371
        %375 = vset.pattern.permute.xlu0 0
        %376 = vperm.xlu0 %375, %v362
        %v377 = vpop.permute.xlu0 %376
        %v379 = vsub.f32 %v350, %v372
        %v380 = vsub.f32 %v351, %v377
        %v381 = vmul.f32 %v379, 1.442695
        %v382 = vpow.pop %v381
        %v383 = vmul.f32 %v380, 1.442695
        %v384 = vpow.pop %v383
        %v385 = vld [vmem:[#allocation3] sm:$0xff]
        %v386 = vld [vmem:[#allocation3 + $0x8] sm:$0xff]
        %v387 = vmul.f32 %v366, %v385
        %v388 = vmul.f32 %v368, %v386
        %v389 = vsel %vm354, %v382, 0.0
        %390 = vadd.xlane.f32.xlu0 %v389
        %v391 = vpop.xlane.xlu0 %390
        %v392 = vsel %vm354, %v384, 0.0
        %393 = vadd.xlane.f32.xlu0 %v392
        %v394 = vpop.xlane.xlu0 %393
        %v395 = vadd.f32 %v387, %v391
        %v396 = vadd.f32 %v388, %v394
        %vm397 = vcmask 7168
        %398 = vst.msk [vmem:[#allocation3] sm:$0xff] %vm397, %v395
        %399 = vst.msk [vmem:[#allocation3 + $0x8] sm:$0xff] %vm397, %v396
        %v400 = vpack.c.bf16 %v384, %v382
        %v403 = vunpack.c.l.b16 %v315
        %v404 = vunpack.c.l.b16 %v316
        %v405 = vpack.c.b16 %v404, %v403
        %v408 = vsel %vm354, %v400, 0
        %410 = vmatpush.bf16.msra.mxu0 0
        %411 = vmatpush.bf16.msra.mxu0 0
        %412 = vmatpush.bf16.msra.mxu0 0
        %413 = vmatpush.bf16.msra.mxu0 0
        %414 = vmatpush.bf16.msra.mxu0 0
        %415 = vmatpush.bf16.msra.mxu0 0
        %416 = vmatpush.bf16.msra.mxu0 0
        %417 = vmatpush.bf16.msra.mxu0 %v405
        %418 = vmatmul.bf16.gmra.mxu0 %v408
        %v419 = vpop.f32.mrf.mxu0
        %v420 = vadd.f32 0.0, %v419
        %v421 = vpop.f32.mrf.mxu0
        %v422 = vadd.f32 0.0, %v421
        %423 = vdwg.mxu0
        %v424 = vld [vmem:[#allocation4] sm:$0xff]
        %v425 = vld [vmem:[#allocation4 + $0x8] sm:$0xff]
        %427 = vset.pattern.permute.xlu0 0
        %428 = vperm.xlu0 %427, %v366
        %v429 = vpop.permute.xlu0 %428
        %432 = vset.pattern.permute.xlu0 0
        %433 = vperm.xlu0 %432, %v368
        %v434 = vpop.permute.xlu0 %433
        %v436 = vmul.f32 %v429, %v424
        %v437 = vmul.f32 %v434, %v425
        %v438 = vadd.f32 %v436, %v420
        %v439 = vadd.f32 %v437, %v422
        %440 = vst.msk [vmem:[#allocation4] sm:$0xff] %vm329, %v438
        %441 = vst.msk [vmem:[#allocation4 + $0x8] sm:$0xff] %vm329, %v439
        %442 = vst.msk [vmem:[#allocation2] sm:$0xff] %vm397, %v361
        %443 = vst.msk [vmem:[#allocation2 + $0x8] sm:$0xff] %vm397, %v362
        %v444 = vld [vmem:[%s236] sm:$0xf]
        %v445 = vld [vmem:[%s236 + $0x4] sm:$0xf]
        %v446 = vunpack.c.l.bf16 %v444
        %v447 = vunpack.c.l.bf16 %v445
        %v448 = vmul.f32 %v446, 0.17677669
        %v449 = vmul.f32 %v447, 0.17677669
        %v450 = vpack.c.bf16 %v449, %v448
        %452 = vrot.lane.b32.xlu0 %v450, 96
        %v453 = vpop.permute.xlu0 %452
        %v455 = vsel %vm329, %v453, 0
        %457 = vmatpush.bf16.xpose.msra.mxu0 0
        %458 = vmatpush.bf16.xpose.msra.mxu0 0
        %459 = vmatpush.bf16.xpose.msra.mxu0 0
        %460 = vmatpush.bf16.xpose.msra.mxu0 0
        %461 = vmatpush.bf16.xpose.msra.mxu0 0
        %462 = vmatpush.bf16.xpose.msra.mxu0 0
        %463 = vmatpush.bf16.xpose.msra.mxu0 0
        %464 = vmatpush.bf16.xpose.msra.mxu0 %v334
        %465 = vmatmul.bf16.gmra.mxu0 %v455
        %v466 = vpop.f32.mrf.mxu0
        %v467 = vadd.f32 0.0, %v466
        %v468 = vpop.f32.mrf.mxu0
        %v469 = vadd.f32 0.0, %v468
        %470 = vdwg.mxu0
        %v471 = vsel %vm311, %v467, -1e+30
        %v472 = vsel %vm312, %v469, -1e+30
        %s473 = scalar_lea.vmem [#allocation2], 16
        %v474 = vld [vmem:[%s473] sm:$0xff]
        %v475 = vld [vmem:[%s473 + $0x8] sm:$0xff]
        %v476 = vsel %vm354, %v471, -inf
        %477 = vmax.xlane.f32.xlu0 %v476
        %v478 = vpop.xlane.xlu0 %477
        %v479 = vsel %vm354, %v472, -inf
        %480 = vmax.xlane.f32.xlu0 %v479
        %v481 = vpop.xlane.xlu0 %480
        %v482 = vmax.f32 %v474, %v478
        %v483 = vmax.f32 %v475, %v481
        %v484 = vsub.f32 %v474, %v482
        %v485 = vsub.f32 %v475, %v483
        %v486 = vmul.f32 %v484, 1.442695
        %v487 = vpow.pop %v486
        %v488 = vmul.f32 %v485, 1.442695
        %v489 = vpow.pop %v488
        %491 = vset.pattern.permute.xlu0 0
        %492 = vperm.xlu0 %491, %v482
        %v493 = vpop.permute.xlu0 %492
        %496 = vset.pattern.permute.xlu0 0
        %497 = vperm.xlu0 %496, %v483
        %v498 = vpop.permute.xlu0 %497
        %v500 = vsub.f32 %v471, %v493
        %v501 = vsub.f32 %v472, %v498
        %v502 = vmul.f32 %v500, 1.442695
        %v503 = vpow.pop %v502
        %v504 = vmul.f32 %v501, 1.442695
        %v505 = vpow.pop %v504
        %s506 = scalar_lea.vmem [#allocation3], 16
        %v507 = vld [vmem:[%s506] sm:$0xff]
        %v508 = vld [vmem:[%s506 + $0x8] sm:$0xff]
        %v509 = vmul.f32 %v487, %v507
        %v510 = vmul.f32 %v489, %v508
        %v511 = vsel %vm354, %v503, 0.0
        %512 = vadd.xlane.f32.xlu0 %v511
        %v513 = vpop.xlane.xlu0 %512
        %v514 = vsel %vm354, %v505, 0.0
        %515 = vadd.xlane.f32.xlu0 %v514
        %v516 = vpop.xlane.xlu0 %515
        %v517 = vadd.f32 %v509, %v513
        %v518 = vadd.f32 %v510, %v516
        %519 = vst.msk [vmem:[%s506] sm:$0xff] %vm397, %v517
        %520 = vst.msk [vmem:[%s506 + $0x8] sm:$0xff] %vm397, %v518
        %v521 = vpack.c.bf16 %v505, %v503
        %v523 = vsel %vm354, %v521, 0
        %525 = vmatpush.bf16.msra.mxu0 0
        %526 = vmatpush.bf16.msra.mxu0 0
        %527 = vmatpush.bf16.msra.mxu0 0
        %528 = vmatpush.bf16.msra.mxu0 0
        %529 = vmatpush.bf16.msra.mxu0 0
        %530 = vmatpush.bf16.msra.mxu0 0
        %531 = vmatpush.bf16.msra.mxu0 0
        %532 = vmatpush.bf16.msra.mxu0 %v405
        %533 = vmatmul.bf16.gmra.mxu0 %v523
        %v534 = vpop.f32.mrf.mxu0
        %v535 = vadd.f32 0.0, %v534
        %v536 = vpop.f32.mrf.mxu0
        %v537 = vadd.f32 0.0, %v536
        %538 = vdwg.mxu0
        %s539 = scalar_lea.vmem [#allocation4], 16
        %v540 = vld [vmem:[%s539] sm:$0xff]
        %v541 = vld [vmem:[%s539 + $0x8] sm:$0xff]
        %543 = vset.pattern.permute.xlu0 0
        %544 = vperm.xlu0 %543, %v487
        %v545 = vpop.permute.xlu0 %544
        %548 = vset.pattern.permute.xlu0 0
        %549 = vperm.xlu0 %548, %v489
        %v550 = vpop.permute.xlu0 %549
        %v552 = vmul.f32 %v545, %v540
        %v553 = vmul.f32 %v550, %v541
        %v554 = vadd.f32 %v552, %v535
        %v555 = vadd.f32 %v553, %v537
        %556 = vst.msk [vmem:[%s539] sm:$0xff] %vm329, %v554
        %557 = vst.msk [vmem:[%s539 + $0x8] sm:$0xff] %vm329, %v555
        %558 = vst.msk [vmem:[%s473] sm:$0xff] %vm397, %v482
        %559 = vst.msk [vmem:[%s473 + $0x8] sm:$0xff] %vm397, %v483
        %v560 = vld [vmem:[%s236] sm:$0xf]
        %v561 = vld [vmem:[%s236 + $0x4] sm:$0xf]
        %v562 = vunpack.c.l.bf16 %v560
        %v563 = vunpack.c.l.bf16 %v561
        %v564 = vmul.f32 %v562, 0.17677669
        %v565 = vmul.f32 %v563, 0.17677669
        %v566 = vpack.c.bf16 %v565, %v564
        %568 = vrot.lane.b32.xlu0 %v566, 64
        %v569 = vpop.permute.xlu0 %568
        %570 = vrot.lane.b32.xlu0 %v328, 96
        %v571 = vpop.permute.xlu0 %570
        %v573 = vsel %vm329, %v569, 0
        %v576 = vsel %vm329, %v571, 0
        %578 = vmatpush.bf16.xpose.msra.mxu0 0
        %579 = vmatpush.bf16.xpose.msra.mxu0 0
        %580 = vmatpush.bf16.xpose.msra.mxu0 0
        %581 = vmatpush.bf16.xpose.msra.mxu0 0
        %582 = vmatpush.bf16.xpose.msra.mxu0 0
        %583 = vmatpush.bf16.xpose.msra.mxu0 0
        %584 = vmatpush.bf16.xpose.msra.mxu0 0
        %585 = vmatpush.bf16.xpose.msra.mxu0 %v576
        %586 = vmatmul.bf16.gmra.mxu0 %v573
        %v587 = vpop.f32.mrf.mxu0
        %v588 = vadd.f32 0.0, %v587
        %v589 = vpop.f32.mrf.mxu0
        %v590 = vadd.f32 0.0, %v589
        %591 = vdwg.mxu0
        %v592 = vsel %vm311, %v588, -1e+30
        %v593 = vsel %vm312, %v590, -1e+30
        %s594 = scalar_lea.vmem [#allocation2], 32
        %v595 = vld [vmem:[%s594] sm:$0xff]
        %v596 = vld [vmem:[%s594 + $0x8] sm:$0xff]
        %v597 = vsel %vm354, %v592, -inf
        %598 = vmax.xlane.f32.xlu0 %v597
        %v599 = vpop.xlane.xlu0 %598
        %v600 = vsel %vm354, %v593, -inf
        %601 = vmax.xlane.f32.xlu0 %v600
        %v602 = vpop.xlane.xlu0 %601
        %v603 = vmax.f32 %v595, %v599
        %v604 = vmax.f32 %v596, %v602
        %v605 = vsub.f32 %v595, %v603
        %v606 = vsub.f32 %v596, %v604
        %v607 = vmul.f32 %v605, 1.442695
        %v608 = vpow.pop %v607
        %v609 = vmul.f32 %v606, 1.442695
        %v610 = vpow.pop %v609
        %612 = vset.pattern.permute.xlu0 0
        %613 = vperm.xlu0 %612, %v603
        %v614 = vpop.permute.xlu0 %613
        %617 = vset.pattern.permute.xlu0 0
        %618 = vperm.xlu0 %617, %v604
        %v619 = vpop.permute.xlu0 %618
        %v621 = vsub.f32 %v592, %v614
        %v622 = vsub.f32 %v593, %v619
        %v623 = vmul.f32 %v621, 1.442695
        %v624 = vpow.pop %v623
        %v625 = vmul.f32 %v622, 1.442695
        %v626 = vpow.pop %v625
        %s627 = scalar_lea.vmem [#allocation3], 32
        %v628 = vld [vmem:[%s627] sm:$0xff]
        %v629 = vld [vmem:[%s627 + $0x8] sm:$0xff]
        %v630 = vmul.f32 %v608, %v628
        %v631 = vmul.f32 %v610, %v629
        %v632 = vsel %vm354, %v624, 0.0
        %633 = vadd.xlane.f32.xlu0 %v632
        %v634 = vpop.xlane.xlu0 %633
        %v635 = vsel %vm354, %v626, 0.0
        %636 = vadd.xlane.f32.xlu0 %v635
        %v637 = vpop.xlane.xlu0 %636
        %v638 = vadd.f32 %v630, %v634
        %v639 = vadd.f32 %v631, %v637
        %640 = vst.msk [vmem:[%s627] sm:$0xff] %vm397, %v638
        %641 = vst.msk [vmem:[%s627 + $0x8] sm:$0xff] %vm397, %v639
        %v642 = vpack.c.bf16 %v626, %v624
        %643 = vrot.lane.b32.xlu0 %v405, 96
        %v644 = vpop.permute.xlu0 %643
        %v647 = vsel %vm354, %v642, 0
        %649 = vmatpush.bf16.msra.mxu0 0
        %650 = vmatpush.bf16.msra.mxu0 0
        %651 = vmatpush.bf16.msra.mxu0 0
        %652 = vmatpush.bf16.msra.mxu0 0
        %653 = vmatpush.bf16.msra.mxu0 0
        %654 = vmatpush.bf16.msra.mxu0 0
        %655 = vmatpush.bf16.msra.mxu0 0
        %656 = vmatpush.bf16.msra.mxu0 %v644
        %657 = vmatmul.bf16.gmra.mxu0 %v647
        %v658 = vpop.f32.mrf.mxu0
        %v659 = vadd.f32 0.0, %v658
        %v660 = vpop.f32.mrf.mxu0
        %v661 = vadd.f32 0.0, %v660
        %662 = vdwg.mxu0
        %s663 = scalar_lea.vmem [#allocation4], 32
        %v664 = vld [vmem:[%s663] sm:$0xff]
        %v665 = vld [vmem:[%s663 + $0x8] sm:$0xff]
        %667 = vset.pattern.permute.xlu0 0
        %668 = vperm.xlu0 %667, %v608
        %v669 = vpop.permute.xlu0 %668
        %672 = vset.pattern.permute.xlu0 0
        %673 = vperm.xlu0 %672, %v610
        %v674 = vpop.permute.xlu0 %673
        %v676 = vmul.f32 %v669, %v664
        %v677 = vmul.f32 %v674, %v665
        %v678 = vadd.f32 %v676, %v659
        %v679 = vadd.f32 %v677, %v661
        %680 = vst.msk [vmem:[%s663] sm:$0xff] %vm329, %v678
        %681 = vst.msk [vmem:[%s663 + $0x8] sm:$0xff] %vm329, %v679
        %682 = vst.msk [vmem:[%s594] sm:$0xff] %vm397, %v603
        %683 = vst.msk [vmem:[%s594 + $0x8] sm:$0xff] %vm397, %v604
        %v684 = vld [vmem:[%s236] sm:$0xf]
        %v685 = vld [vmem:[%s236 + $0x4] sm:$0xf]
        %v686 = vunpack.c.l.bf16 %v684
        %v687 = vunpack.c.l.bf16 %v685
        %v688 = vmul.f32 %v686, 0.17677669
        %v689 = vmul.f32 %v687, 0.17677669
        %v690 = vpack.c.bf16 %v689, %v688
        %692 = vrot.lane.b32.xlu0 %v690, 32
        %v693 = vpop.permute.xlu0 %692
        %v695 = vsel %vm329, %v693, 0
        %697 = vmatpush.bf16.xpose.msra.mxu0 0
        %698 = vmatpush.bf16.xpose.msra.mxu0 0
        %699 = vmatpush.bf16.xpose.msra.mxu0 0
        %700 = vmatpush.bf16.xpose.msra.mxu0 0
        %701 = vmatpush.bf16.xpose.msra.mxu0 0
        %702 = vmatpush.bf16.xpose.msra.mxu0 0
        %703 = vmatpush.bf16.xpose.msra.mxu0 0
        %704 = vmatpush.bf16.xpose.msra.mxu0 %v576
        %705 = vmatmul.bf16.gmra.mxu0 %v695
        %v706 = vpop.f32.mrf.mxu0
        %v707 = vadd.f32 0.0, %v706
        %v708 = vpop.f32.mrf.mxu0
        %v709 = vadd.f32 0.0, %v708
        %710 = vdwg.mxu0
        %v711 = vsel %vm311, %v707, -1e+30
        %v712 = vsel %vm312, %v709, -1e+30
        %s713 = scalar_lea.vmem [#allocation2], 48
        %v714 = vld [vmem:[%s713] sm:$0xff]
        %v715 = vld [vmem:[%s713 + $0x8] sm:$0xff]
        %v716 = vsel %vm354, %v711, -inf
        %717 = vmax.xlane.f32.xlu0 %v716
        %v718 = vpop.xlane.xlu0 %717
        %v719 = vsel %vm354, %v712, -inf
        %720 = vmax.xlane.f32.xlu0 %v719
        %v721 = vpop.xlane.xlu0 %720
        %v722 = vmax.f32 %v714, %v718
        %v723 = vmax.f32 %v715, %v721
        %v724 = vsub.f32 %v714, %v722
        %v725 = vsub.f32 %v715, %v723
        %v726 = vmul.f32 %v724, 1.442695
        %v727 = vpow.pop %v726
        %v728 = vmul.f32 %v725, 1.442695
        %v729 = vpow.pop %v728
        %731 = vset.pattern.permute.xlu0 0
        %732 = vperm.xlu0 %731, %v722
        %v733 = vpop.permute.xlu0 %732
        %736 = vset.pattern.permute.xlu0 0
        %737 = vperm.xlu0 %736, %v723
        %v738 = vpop.permute.xlu0 %737
        %v740 = vsub.f32 %v711, %v733
        %v741 = vsub.f32 %v712, %v738
        %v742 = vmul.f32 %v740, 1.442695
        %v743 = vpow.pop %v742
        %v744 = vmul.f32 %v741, 1.442695
        %v745 = vpow.pop %v744
        %s746 = scalar_lea.vmem [#allocation3], 48
        %v747 = vld [vmem:[%s746] sm:$0xff]
        %v748 = vld [vmem:[%s746 + $0x8] sm:$0xff]
        %v749 = vmul.f32 %v727, %v747
        %v750 = vmul.f32 %v729, %v748
        %v751 = vsel %vm354, %v743, 0.0
        %752 = vadd.xlane.f32.xlu0 %v751
        %v753 = vpop.xlane.xlu0 %752
        %v754 = vsel %vm354, %v745, 0.0
        %755 = vadd.xlane.f32.xlu0 %v754
        %v756 = vpop.xlane.xlu0 %755
        %v757 = vadd.f32 %v749, %v753
        %v758 = vadd.f32 %v750, %v756
        %759 = vst.msk [vmem:[%s746] sm:$0xff] %vm397, %v757
        %760 = vst.msk [vmem:[%s746 + $0x8] sm:$0xff] %vm397, %v758
        %v761 = vpack.c.bf16 %v745, %v743
        %v763 = vsel %vm354, %v761, 0
        %765 = vmatpush.bf16.msra.mxu0 0
        %766 = vmatpush.bf16.msra.mxu0 0
        %767 = vmatpush.bf16.msra.mxu0 0
        %768 = vmatpush.bf16.msra.mxu0 0
        %769 = vmatpush.bf16.msra.mxu0 0
        %770 = vmatpush.bf16.msra.mxu0 0
        %771 = vmatpush.bf16.msra.mxu0 0
        %772 = vmatpush.bf16.msra.mxu0 %v644
        %773 = vmatmul.bf16.gmra.mxu0 %v763
        %v774 = vpop.f32.mrf.mxu0
        %v775 = vadd.f32 0.0, %v774
        %v776 = vpop.f32.mrf.mxu0
        %v777 = vadd.f32 0.0, %v776
        %778 = vdwg.mxu0
        %s779 = scalar_lea.vmem [#allocation4], 48
        %v780 = vld [vmem:[%s779] sm:$0xff]
        %v781 = vld [vmem:[%s779 + $0x8] sm:$0xff]
        %783 = vset.pattern.permute.xlu0 0
        %784 = vperm.xlu0 %783, %v727
        %v785 = vpop.permute.xlu0 %784
        %788 = vset.pattern.permute.xlu0 0
        %789 = vperm.xlu0 %788, %v729
        %v790 = vpop.permute.xlu0 %789
        %v792 = vmul.f32 %v785, %v780
        %v793 = vmul.f32 %v790, %v781
        %v794 = vadd.f32 %v792, %v775
        %v795 = vadd.f32 %v793, %v777
        %796 = vst.msk [vmem:[%s779] sm:$0xff] %vm329, %v794
        %797 = vst.msk [vmem:[%s779 + $0x8] sm:$0xff] %vm329, %v795
        %798 = vst.msk [vmem:[%s713] sm:$0xff] %vm397, %v722
        %799 = vst.msk [vmem:[%s713 + $0x8] sm:$0xff] %vm397, %v723
      $region40: #{_lambda_.8} parent=31 // pred_fallthru
        _
      // Predicated region
      $region41: #{_lambda_.8} parent=31 // pred_check
        %p800 = pneg %p264
      $region42: #{_lambda_.8} parent=31 // pred_check_branch
        %802 = sbr.rel (%p800) target = $region44
      $region43: #{_lambda_.8} parent=31 // pred_region
        %v803 = vld [vmem:[#allocation3] sm:$0xff]
        %v804 = vld [vmem:[#allocation3 + $0x8] sm:$0xff]
        %v805 = vrcp.pop %v803
        %v806 = vrcp.pop %v804
        %v807 = vld [vmem:[#allocation4] sm:$0xff]
        %v808 = vld [vmem:[#allocation4 + $0x8] sm:$0xff]
        %810 = vset.pattern.permute.xlu0 0
        %811 = vperm.xlu0 %810, %v805
        %v812 = vpop.permute.xlu0 %811
        %815 = vset.pattern.permute.xlu0 0
        %816 = vperm.xlu0 %815, %v806
        %v817 = vpop.permute.xlu0 %816
        %v819 = vmul.f32 %v807, %v812
        %v820 = vmul.f32 %v808, %v817
        %s821 = scalar_lea.vmem [#allocation3], 16
        %v822 = vld [vmem:[%s821] sm:$0xff]
        %v823 = vld [vmem:[%s821 + $0x8] sm:$0xff]
        %v824 = vrcp.pop %v822
        %v825 = vrcp.pop %v823
        %s826 = scalar_lea.vmem [#allocation4], 16
        %v827 = vld [vmem:[%s826] sm:$0xff]
        %v828 = vld [vmem:[%s826 + $0x8] sm:$0xff]
        %830 = vset.pattern.permute.xlu0 0
        %831 = vperm.xlu0 %830, %v824
        %v832 = vpop.permute.xlu0 %831
        %835 = vset.pattern.permute.xlu0 0
        %836 = vperm.xlu0 %835, %v825
        %v837 = vpop.permute.xlu0 %836
        %v839 = vmul.f32 %v827, %v832
        %v840 = vmul.f32 %v828, %v837
        %s841 = scalar_lea.vmem [#allocation3], 32
        %v842 = vld [vmem:[%s841] sm:$0xff]
        %v843 = vld [vmem:[%s841 + $0x8] sm:$0xff]
        %v844 = vrcp.pop %v842
        %v845 = vrcp.pop %v843
        %s846 = scalar_lea.vmem [#allocation4], 32
        %v847 = vld [vmem:[%s846] sm:$0xff]
        %v848 = vld [vmem:[%s846 + $0x8] sm:$0xff]
        %850 = vset.pattern.permute.xlu0 0
        %851 = vperm.xlu0 %850, %v844
        %v852 = vpop.permute.xlu0 %851
        %855 = vset.pattern.permute.xlu0 0
        %856 = vperm.xlu0 %855, %v845
        %v857 = vpop.permute.xlu0 %856
        %v859 = vmul.f32 %v847, %v852
        %v860 = vmul.f32 %v848, %v857
        %s861 = scalar_lea.vmem [#allocation3], 48
        %v862 = vld [vmem:[%s861] sm:$0xff]
        %v863 = vld [vmem:[%s861 + $0x8] sm:$0xff]
        %v864 = vrcp.pop %v862
        %v865 = vrcp.pop %v863
        %s866 = scalar_lea.vmem [#allocation4], 48
        %v867 = vld [vmem:[%s866] sm:$0xff]
        %v868 = vld [vmem:[%s866 + $0x8] sm:$0xff]
        %870 = vset.pattern.permute.xlu0 0
        %871 = vperm.xlu0 %870, %v864
        %v872 = vpop.permute.xlu0 %871
        %875 = vset.pattern.permute.xlu0 0
        %876 = vperm.xlu0 %875, %v865
        %v877 = vpop.permute.xlu0 %876
        %v879 = vmul.f32 %v867, %v872
        %v880 = vmul.f32 %v868, %v877
        %883 = vrot.lane.b32.xlu0 %v839, 32
        %v884 = vpop.permute.xlu0 %883
        %885 = vrot.lane.b32.xlu0 %v840, 32
        %v886 = vpop.permute.xlu0 %885
        %891 = vrot.lane.b32.xlu0 %v859, 64
        %v892 = vpop.permute.xlu0 %891
        %893 = vrot.lane.b32.xlu0 %v860, 64
        %v894 = vpop.permute.xlu0 %893
        %899 = vrot.lane.b32.xlu0 %v879, 96
        %v900 = vpop.permute.xlu0 %899
        %901 = vrot.lane.b32.xlu0 %v880, 96
        %v902 = vpop.permute.xlu0 %901
        %vm905 = vcmask 261120
        %v906 = vsel %vm905, %v819, %v884
        %v907 = vsel %vm905, %v820, %v886
        %vm908 = vcmask 523264
        %v909 = vsel %vm908, %v906, %v892
        %v910 = vsel %vm908, %v907, %v894
        %vm911 = vcmask 785408
        %v912 = vsel %vm911, %v909, %v900
        %v913 = vsel %vm911, %v910, %v902
        %v914 = vpack.c.bf16 %v912, %v912
        %v915 = vpack.c.bf16 %v913, %v913
        %916 = vst [vmem:[%s260] sm:$0xf] %v914
        %917 = vst [vmem:[%s260 + $0x4] sm:$0xf] %v915
      $region44: #{_lambda_.8} parent=31 // pred_fallthru
        _
      %s918 = sadd.s32 %s19, %s20
      %s919 = smul.u32 2, %s918
      %p920 = scmp.lt.s32.totalorder %s919, 3
      %s921 = scalar_select %p920, %s919, 3
      %s922 = smul.addr %s921, 4
      %s923 = scalar_lea.vmem %s3, %s922
      // Predicated region
      $region45: #{_lambda_.8} parent=31 // pred_check
        %p924 = pneg %p137
      $region46: #{_lambda_.8} parent=31 // pred_check_branch
        %926 = sbr.rel (%p924) target = $region48
      $region47: #{_lambda_.8} parent=31 // pred_region
        %s927 = sadd.s32 %s19, %s20
        %s928 = smul.u32 2, %s927
      $region48: #{_lambda_.8} parent=31 // pred_fallthru
        _
    $region32: #{_lambda_.8} parent=5 // pred_fallthru
      _
    %p929 = scmp.le.s32.totalorder 2, %s9
    // Predicated region
    $region49: #{_lambda_.8} parent=5 // pred_check
      %p930 = pneg %p929
    $region50: #{_lambda_.8} parent=5 // pred_check_branch
      %932 = sbr.rel (%p930) target = $region52
    $region51: #{_lambda_.8} parent=5 // pred_region
      %s933 = ssub.s32 %s9, 2
      // Predicated region
      $region53: #{_lambda_.8} parent=51 // pred_check
        %p934 = pneg %p143
      $region54: #{_lambda_.8} parent=51 // pred_check_branch
        %936 = sbr.rel (%p934) target = $region56
      $region55: #{_lambda_.8} parent=51 // pred_region
        %s937 = sadd.s32 %s22, %s23
        %s938 = smul.u32 2, %s937
        %p939 = scmp.lt.s32.totalorder %s938, 3
        %s940 = scalar_select %p939, %s938, 3
        %s941 = smul.addr %s940, 4
        %s942 = scalar_lea.vmem %s3, %s941
      $region56: #{_lambda_.8} parent=51 // pred_fallthru
        _
    $region52: #{_lambda_.8} parent=5 // pred_fallthru
      _
  $region6: #{_lambda_.8} parent=0 // loop_footer
    %s13 = sadd.s32 1, %s9
  $region7: #{_lambda_.8} parent=0 // loop_footer_branch
    %8 = sbr.rel target = $region3
  $region8: #{_lambda_.8} parent=0 // loop_exit
    _

// kernel: _lambda_.13
$region0: #{_lambda_.13}
  #allocation0 [shape = 'u32[]', space=smem, size = 0x4, offset = 0x4, fixed_abs, tag = 'smem constant byte address 0x4 - core index']
  #allocation1 [shape = 'u32[72,128]{1,0:T(1,128)}', space=vmem, size = 0x9000, scoped, tag = 'internal scratch']
  %s0 = inlined_call_operand.vmem [shape: bf16[32,128], index: 0, kind: input, shape index: {}]
  %s1 = inlined_call_operand.vmem [shape: bf16[1,128], index: 1, kind: input, shape index: {}]
  %s2 = inlined_call_operand.hbm [shape: bf16[32,128], index: 2, kind: output, shape index: {}]
  %s3 = sld [smem:[#allocation0]]
  $region18: #{_lambda_.13} parent=0
    _
  %s5 = ssub.s32 1, %s3
  %s6 = scalar_select 0, %s5, %s3
  $region1: #{_lambda_.13} parent=0
    #allocation2 [shape = 'u8[8192]{0}', space=vmem, size = 0x2000, scoped, tag = 'output window, operand 0, single buffered']
    #allocation3 [shape = 's32[1]{0}', space=sflag, size = 0x4, scoped, tag = 'scoped memory for _lambda_.13']
    %7 = vsyncpa [#allocation3], 0
    // Predicated region
    $region2: #{_lambda_.13} parent=1 // pred_check
      _
    $region3: #{_lambda_.13} parent=1 // pred_check_branch
      %9 = sbr.rel (0) target = $region5
    $region4: #{_lambda_.13} parent=1 // pred_region
      _
    $region5: #{_lambda_.13} parent=1 // pred_fallthru
      _
    // Predicated region
    $region6: #{_lambda_.13} parent=1 // pred_check
      _
    $region7: #{_lambda_.13} parent=1 // pred_check_branch
      %11 = sbr.rel (0) target = $region9
    $region8: #{_lambda_.13} parent=1 // pred_region
      _
    $region9: #{_lambda_.13} parent=1 // pred_fallthru
      _
    %v12 = vld [vmem:[%s0] sm:$0xf]
    %v13 = vld [vmem:[%s0 + $0x4] sm:$0xf]
    %v14 = vld [vmem:[%s0 + $0x8] sm:$0xf]
    %v15 = vld [vmem:[%s0 + $0xc] sm:$0xf]
    %v16 = vunpack.c.l.bf16 %v12
    %v17 = vunpack.c.l.bf16 %v13
    %v18 = vunpack.c.l.bf16 %v14
    %v19 = vunpack.c.l.bf16 %v15
    %v20 = vmul.f32 %v16, %v16
    %v21 = vmul.f32 %v17, %v17
    %v22 = vmul.f32 %v18, %v18
    %v23 = vmul.f32 %v19, %v19
    %24 = vadd.xlane.f32.xlu0 %v20
    %v25 = vpop.xlane.xlu0 %24
    %26 = vadd.xlane.f32.xlu0 %v21
    %v27 = vpop.xlane.xlu0 %26
    %28 = vadd.xlane.f32.xlu0 %v22
    %v29 = vpop.xlane.xlu0 %28
    %30 = vadd.xlane.f32.xlu0 %v23
    %v31 = vpop.xlane.xlu0 %30
    %v32 = vrcp.pop 128.0
    %v33 = vmul.f32 128.0, %v32
    %v34 = vsub.f32 1.0, %v33
    %v35 = vmul.f32 %v32, %v34
    %v36 = vadd.f32 %v32, %v35
    %vm37 = vweird.f32 %v32
    %v38 = vsel %vm37, %v32, %v36
    %v39 = vmul.f32 %v25, %v38
    %v40 = vmul.f32 %v27, %v38
    %v41 = vmul.f32 %v29, %v38
    %v42 = vmul.f32 %v31, %v38
    %v43 = vadd.f32 %v39, 1e-05
    %v44 = vadd.f32 %v40, 1e-05
    %v45 = vadd.f32 %v41, 1e-05
    %v46 = vadd.f32 %v42, 1e-05
    %v47 = vrsqrt.pop %v43
    %v48 = vmul.f32 %v47, %v43
    %v49 = vmul.f32 %v48, %v47
    %v50 = vmul.f32 0.5, %v49
    %v51 = vsub.f32 1.5, %v50
    %v52 = vmul.f32 %v47, %v51
    %vm53 = vweird.f32 %v43
    %vm54 = vweird.f32 %v47
    %vm55 = vmor %vm53, %vm54
    %v56 = vsel %vm55, %v47, %v52
    %v57 = vrsqrt.pop %v44
    %v58 = vmul.f32 %v57, %v44
    %v59 = vmul.f32 %v58, %v57
    %v60 = vmul.f32 0.5, %v59
    %v61 = vsub.f32 1.5, %v60
    %v62 = vmul.f32 %v57, %v61
    %vm63 = vweird.f32 %v44
    %vm64 = vweird.f32 %v57
    %vm65 = vmor %vm63, %vm64
    %v66 = vsel %vm65, %v57, %v62
    %v67 = vrsqrt.pop %v45
    %v68 = vmul.f32 %v67, %v45
    %v69 = vmul.f32 %v68, %v67
    %v70 = vmul.f32 0.5, %v69
    %v71 = vsub.f32 1.5, %v70
    %v72 = vmul.f32 %v67, %v71
    %vm73 = vweird.f32 %v45
    %vm74 = vweird.f32 %v67
    %vm75 = vmor %vm73, %vm74
    %v76 = vsel %vm75, %v67, %v72
    %v77 = vrsqrt.pop %v46
    %v78 = vmul.f32 %v77, %v46
    %v79 = vmul.f32 %v78, %v77
    %v80 = vmul.f32 0.5, %v79
    %v81 = vsub.f32 1.5, %v80
    %v82 = vmul.f32 %v77, %v81
    %vm83 = vweird.f32 %v46
    %vm84 = vweird.f32 %v77
    %vm85 = vmor %vm83, %vm84
    %v86 = vsel %vm85, %v77, %v82
    %v87 = vmul.f32 %v16, %v56
    %v88 = vmul.f32 %v17, %v66
    %v89 = vmul.f32 %v18, %v76
    %v90 = vmul.f32 %v19, %v86
    %v91 = vld [vmem:[%s1] sm:$0x1]
    %v92 = vunpack.c.l.bf16 %v91
    %v93 = vperm.slane %v92, 0
    %v94 = vmul.f32 %v87, %v93
    %v95 = vmul.f32 %v88, %v93
    %v96 = vmul.f32 %v89, %v93
    %v97 = vmul.f32 %v90, %v93
    %v98 = vpack.c.bf16 %v94, %v94
    %v99 = vpack.c.bf16 %v95, %v95
    %v100 = vpack.c.bf16 %v96, %v96
    %v101 = vpack.c.bf16 %v97, %v97
    %102 = vst [vmem:[#allocation2] sm:$0xf] %v98
    %103 = vst [vmem:[#allocation2 + $0x4] sm:$0xf] %v99
    %104 = vst [vmem:[#allocation2 + $0x8] sm:$0xf] %v100
    %105 = vst [vmem:[#allocation2 + $0xc] sm:$0xf] %v101
    // Predicated region
    $region10: #{_lambda_.13} parent=1 // pred_check
      _
    $region11: #{_lambda_.13} parent=1 // pred_check_branch
      %107 = sbr.rel (0) target = $region13
    $region12: #{_lambda_.13} parent=1 // pred_region
      %109 = vsyncadd [#allocation3], 0
      %s110 = sshll.u32 [#allocation2], 4
      %s111 = int_to_ptr.vmem [resolvable:$true] %s110
      %s112 = sshll.u32 %s2, 4
      %s113 = int_to_ptr.hbm [resolvable:$true] %s112
      %118 = dma.vmem_to_hbm [thread:$0]  %s111, 256, %s113, [#allocation3], 64, 64, 4
    $region13: #{_lambda_.13} parent=1 // pred_fallthru
      _
    // Predicated region
    $region14: #{_lambda_.13} parent=1 // pred_check
      _
    $region15: #{_lambda_.13} parent=1 // pred_check_branch
      %120 = sbr.rel (0) target = $region17
    $region16: #{_lambda_.13} parent=1 // pred_region
      %122 = dma.done [#allocation3], 256
    $region17: #{_lambda_.13} parent=1 // pred_fallthru
      _
    %123 = vsyncpa [#allocation3], 1

</llo_original>
